<compile_context>
chip_gen: v6e
topology: v6e:2x2x1
jax: 0.10.0
libtpu: 0.0.40
codegen_flags: <defaults>
</compile_context>

<pallas_src>
import functools
import math

import numpy as np
import jax
import jax.numpy as jnp
from jax import lax
from jax.experimental import pallas as pl
from jax.experimental.pallas import tpu as pltpu


def _dot_nt(a, b):
    # a: (M, K), b: (N, K) -> (M, N), contraction on the trailing axis of both (MXU, f32 acc).
    return lax.dot_general(a, b, (((1,), (1,)), ((), ())),
                           preferred_element_type=jnp.float32)


def _rel_shift(pos_score, keep_mask, zero_mask):
    """Exact semantics of torch's zero-pad + reshape relative shift (square case):

        out[i, j] = pos_score[i,   S-1-i+j]   if j <= i
                  = 0                         if j == i+1
                  = pos_score[i+1, j-i-2]     if j >= i+2

    Implemented with three XLU rotates + two selects:
        rolled[i, j]    = pos_score[i, (j - i - 1) mod S]
        rolled_up[i, j] = rolled[(i + 1) mod S, j]   (wrap row never selected)
    """
    S = pos_score.shape[0]
    # Static lane rotate by 1, then a per-row extra rotate by the row index i
    # (per-row amounts 0..S-1, strictly in range) -> total right-rotate of (i + 1).
    rolled = pltpu.roll(pos_score, 1, 1)
    rolled = pltpu.roll(rolled, 0, 1, stride=1, stride_axis=0)
    # rolled_up[i] = rolled[i + 1]; the wraparound row (i = S-1) is never used
    # because j >= i + 2 is impossible there.
    rolled_up = pltpu.roll(rolled, S - 1, 0)
    return jnp.where(keep_mask, rolled, jnp.where(zero_mask, 0.0, rolled_up))


def _rel_mha_kernel(q_ref, k_ref, v_ref, p_ref,
                    wq_ref, wk_ref, wv_ref, wp_ref,
                    bq_ref, bk_ref, bv_ref,
                    uvb_ref, wo_ref, bo_ref,
                    o_ref, *, num_heads):
    f32, bf16 = jnp.float32, jnp.bfloat16
    _, S, D = q_ref.shape
    H = num_heads
    Dh = D // H
    inv_sqrt_d = 1.0 / float(math.sqrt(D))

    def proj(x_ref, w_ref, b_ref=None):
        y = jnp.dot(x_ref[0], w_ref[...], preferred_element_type=f32)  # bf16 x bf16 -> f32
        if b_ref is not None:
            y = y + b_ref[...]                                         # (1, D) broadcast
        return y

    # ---- head-fused projections, once per batch (256-wide MXU matmuls) ----
    # 1/sqrt(d_model) is folded into the query / u / v side (the relative shift only
    # permutes & zeros entries, so scaling before the shift is equivalent).
    qh_all = (proj(q_ref, wq_ref, bq_ref) * inv_sqrt_d).astype(bf16)   # (S, D)
    kh_all = proj(k_ref, wk_ref, bk_ref).astype(bf16)                  # (S, D)
    vh_all = proj(v_ref, wv_ref, bv_ref).astype(bf16)                  # (S, D)
    ph_all = proj(p_ref, wp_ref).astype(bf16)                          # (S, D), no bias

    # K and P stacked along rows -> a single (S, 2S) score matmul per head.
    kp_all = jnp.concatenate([kh_all, ph_all], axis=0)                 # (2S, D) bf16
    # Interleaved (u, v) bias rows: rows (2h, 2h+1) belong to head h. Scaled once.
    uv_all = (uvb_ref[...] * inv_sqrt_d).astype(bf16)                  # (2H, Dh)

    # Hoisted relative-shift selection masks (shared by all heads).
    i_idx = lax.broadcasted_iota(jnp.int32, (S, S), 0)
    j_idx = lax.broadcasted_iota(jnp.int32, (S, S), 1)
    rel = j_idx - i_idx
    keep_mask = rel <= 0
    zero_mask = rel == 1

    out = jnp.zeros((S, D), f32)
    for h in range(H):                            # static unroll; H is small
        sl = slice(h * Dh, (h + 1) * Dh)
        qh = qh_all[:, sl]                        # (S, Dh)  bf16, already scaled
        kph = kp_all[:, sl]                       # (2S, Dh) bf16, rows = [K_h ; P_h]
        vh = vh_all[:, sl]                        # (S, Dh)  bf16
        uvh = uv_all[2 * h:2 * h + 2, :]          # (2, Dh)  bf16, rows = [u_h ; v_h]

        # Fused content/positional scores: q_h @ [K_h ; P_h]^T -> (S, 2S),
        # plus rank-1 bias terms [u_h ; v_h] @ [K_h ; P_h]^T -> (2, 2S).
        scores = _dot_nt(qh, kph)                 # (S, 2S) f32
        bias = _dot_nt(uvh, kph)                  # (2, 2S) f32
        content = scores[:, :S] + bias[0:1, :S]   # (q+u) @ K^T / sqrt(d)
        pos_raw = scores[:, S:] + bias[1:2, S:]   # (q+v) @ P^T / sqrt(d)

        score = content + _rel_shift(pos_raw, keep_mask, zero_mask)

        m = jnp.max(score, axis=-1, keepdims=True)
        e = jnp.exp(score - m)
        attn = e * pl.reciprocal(jnp.sum(e, axis=-1, keepdims=True), approx=True)
        # nn.Dropout is identity at inference time.

        ctx = jnp.dot(attn.astype(bf16), vh, preferred_element_type=f32)   # (S, Dh)
        # Per-head accumulation of the output projection (no 64-lane ctx concat).
        wo_h = wo_ref[pl.ds(h * Dh, Dh), :]                                # (Dh, D) bf16
        out = out + jnp.dot(ctx.astype(bf16), wo_h, preferred_element_type=f32)

    o_ref[0] = (out + bo_ref[...]).astype(o_ref.dtype)


def relative_multi_head_attention(q, k, v, pos_emb, params, num_heads):
    B, S, D = q.shape
    H = num_heads
    Dh = D // H
    assert D % H == 0 and pos_emb.shape == (B, S, D)
    # Lane-friendly sizes for the MXU / (8,128) tiling and the strided rel-shift rotate.
    assert S % 128 == 0 and D % 128 == 0

    f32, bf16 = jnp.float32, jnp.bfloat16
    acts = [x.astype(bf16) for x in (q, k, v, pos_emb)]          # halve activation DMA bytes
    wq, wk, wv, wp, wo = (params[n].astype(bf16) for n in ("wq", "wk", "wv", "wp", "wo"))
    bq, bk, bv, bo = (params[n].reshape(1, D).astype(f32) for n in ("bq", "bk", "bv", "bo"))
    # Interleave u/v bias rows so head h owns the contiguous row pair (2h, 2h+1).
    uvb = jnp.stack([params["u_bias"], params["v_bias"]],
                    axis=1).reshape(2 * H, Dh).astype(f32)

    act_spec = pl.BlockSpec((1, S, D), lambda b: (b, 0, 0))
    wmat_spec = pl.BlockSpec((D, D), lambda b: (0, 0))    # constant index -> resident weights
    brow_spec = pl.BlockSpec((1, D), lambda b: (0, 0))
    uv_spec = pl.BlockSpec((2 * H, Dh), lambda b: (0, 0))

    kernel = functools.partial(_rel_mha_kernel, num_heads=H)
    return pl.pallas_call(
        kernel,
        out_shape=jax.ShapeDtypeStruct((B, S, D), f32),
        grid=(B,),
        in_specs=([act_spec] * 4
                  + [wmat_spec] * 4
                  + [brow_spec] * 3
                  + [uv_spec]
                  + [wmat_spec, brow_spec]),
        out_specs=pl.BlockSpec((1, S, D), lambda b: (b, 0, 0)),
        compiler_params=pltpu.CompilerParams(
            dimension_semantics=("parallel",),
            vmem_limit_bytes=48 * 1024 * 1024),
    )(*acts, wq, wk, wv, wp, bq, bk, bv, uvb, wo, bo)


def reference(q, k, v, pos_emb, params, num_heads):
    # Pure-JAX (f32) mirror of the PyTorch forward (mask=None, eval mode).
    B, S, D = q.shape
    H = num_heads
    Dh = D // H
    qp = (q @ params["wq"] + params["bq"]).reshape(B, S, H, Dh)
    kp = (k @ params["wk"] + params["bk"]).reshape(B, S, H, Dh).transpose(0, 2, 1, 3)
    vp = (v @ params["wv"] + params["bv"]).reshape(B, S, H, Dh).transpose(0, 2, 1, 3)
    pp = (pos_emb @ params["wp"]).reshape(B, S, H, Dh)
    u, vb = params["u_bias"], params["v_bias"]
    content = jnp.einsum("bhsd,bhtd->bhst", (qp + u).transpose(0, 2, 1, 3), kp)
    pos_score = jnp.einsum("bhsd,bhtd->bhst",
                           (qp + vb).transpose(0, 2, 1, 3),
                           pp.transpose(0, 2, 1, 3))
    zeros = jnp.zeros((B, H, S, 1), pos_score.dtype)
    padded = jnp.concatenate([zeros, pos_score], axis=-1)
    padded = padded.reshape(B, H, S + 1, S)
    pos_score = padded[:, :, 1:].reshape(B, H, S, S)
    score = (content + pos_score) / np.sqrt(D)
    attn = jax.nn.softmax(score, axis=-1)
    out = jnp.einsum("bhst,bhtd->bhsd", attn, vp).transpose(0, 2, 1, 3).reshape(B, S, D)
    return out @ params["wo"] + params["bo"]


if __name__ == "__main__":
    B, S, D, H = 2, 128, 256, 4
    Dh = D // H

    key = jax.random.PRNGKey(0)
    ks = jax.random.split(key, 16)

    def nrm(k_, shape, scale):
        return (scale * jax.random.normal(k_, shape)).astype(jnp.float32)

    bound = float(np.sqrt(6.0 / (H + Dh)))  # xavier_uniform bound for (H, Dh)
    params = {
        "wq": nrm(ks[0], (D, D), 1.0 / np.sqrt(D)),
        "bq": nrm(ks[1], (D,), 0.1),
        "wk": nrm(ks[2], (D, D), 1.0 / np.sqrt(D)),
        "bk": nrm(ks[3], (D,), 0.1),
        "wv": nrm(ks[4], (D, D), 1.0 / np.sqrt(D)),
        "bv": nrm(ks[5], (D,), 0.1),
        "wp": nrm(ks[6], (D, D), 1.0 / np.sqrt(D)),
        "wo": nrm(ks[7], (D, D), 1.0 / np.sqrt(D)),
        "bo": nrm(ks[8], (D,), 0.1),
        "u_bias": jax.random.uniform(ks[9], (H, Dh), jnp.float32, -bound, bound),
        "v_bias": jax.random.uniform(ks[10], (H, Dh), jnp.float32, -bound, bound),
    }

    q = nrm(ks[11], (B, S, D), 1.0)
    k_in = nrm(ks[12], (B, S, D), 1.0)
    v_in = nrm(ks[13], (B, S, D), 1.0)
    pos = nrm(ks[14], (B, S, D), 1.0)

    out = relative_multi_head_attention(q, k_in, v_in, pos, params, H)
    out = jax.block_until_ready(out)

    ref = reference(q, k_in, v_in, pos, params, H)
    np.testing.assert_allclose(np.asarray(out), np.asarray(ref), rtol=5e-2, atol=5e-2)
    print("KERNEL_OK")
</pallas_src>

<mosaic_0001>
module attributes {stable_mosaic.version = 11 : i64} {
  func.func @_rel_mha_kernel(%arg0: i32, %arg1: memref<1x128x256xbf16, #tpu.memory_space<vmem>>, %arg2: memref<1x128x256xbf16, #tpu.memory_space<vmem>>, %arg3: memref<1x128x256xbf16, #tpu.memory_space<vmem>>, %arg4: memref<1x128x256xbf16, #tpu.memory_space<vmem>>, %arg5: memref<256x256xbf16, #tpu.memory_space<vmem>>, %arg6: memref<256x256xbf16, #tpu.memory_space<vmem>>, %arg7: memref<256x256xbf16, #tpu.memory_space<vmem>>, %arg8: memref<256x256xbf16, #tpu.memory_space<vmem>>, %arg9: memref<1x256xf32, #tpu.memory_space<vmem>>, %arg10: memref<1x256xf32, #tpu.memory_space<vmem>>, %arg11: memref<1x256xf32, #tpu.memory_space<vmem>>, %arg12: memref<8x64xf32, #tpu.memory_space<vmem>>, %arg13: memref<256x256xbf16, #tpu.memory_space<vmem>>, %arg14: memref<1x256xf32, #tpu.memory_space<vmem>>, %arg15: memref<1x128x256xf32, #tpu.memory_space<vmem>>) attributes {dimension_semantics = [#tpu.dimension_semantics<parallel>], iteration_bounds = array<i64: 2>, scalar_prefetch = 0 : i64, scratch_operands = 0 : i64, tpu.core_type = #tpu.core_type<tc>, window_params = [{transform_indices = @transform_0, window_bounds = array<i64: 1, 128, 256>}, {transform_indices = @transform_1, window_bounds = array<i64: 1, 128, 256>}, {transform_indices = @transform_2, window_bounds = array<i64: 1, 128, 256>}, {transform_indices = @transform_3, window_bounds = array<i64: 1, 128, 256>}, {pipeline_mode = #tpu.pipeline_mode<synchronous>, transform_indices = @transform_4, window_bounds = array<i64: 256, 256>}, {pipeline_mode = #tpu.pipeline_mode<synchronous>, transform_indices = @transform_5, window_bounds = array<i64: 256, 256>}, {pipeline_mode = #tpu.pipeline_mode<synchronous>, transform_indices = @transform_6, window_bounds = array<i64: 256, 256>}, {pipeline_mode = #tpu.pipeline_mode<synchronous>, transform_indices = @transform_7, window_bounds = array<i64: 256, 256>}, {pipeline_mode = #tpu.pipeline_mode<synchronous>, transform_indices = @transform_8, window_bounds = array<i64: 1, 256>}, {pipeline_mode = #tpu.pipeline_mode<synchronous>, transform_indices = @transform_9, window_bounds = array<i64: 1, 256>}, {pipeline_mode = #tpu.pipeline_mode<synchronous>, transform_indices = @transform_10, window_bounds = array<i64: 1, 256>}, {pipeline_mode = #tpu.pipeline_mode<synchronous>, transform_indices = @transform_11, window_bounds = array<i64: 8, 64>}, {pipeline_mode = #tpu.pipeline_mode<synchronous>, transform_indices = @transform_12, window_bounds = array<i64: 256, 256>}, {pipeline_mode = #tpu.pipeline_mode<synchronous>, transform_indices = @transform_13, window_bounds = array<i64: 1, 256>}, {transform_indices = @transform_14, window_bounds = array<i64: 1, 128, 256>}]} {
    %c0 = arith.constant 0 : index
    %c0_0 = arith.constant 0 : index
    %c0_1 = arith.constant 0 : index
    %0 = vector.load %arg1[%c0, %c0_0, %c0_1] : memref<1x128x256xbf16, #tpu.memory_space<vmem>>, vector<1x128x256xbf16>
    %1 = vector.shape_cast %0 : vector<1x128x256xbf16> to vector<128x256xbf16>
    %c0_2 = arith.constant 0 : index
    %c0_3 = arith.constant 0 : index
    %2 = vector.load %arg5[%c0_2, %c0_3] : memref<256x256xbf16, #tpu.memory_space<vmem>>, vector<256x256xbf16>
    %cst = arith.constant dense<0.000000e+00> : vector<128x256xf32>
    %3 = tpu.matmul %1, %2, %cst {dimension_numbers = #tpu.dot_dimension_numbers<[1], [0], [0], [1], [0, 0, 1, 1], [], []>} : vector<128x256xbf16>, vector<256x256xbf16>, vector<128x256xf32> -> vector<128x256xf32>
    %c0_4 = arith.constant 0 : index
    %c0_5 = arith.constant 0 : index
    %4 = vector.load %arg9[%c0_4, %c0_5] : memref<1x256xf32, #tpu.memory_space<vmem>>, vector<1x256xf32>
    %5 = vector.broadcast %4 : vector<1x256xf32> to vector<128x256xf32>
    %6 = arith.addf %3, %5 : vector<128x256xf32>
    %cst_6 = arith.constant 6.250000e-02 : f32
    %7 = vector.broadcast %cst_6 : f32 to vector<128x256xf32>
    %8 = arith.mulf %6, %7 : vector<128x256xf32>
    %9 = arith.truncf %8 : vector<128x256xf32> to vector<128x256xbf16>
    %c0_7 = arith.constant 0 : index
    %c0_8 = arith.constant 0 : index
    %c0_9 = arith.constant 0 : index
    %10 = vector.load %arg2[%c0_7, %c0_8, %c0_9] : memref<1x128x256xbf16, #tpu.memory_space<vmem>>, vector<1x128x256xbf16>
    %11 = vector.shape_cast %10 : vector<1x128x256xbf16> to vector<128x256xbf16>
    %c0_10 = arith.constant 0 : index
    %c0_11 = arith.constant 0 : index
    %12 = vector.load %arg6[%c0_10, %c0_11] : memref<256x256xbf16, #tpu.memory_space<vmem>>, vector<256x256xbf16>
    %cst_12 = arith.constant dense<0.000000e+00> : vector<128x256xf32>
    %13 = tpu.matmul %11, %12, %cst_12 {dimension_numbers = #tpu.dot_dimension_numbers<[1], [0], [0], [1], [0, 0, 1, 1], [], []>} : vector<128x256xbf16>, vector<256x256xbf16>, vector<128x256xf32> -> vector<128x256xf32>
    %c0_13 = arith.constant 0 : index
    %c0_14 = arith.constant 0 : index
    %14 = vector.load %arg10[%c0_13, %c0_14] : memref<1x256xf32, #tpu.memory_space<vmem>>, vector<1x256xf32>
    %15 = vector.broadcast %14 : vector<1x256xf32> to vector<128x256xf32>
    %16 = arith.addf %13, %15 : vector<128x256xf32>
    %17 = arith.truncf %16 : vector<128x256xf32> to vector<128x256xbf16>
    %c0_15 = arith.constant 0 : index
    %c0_16 = arith.constant 0 : index
    %c0_17 = arith.constant 0 : index
    %18 = vector.load %arg3[%c0_15, %c0_16, %c0_17] : memref<1x128x256xbf16, #tpu.memory_space<vmem>>, vector<1x128x256xbf16>
    %19 = vector.shape_cast %18 : vector<1x128x256xbf16> to vector<128x256xbf16>
    %c0_18 = arith.constant 0 : index
    %c0_19 = arith.constant 0 : index
    %20 = vector.load %arg7[%c0_18, %c0_19] : memref<256x256xbf16, #tpu.memory_space<vmem>>, vector<256x256xbf16>
    %cst_20 = arith.constant dense<0.000000e+00> : vector<128x256xf32>
    %21 = tpu.matmul %19, %20, %cst_20 {dimension_numbers = #tpu.dot_dimension_numbers<[1], [0], [0], [1], [0, 0, 1, 1], [], []>} : vector<128x256xbf16>, vector<256x256xbf16>, vector<128x256xf32> -> vector<128x256xf32>
    %c0_21 = arith.constant 0 : index
    %c0_22 = arith.constant 0 : index
    %22 = vector.load %arg11[%c0_21, %c0_22] : memref<1x256xf32, #tpu.memory_space<vmem>>, vector<1x256xf32>
    %23 = vector.broadcast %22 : vector<1x256xf32> to vector<128x256xf32>
    %24 = arith.addf %21, %23 : vector<128x256xf32>
    %25 = arith.truncf %24 : vector<128x256xf32> to vector<128x256xbf16>
    %c0_23 = arith.constant 0 : index
    %c0_24 = arith.constant 0 : index
    %c0_25 = arith.constant 0 : index
    %26 = vector.load %arg4[%c0_23, %c0_24, %c0_25] : memref<1x128x256xbf16, #tpu.memory_space<vmem>>, vector<1x128x256xbf16>
    %27 = vector.shape_cast %26 : vector<1x128x256xbf16> to vector<128x256xbf16>
    %c0_26 = arith.constant 0 : index
    %c0_27 = arith.constant 0 : index
    %28 = vector.load %arg8[%c0_26, %c0_27] : memref<256x256xbf16, #tpu.memory_space<vmem>>, vector<256x256xbf16>
    %cst_28 = arith.constant dense<0.000000e+00> : vector<128x256xf32>
    %29 = tpu.matmul %27, %28, %cst_28 {dimension_numbers = #tpu.dot_dimension_numbers<[1], [0], [0], [1], [0, 0, 1, 1], [], []>} : vector<128x256xbf16>, vector<256x256xbf16>, vector<128x256xf32> -> vector<128x256xf32>
    %30 = arith.truncf %29 : vector<128x256xf32> to vector<128x256xbf16>
    %31 = tpu.concatenate %17, %30 in 0 : vector<128x256xbf16>, vector<128x256xbf16> -> vector<256x256xbf16>
    %c0_29 = arith.constant 0 : index
    %c0_30 = arith.constant 0 : index
    %32 = vector.load %arg12[%c0_29, %c0_30] : memref<8x64xf32, #tpu.memory_space<vmem>>, vector<8x64xf32>
    %cst_31 = arith.constant 6.250000e-02 : f32
    %33 = vector.broadcast %cst_31 : f32 to vector<8x64xf32>
    %34 = arith.mulf %32, %33 : vector<8x64xf32>
    %35 = arith.truncf %34 : vector<8x64xf32> to vector<8x64xbf16>
    %36 = tpu.iota {dimensions = array<i32: 0>} : vector<128x128xi32>
    %37 = tpu.iota {dimensions = array<i32: 1>} : vector<128x128xi32>
    %38 = arith.subi %37, %36 : vector<128x128xi32>
    %c0_i32 = arith.constant 0 : i32
    %39 = vector.broadcast %c0_i32 : i32 to vector<128x128xi32>
    %40 = arith.cmpi sle, %38, %39 : vector<128x128xi32>
    %c1_i32 = arith.constant 1 : i32
    %41 = vector.broadcast %c1_i32 : i32 to vector<128x128xi32>
    %42 = arith.cmpi eq, %38, %41 : vector<128x128xi32>
    %cst_32 = arith.constant 0.000000e+00 : f32
    %43 = vector.broadcast %cst_32 : f32 to vector<128x256xf32>
    %44 = vector.extract_strided_slice %9 {offsets = [0, 0], sizes = [128, 64], strides = [1, 1]} : vector<128x256xbf16> to vector<128x64xbf16>
    %45 = vector.extract_strided_slice %31 {offsets = [0, 0], sizes = [256, 64], strides = [1, 1]} : vector<256x256xbf16> to vector<256x64xbf16>
    %46 = vector.extract_strided_slice %25 {offsets = [0, 0], sizes = [128, 64], strides = [1, 1]} : vector<128x256xbf16> to vector<128x64xbf16>
    %47 = vector.extract_strided_slice %35 {offsets = [0, 0], sizes = [2, 64], strides = [1, 1]} : vector<8x64xbf16> to vector<2x64xbf16>
    %cst_33 = arith.constant dense<0.000000e+00> : vector<128x256xf32>
    %48 = tpu.matmul %44, %45, %cst_33 {dimension_numbers = #tpu.dot_dimension_numbers<[1], [1], [0], [0], [0, 0, 1, 0], [], []>} : vector<128x64xbf16>, vector<256x64xbf16>, vector<128x256xf32> -> vector<128x256xf32>
    %cst_34 = arith.constant dense<0.000000e+00> : vector<2x256xf32>
    %49 = tpu.matmul %47, %45, %cst_34 {dimension_numbers = #tpu.dot_dimension_numbers<[1], [1], [0], [0], [0, 0, 1, 0], [], []>} : vector<2x64xbf16>, vector<256x64xbf16>, vector<2x256xf32> -> vector<2x256xf32>
    %50 = vector.extract_strided_slice %48 {offsets = [0, 0], sizes = [128, 128], strides = [1, 1]} : vector<128x256xf32> to vector<128x128xf32>
    %51 = vector.extract_strided_slice %49 {offsets = [0, 0], sizes = [1, 128], strides = [1, 1]} : vector<2x256xf32> to vector<1x128xf32>
    %52 = vector.broadcast %51 : vector<1x128xf32> to vector<128x128xf32>
    %53 = arith.addf %50, %52 : vector<128x128xf32>
    %54 = vector.extract_strided_slice %48 {offsets = [0, 128], sizes = [128, 128], strides = [1, 1]} : vector<128x256xf32> to vector<128x128xf32>
    %55 = vector.extract_strided_slice %49 {offsets = [1, 128], sizes = [1, 128], strides = [1, 1]} : vector<2x256xf32> to vector<1x128xf32>
    %56 = vector.broadcast %55 : vector<1x128xf32> to vector<128x128xf32>
    %57 = arith.addf %54, %56 : vector<128x128xf32>
    %c1_i32_35 = arith.constant 1 : i32
    %58 = tpu.dynamic_rotate %57 by %c1_i32_35 dim 1 : vector<128x128xf32>, i32 -> vector<128x128xf32>
    %c0_i32_36 = arith.constant 0 : i32
    %59 = tpu.dynamic_rotate %58 by %c0_i32_36 dim 1 {stride = 1 : si32, stride_dimension = 0 : si32} : vector<128x128xf32>, i32 -> vector<128x128xf32>
    %c127_i32 = arith.constant 127 : i32
    %60 = tpu.dynamic_rotate %59 by %c127_i32 dim 0 : vector<128x128xf32>, i32 -> vector<128x128xf32>
    %cst_37 = arith.constant 0.000000e+00 : f32
    %61 = vector.broadcast %cst_37 : f32 to vector<128x128xf32>
    %62 = arith.select %42, %61, %60 : vector<128x128xi1>, vector<128x128xf32>
    %63 = arith.select %40, %59, %62 : vector<128x128xi1>, vector<128x128xf32>
    %64 = arith.addf %53, %63 : vector<128x128xf32>
    %cst_38 = arith.constant dense<0xFF800000> : vector<128xf32>
    %65 = vector.multi_reduction <maximumf>, %64, %cst_38 [1] : vector<128x128xf32> to vector<128xf32>
    %66 = vector.shape_cast %65 : vector<128xf32> to vector<128x1xf32>
    %67 = vector.broadcast %66 : vector<128x1xf32> to vector<128x128xf32>
    %68 = arith.subf %64, %67 : vector<128x128xf32>
    %69 = math.exp %68 : vector<128x128xf32>
    %cst_39 = arith.constant dense<0.000000e+00> : vector<128xf32>
    %70 = vector.multi_reduction <add>, %69, %cst_39 [1] : vector<128x128xf32> to vector<128xf32>
    %71 = vector.shape_cast %70 : vector<128xf32> to vector<128x1xf32>
    %72 = tpu.reciprocal %71 {approx = true} : vector<128x1xf32> -> vector<128x1xf32>
    %73 = vector.broadcast %72 : vector<128x1xf32> to vector<128x128xf32>
    %74 = arith.mulf %69, %73 : vector<128x128xf32>
    %75 = arith.truncf %74 : vector<128x128xf32> to vector<128x128xbf16>
    %cst_40 = arith.constant dense<0.000000e+00> : vector<128x64xf32>
    %76 = tpu.matmul %75, %46, %cst_40 {dimension_numbers = #tpu.dot_dimension_numbers<[1], [0], [0], [1], [0, 0, 1, 1], [], []>} : vector<128x128xbf16>, vector<128x64xbf16>, vector<128x64xf32> -> vector<128x64xf32>
    %c0_41 = arith.constant 0 : index
    %c0_42 = arith.constant 0 : index
    %77 = vector.load %arg13[%c0_41, %c0_42] : memref<256x256xbf16, #tpu.memory_space<vmem>>, vector<64x256xbf16>
    %78 = arith.truncf %76 : vector<128x64xf32> to vector<128x64xbf16>
    %cst_43 = arith.constant dense<0.000000e+00> : vector<128x256xf32>
    %79 = tpu.matmul %78, %77, %cst_43 {dimension_numbers = #tpu.dot_dimension_numbers<[1], [0], [0], [1], [0, 0, 1, 1], [], []>} : vector<128x64xbf16>, vector<64x256xbf16>, vector<128x256xf32> -> vector<128x256xf32>
    %80 = arith.addf %43, %79 : vector<128x256xf32>
    %81 = vector.extract_strided_slice %9 {offsets = [0, 64], sizes = [128, 64], strides = [1, 1]} : vector<128x256xbf16> to vector<128x64xbf16>
    %82 = vector.extract_strided_slice %31 {offsets = [0, 64], sizes = [256, 64], strides = [1, 1]} : vector<256x256xbf16> to vector<256x64xbf16>
    %83 = vector.extract_strided_slice %25 {offsets = [0, 64], sizes = [128, 64], strides = [1, 1]} : vector<128x256xbf16> to vector<128x64xbf16>
    %84 = vector.extract_strided_slice %35 {offsets = [2, 0], sizes = [2, 64], strides = [1, 1]} : vector<8x64xbf16> to vector<2x64xbf16>
    %cst_44 = arith.constant dense<0.000000e+00> : vector<128x256xf32>
    %85 = tpu.matmul %81, %82, %cst_44 {dimension_numbers = #tpu.dot_dimension_numbers<[1], [1], [0], [0], [0, 0, 1, 0], [], []>} : vector<128x64xbf16>, vector<256x64xbf16>, vector<128x256xf32> -> vector<128x256xf32>
    %cst_45 = arith.constant dense<0.000000e+00> : vector<2x256xf32>
    %86 = tpu.matmul %84, %82, %cst_45 {dimension_numbers = #tpu.dot_dimension_numbers<[1], [1], [0], [0], [0, 0, 1, 0], [], []>} : vector<2x64xbf16>, vector<256x64xbf16>, vector<2x256xf32> -> vector<2x256xf32>
    %87 = vector.extract_strided_slice %85 {offsets = [0, 0], sizes = [128, 128], strides = [1, 1]} : vector<128x256xf32> to vector<128x128xf32>
    %88 = vector.extract_strided_slice %86 {offsets = [0, 0], sizes = [1, 128], strides = [1, 1]} : vector<2x256xf32> to vector<1x128xf32>
    %89 = vector.broadcast %88 : vector<1x128xf32> to vector<128x128xf32>
    %90 = arith.addf %87, %89 : vector<128x128xf32>
    %91 = vector.extract_strided_slice %85 {offsets = [0, 128], sizes = [128, 128], strides = [1, 1]} : vector<128x256xf32> to vector<128x128xf32>
    %92 = vector.extract_strided_slice %86 {offsets = [1, 128], sizes = [1, 128], strides = [1, 1]} : vector<2x256xf32> to vector<1x128xf32>
    %93 = vector.broadcast %92 : vector<1x128xf32> to vector<128x128xf32>
    %94 = arith.addf %91, %93 : vector<128x128xf32>
    %c1_i32_46 = arith.constant 1 : i32
    %95 = tpu.dynamic_rotate %94 by %c1_i32_46 dim 1 : vector<128x128xf32>, i32 -> vector<128x128xf32>
    %c0_i32_47 = arith.constant 0 : i32
    %96 = tpu.dynamic_rotate %95 by %c0_i32_47 dim 1 {stride = 1 : si32, stride_dimension = 0 : si32} : vector<128x128xf32>, i32 -> vector<128x128xf32>
    %c127_i32_48 = arith.constant 127 : i32
    %97 = tpu.dynamic_rotate %96 by %c127_i32_48 dim 0 : vector<128x128xf32>, i32 -> vector<128x128xf32>
    %cst_49 = arith.constant 0.000000e+00 : f32
    %98 = vector.broadcast %cst_49 : f32 to vector<128x128xf32>
    %99 = arith.select %42, %98, %97 : vector<128x128xi1>, vector<128x128xf32>
    %100 = arith.select %40, %96, %99 : vector<128x128xi1>, vector<128x128xf32>
    %101 = arith.addf %90, %100 : vector<128x128xf32>
    %cst_50 = arith.constant dense<0xFF800000> : vector<128xf32>
    %102 = vector.multi_reduction <maximumf>, %101, %cst_50 [1] : vector<128x128xf32> to vector<128xf32>
    %103 = vector.shape_cast %102 : vector<128xf32> to vector<128x1xf32>
    %104 = vector.broadcast %103 : vector<128x1xf32> to vector<128x128xf32>
    %105 = arith.subf %101, %104 : vector<128x128xf32>
    %106 = math.exp %105 : vector<128x128xf32>
    %cst_51 = arith.constant dense<0.000000e+00> : vector<128xf32>
    %107 = vector.multi_reduction <add>, %106, %cst_51 [1] : vector<128x128xf32> to vector<128xf32>
    %108 = vector.shape_cast %107 : vector<128xf32> to vector<128x1xf32>
    %109 = tpu.reciprocal %108 {approx = true} : vector<128x1xf32> -> vector<128x1xf32>
    %110 = vector.broadcast %109 : vector<128x1xf32> to vector<128x128xf32>
    %111 = arith.mulf %106, %110 : vector<128x128xf32>
    %112 = arith.truncf %111 : vector<128x128xf32> to vector<128x128xbf16>
    %cst_52 = arith.constant dense<0.000000e+00> : vector<128x64xf32>
    %113 = tpu.matmul %112, %83, %cst_52 {dimension_numbers = #tpu.dot_dimension_numbers<[1], [0], [0], [1], [0, 0, 1, 1], [], []>} : vector<128x128xbf16>, vector<128x64xbf16>, vector<128x64xf32> -> vector<128x64xf32>
    %c64 = arith.constant 64 : index
    %c0_53 = arith.constant 0 : index
    %114 = vector.load %arg13[%c64, %c0_53] : memref<256x256xbf16, #tpu.memory_space<vmem>>, vector<64x256xbf16>
    %115 = arith.truncf %113 : vector<128x64xf32> to vector<128x64xbf16>
    %cst_54 = arith.constant dense<0.000000e+00> : vector<128x256xf32>
    %116 = tpu.matmul %115, %114, %cst_54 {dimension_numbers = #tpu.dot_dimension_numbers<[1], [0], [0], [1], [0, 0, 1, 1], [], []>} : vector<128x64xbf16>, vector<64x256xbf16>, vector<128x256xf32> -> vector<128x256xf32>
    %117 = arith.addf %80, %116 : vector<128x256xf32>
    %118 = vector.extract_strided_slice %9 {offsets = [0, 128], sizes = [128, 64], strides = [1, 1]} : vector<128x256xbf16> to vector<128x64xbf16>
    %119 = vector.extract_strided_slice %31 {offsets = [0, 128], sizes = [256, 64], strides = [1, 1]} : vector<256x256xbf16> to vector<256x64xbf16>
    %120 = vector.extract_strided_slice %25 {offsets = [0, 128], sizes = [128, 64], strides = [1, 1]} : vector<128x256xbf16> to vector<128x64xbf16>
    %121 = vector.extract_strided_slice %35 {offsets = [4, 0], sizes = [2, 64], strides = [1, 1]} : vector<8x64xbf16> to vector<2x64xbf16>
    %cst_55 = arith.constant dense<0.000000e+00> : vector<128x256xf32>
    %122 = tpu.matmul %118, %119, %cst_55 {dimension_numbers = #tpu.dot_dimension_numbers<[1], [1], [0], [0], [0, 0, 1, 0], [], []>} : vector<128x64xbf16>, vector<256x64xbf16>, vector<128x256xf32> -> vector<128x256xf32>
    %cst_56 = arith.constant dense<0.000000e+00> : vector<2x256xf32>
    %123 = tpu.matmul %121, %119, %cst_56 {dimension_numbers = #tpu.dot_dimension_numbers<[1], [1], [0], [0], [0, 0, 1, 0], [], []>} : vector<2x64xbf16>, vector<256x64xbf16>, vector<2x256xf32> -> vector<2x256xf32>
    %124 = vector.extract_strided_slice %122 {offsets = [0, 0], sizes = [128, 128], strides = [1, 1]} : vector<128x256xf32> to vector<128x128xf32>
    %125 = vector.extract_strided_slice %123 {offsets = [0, 0], sizes = [1, 128], strides = [1, 1]} : vector<2x256xf32> to vector<1x128xf32>
    %126 = vector.broadcast %125 : vector<1x128xf32> to vector<128x128xf32>
    %127 = arith.addf %124, %126 : vector<128x128xf32>
    %128 = vector.extract_strided_slice %122 {offsets = [0, 128], sizes = [128, 128], strides = [1, 1]} : vector<128x256xf32> to vector<128x128xf32>
    %129 = vector.extract_strided_slice %123 {offsets = [1, 128], sizes = [1, 128], strides = [1, 1]} : vector<2x256xf32> to vector<1x128xf32>
    %130 = vector.broadcast %129 : vector<1x128xf32> to vector<128x128xf32>
    %131 = arith.addf %128, %130 : vector<128x128xf32>
    %c1_i32_57 = arith.constant 1 : i32
    %132 = tpu.dynamic_rotate %131 by %c1_i32_57 dim 1 : vector<128x128xf32>, i32 -> vector<128x128xf32>
    %c0_i32_58 = arith.constant 0 : i32
    %133 = tpu.dynamic_rotate %132 by %c0_i32_58 dim 1 {stride = 1 : si32, stride_dimension = 0 : si32} : vector<128x128xf32>, i32 -> vector<128x128xf32>
    %c127_i32_59 = arith.constant 127 : i32
    %134 = tpu.dynamic_rotate %133 by %c127_i32_59 dim 0 : vector<128x128xf32>, i32 -> vector<128x128xf32>
    %cst_60 = arith.constant 0.000000e+00 : f32
    %135 = vector.broadcast %cst_60 : f32 to vector<128x128xf32>
    %136 = arith.select %42, %135, %134 : vector<128x128xi1>, vector<128x128xf32>
    %137 = arith.select %40, %133, %136 : vector<128x128xi1>, vector<128x128xf32>
    %138 = arith.addf %127, %137 : vector<128x128xf32>
    %cst_61 = arith.constant dense<0xFF800000> : vector<128xf32>
    %139 = vector.multi_reduction <maximumf>, %138, %cst_61 [1] : vector<128x128xf32> to vector<128xf32>
    %140 = vector.shape_cast %139 : vector<128xf32> to vector<128x1xf32>
    %141 = vector.broadcast %140 : vector<128x1xf32> to vector<128x128xf32>
    %142 = arith.subf %138, %141 : vector<128x128xf32>
    %143 = math.exp %142 : vector<128x128xf32>
    %cst_62 = arith.constant dense<0.000000e+00> : vector<128xf32>
    %144 = vector.multi_reduction <add>, %143, %cst_62 [1] : vector<128x128xf32> to vector<128xf32>
    %145 = vector.shape_cast %144 : vector<128xf32> to vector<128x1xf32>
    %146 = tpu.reciprocal %145 {approx = true} : vector<128x1xf32> -> vector<128x1xf32>
    %147 = vector.broadcast %146 : vector<128x1xf32> to vector<128x128xf32>
    %148 = arith.mulf %143, %147 : vector<128x128xf32>
    %149 = arith.truncf %148 : vector<128x128xf32> to vector<128x128xbf16>
    %cst_63 = arith.constant dense<0.000000e+00> : vector<128x64xf32>
    %150 = tpu.matmul %149, %120, %cst_63 {dimension_numbers = #tpu.dot_dimension_numbers<[1], [0], [0], [1], [0, 0, 1, 1], [], []>} : vector<128x128xbf16>, vector<128x64xbf16>, vector<128x64xf32> -> vector<128x64xf32>
    %c128 = arith.constant 128 : index
    %c0_64 = arith.constant 0 : index
    %151 = vector.load %arg13[%c128, %c0_64] : memref<256x256xbf16, #tpu.memory_space<vmem>>, vector<64x256xbf16>
    %152 = arith.truncf %150 : vector<128x64xf32> to vector<128x64xbf16>
    %cst_65 = arith.constant dense<0.000000e+00> : vector<128x256xf32>
    %153 = tpu.matmul %152, %151, %cst_65 {dimension_numbers = #tpu.dot_dimension_numbers<[1], [0], [0], [1], [0, 0, 1, 1], [], []>} : vector<128x64xbf16>, vector<64x256xbf16>, vector<128x256xf32> -> vector<128x256xf32>
    %154 = arith.addf %117, %153 : vector<128x256xf32>
    %155 = vector.extract_strided_slice %9 {offsets = [0, 192], sizes = [128, 64], strides = [1, 1]} : vector<128x256xbf16> to vector<128x64xbf16>
    %156 = vector.extract_strided_slice %31 {offsets = [0, 192], sizes = [256, 64], strides = [1, 1]} : vector<256x256xbf16> to vector<256x64xbf16>
    %157 = vector.extract_strided_slice %25 {offsets = [0, 192], sizes = [128, 64], strides = [1, 1]} : vector<128x256xbf16> to vector<128x64xbf16>
    %158 = vector.extract_strided_slice %35 {offsets = [6, 0], sizes = [2, 64], strides = [1, 1]} : vector<8x64xbf16> to vector<2x64xbf16>
    %cst_66 = arith.constant dense<0.000000e+00> : vector<128x256xf32>
    %159 = tpu.matmul %155, %156, %cst_66 {dimension_numbers = #tpu.dot_dimension_numbers<[1], [1], [0], [0], [0, 0, 1, 0], [], []>} : vector<128x64xbf16>, vector<256x64xbf16>, vector<128x256xf32> -> vector<128x256xf32>
    %cst_67 = arith.constant dense<0.000000e+00> : vector<2x256xf32>
    %160 = tpu.matmul %158, %156, %cst_67 {dimension_numbers = #tpu.dot_dimension_numbers<[1], [1], [0], [0], [0, 0, 1, 0], [], []>} : vector<2x64xbf16>, vector<256x64xbf16>, vector<2x256xf32> -> vector<2x256xf32>
    %161 = vector.extract_strided_slice %159 {offsets = [0, 0], sizes = [128, 128], strides = [1, 1]} : vector<128x256xf32> to vector<128x128xf32>
    %162 = vector.extract_strided_slice %160 {offsets = [0, 0], sizes = [1, 128], strides = [1, 1]} : vector<2x256xf32> to vector<1x128xf32>
    %163 = vector.broadcast %162 : vector<1x128xf32> to vector<128x128xf32>
    %164 = arith.addf %161, %163 : vector<128x128xf32>
    %165 = vector.extract_strided_slice %159 {offsets = [0, 128], sizes = [128, 128], strides = [1, 1]} : vector<128x256xf32> to vector<128x128xf32>
    %166 = vector.extract_strided_slice %160 {offsets = [1, 128], sizes = [1, 128], strides = [1, 1]} : vector<2x256xf32> to vector<1x128xf32>
    %167 = vector.broadcast %166 : vector<1x128xf32> to vector<128x128xf32>
    %168 = arith.addf %165, %167 : vector<128x128xf32>
    %c1_i32_68 = arith.constant 1 : i32
    %169 = tpu.dynamic_rotate %168 by %c1_i32_68 dim 1 : vector<128x128xf32>, i32 -> vector<128x128xf32>
    %c0_i32_69 = arith.constant 0 : i32
    %170 = tpu.dynamic_rotate %169 by %c0_i32_69 dim 1 {stride = 1 : si32, stride_dimension = 0 : si32} : vector<128x128xf32>, i32 -> vector<128x128xf32>
    %c127_i32_70 = arith.constant 127 : i32
    %171 = tpu.dynamic_rotate %170 by %c127_i32_70 dim 0 : vector<128x128xf32>, i32 -> vector<128x128xf32>
    %cst_71 = arith.constant 0.000000e+00 : f32
    %172 = vector.broadcast %cst_71 : f32 to vector<128x128xf32>
    %173 = arith.select %42, %172, %171 : vector<128x128xi1>, vector<128x128xf32>
    %174 = arith.select %40, %170, %173 : vector<128x128xi1>, vector<128x128xf32>
    %175 = arith.addf %164, %174 : vector<128x128xf32>
    %cst_72 = arith.constant dense<0xFF800000> : vector<128xf32>
    %176 = vector.multi_reduction <maximumf>, %175, %cst_72 [1] : vector<128x128xf32> to vector<128xf32>
    %177 = vector.shape_cast %176 : vector<128xf32> to vector<128x1xf32>
    %178 = vector.broadcast %177 : vector<128x1xf32> to vector<128x128xf32>
    %179 = arith.subf %175, %178 : vector<128x128xf32>
    %180 = math.exp %179 : vector<128x128xf32>
    %cst_73 = arith.constant dense<0.000000e+00> : vector<128xf32>
    %181 = vector.multi_reduction <add>, %180, %cst_73 [1] : vector<128x128xf32> to vector<128xf32>
    %182 = vector.shape_cast %181 : vector<128xf32> to vector<128x1xf32>
    %183 = tpu.reciprocal %182 {approx = true} : vector<128x1xf32> -> vector<128x1xf32>
    %184 = vector.broadcast %183 : vector<128x1xf32> to vector<128x128xf32>
    %185 = arith.mulf %180, %184 : vector<128x128xf32>
    %186 = arith.truncf %185 : vector<128x128xf32> to vector<128x128xbf16>
    %cst_74 = arith.constant dense<0.000000e+00> : vector<128x64xf32>
    %187 = tpu.matmul %186, %157, %cst_74 {dimension_numbers = #tpu.dot_dimension_numbers<[1], [0], [0], [1], [0, 0, 1, 1], [], []>} : vector<128x128xbf16>, vector<128x64xbf16>, vector<128x64xf32> -> vector<128x64xf32>
    %c192 = arith.constant 192 : index
    %c0_75 = arith.constant 0 : index
    %188 = vector.load %arg13[%c192, %c0_75] : memref<256x256xbf16, #tpu.memory_space<vmem>>, vector<64x256xbf16>
    %189 = arith.truncf %187 : vector<128x64xf32> to vector<128x64xbf16>
    %cst_76 = arith.constant dense<0.000000e+00> : vector<128x256xf32>
    %190 = tpu.matmul %189, %188, %cst_76 {dimension_numbers = #tpu.dot_dimension_numbers<[1], [0], [0], [1], [0, 0, 1, 1], [], []>} : vector<128x64xbf16>, vector<64x256xbf16>, vector<128x256xf32> -> vector<128x256xf32>
    %191 = arith.addf %154, %190 : vector<128x256xf32>
    %c0_77 = arith.constant 0 : index
    %c0_78 = arith.constant 0 : index
    %192 = vector.load %arg14[%c0_77, %c0_78] : memref<1x256xf32, #tpu.memory_space<vmem>>, vector<1x256xf32>
    %193 = vector.broadcast %192 : vector<1x256xf32> to vector<128x256xf32>
    %194 = arith.addf %191, %193 : vector<128x256xf32>
    %c0_79 = arith.constant 0 : index
    %c0_80 = arith.constant 0 : index
    %c0_81 = arith.constant 0 : index
    %195 = vector.load %arg15[%c0_79, %c0_80, %c0_81] : memref<1x128x256xf32, #tpu.memory_space<vmem>>, vector<1x128x256xf32>
    %196 = vector.shape_cast %195 : vector<1x128x256xf32> to vector<128x256xf32>
    %197 = vector.shape_cast %194 : vector<128x256xf32> to vector<1x128x256xf32>
    tpu.vector_store %arg15[%c0_79, %c0_80, %c0_81], %197 {strides = array<i32>} : memref<1x128x256xf32, #tpu.memory_space<vmem>>, vector<1x128x256xf32>,
    return
  }
  func.func @transform_0(%arg0: i32) -> (i32, i32, i32) {
    %c0_i32 = arith.constant 0 : i32
    %c0_i32_0 = arith.constant 0 : i32
    %c0_i32_1 = arith.constant 0 : i32
    return %arg0, %c0_i32, %c0_i32_0 : i32, i32, i32
  }
  func.func @transform_1(%arg0: i32) -> (i32, i32, i32) {
    %c0_i32 = arith.constant 0 : i32
    %c0_i32_0 = arith.constant 0 : i32
    %c0_i32_1 = arith.constant 0 : i32
    return %arg0, %c0_i32, %c0_i32_0 : i32, i32, i32
  }
  func.func @transform_2(%arg0: i32) -> (i32, i32, i32) {
    %c0_i32 = arith.constant 0 : i32
    %c0_i32_0 = arith.constant 0 : i32
    %c0_i32_1 = arith.constant 0 : i32
    return %arg0, %c0_i32, %c0_i32_0 : i32, i32, i32
  }
  func.func @transform_3(%arg0: i32) -> (i32, i32, i32) {
    %c0_i32 = arith.constant 0 : i32
    %c0_i32_0 = arith.constant 0 : i32
    %c0_i32_1 = arith.constant 0 : i32
    return %arg0, %c0_i32, %c0_i32_0 : i32, i32, i32
  }
  func.func @transform_4(%arg0: i32) -> (i32, i32) {
    %c0_i32 = arith.constant 0 : i32
    %c0_i32_0 = arith.constant 0 : i32
    %c0_i32_1 = arith.constant 0 : i32
    return %c0_i32, %c0_i32_0 : i32, i32
  }
  func.func @transform_5(%arg0: i32) -> (i32, i32) {
    %c0_i32 = arith.constant 0 : i32
    %c0_i32_0 = arith.constant 0 : i32
    %c0_i32_1 = arith.constant 0 : i32
    return %c0_i32, %c0_i32_0 : i32, i32
  }
  func.func @transform_6(%arg0: i32) -> (i32, i32) {
    %c0_i32 = arith.constant 0 : i32
    %c0_i32_0 = arith.constant 0 : i32
    %c0_i32_1 = arith.constant 0 : i32
    return %c0_i32, %c0_i32_0 : i32, i32
  }
  func.func @transform_7(%arg0: i32) -> (i32, i32) {
    %c0_i32 = arith.constant 0 : i32
    %c0_i32_0 = arith.constant 0 : i32
    %c0_i32_1 = arith.constant 0 : i32
    return %c0_i32, %c0_i32_0 : i32, i32
  }
  func.func @transform_8(%arg0: i32) -> (i32, i32) {
    %c0_i32 = arith.constant 0 : i32
    %c0_i32_0 = arith.constant 0 : i32
    %c0_i32_1 = arith.constant 0 : i32
    return %c0_i32, %c0_i32_0 : i32, i32
  }
  func.func @transform_9(%arg0: i32) -> (i32, i32) {
    %c0_i32 = arith.constant 0 : i32
    %c0_i32_0 = arith.constant 0 : i32
    %c0_i32_1 = arith.constant 0 : i32
    return %c0_i32, %c0_i32_0 : i32, i32
  }
  func.func @transform_10(%arg0: i32) -> (i32, i32) {
    %c0_i32 = arith.constant 0 : i32
    %c0_i32_0 = arith.constant 0 : i32
    %c0_i32_1 = arith.constant 0 : i32
    return %c0_i32, %c0_i32_0 : i32, i32
  }
  func.func @transform_11(%arg0: i32) -> (i32, i32) {
    %c0_i32 = arith.constant 0 : i32
    %c0_i32_0 = arith.constant 0 : i32
    %c0_i32_1 = arith.constant 0 : i32
    return %c0_i32, %c0_i32_0 : i32, i32
  }
  func.func @transform_12(%arg0: i32) -> (i32, i32) {
    %c0_i32 = arith.constant 0 : i32
    %c0_i32_0 = arith.constant 0 : i32
    %c0_i32_1 = arith.constant 0 : i32
    return %c0_i32, %c0_i32_0 : i32, i32
  }
  func.func @transform_13(%arg0: i32) -> (i32, i32) {
    %c0_i32 = arith.constant 0 : i32
    %c0_i32_0 = arith.constant 0 : i32
    %c0_i32_1 = arith.constant 0 : i32
    return %c0_i32, %c0_i32_0 : i32, i32
  }
  func.func @transform_14(%arg0: i32) -> (i32, i32, i32) {
    %c0_i32 = arith.constant 0 : i32
    %c0_i32_0 = arith.constant 0 : i32
    %c0_i32_1 = arith.constant 0 : i32
    return %arg0, %c0_i32, %c0_i32_0 : i32, i32, i32
  }
}

</mosaic_0001>

<llo_original>
// kernel: tpu_custom_call.1
$region0: #{tpu_custom_call.1}
  #allocation0 [shape = 'u32[]', space=smem, size = 0x4, offset = 0x4, fixed_abs, tag = 'smem constant byte address 0x4 - core index']
  #allocation1 [shape = 'u32[144,128]{1,0:T(1,128)}', space=vmem, size = 0x12000, scoped, tag = 'internal scratch']
  %s0 = inlined_call_operand.hbm [shape: bf16[2,128,256], index: 0, kind: input, shape index: {}]
  %s1 = inlined_call_operand.hbm [shape: bf16[2,128,256], index: 1, kind: input, shape index: {}]
  %s2 = inlined_call_operand.hbm [shape: bf16[2,128,256], index: 2, kind: input, shape index: {}]
  %s3 = inlined_call_operand.hbm [shape: bf16[2,128,256], index: 3, kind: input, shape index: {}]
  %s4 = inlined_call_operand.hbm [shape: bf16[256,256], index: 4, kind: input, shape index: {}]
  %s5 = inlined_call_operand.hbm [shape: bf16[256,256], index: 5, kind: input, shape index: {}]
  %s6 = inlined_call_operand.hbm [shape: bf16[256,256], index: 6, kind: input, shape index: {}]
  %s7 = inlined_call_operand.hbm [shape: bf16[256,256], index: 7, kind: input, shape index: {}]
  %s8 = inlined_call_operand.vmem [shape: f32[1,256], index: 8, kind: input, shape index: {}]
  %s9 = inlined_call_operand.vmem [shape: f32[1,256], index: 9, kind: input, shape index: {}]
  %s10 = inlined_call_operand.vmem [shape: f32[1,256], index: 10, kind: input, shape index: {}]
  %s11 = inlined_call_operand.vmem [shape: f32[8,64], index: 11, kind: input, shape index: {}]
  %s12 = inlined_call_operand.hbm [shape: bf16[256,256], index: 12, kind: input, shape index: {}]
  %s13 = inlined_call_operand.vmem [shape: f32[1,256], index: 13, kind: input, shape index: {}]
  %s14 = inlined_call_operand.hbm [shape: f32[2,128,256], index: 14, kind: output, shape index: {}]
  %s15 = sld [smem:[#allocation0]]
  $region125: #{tpu_custom_call.1} parent=0
    _
  %s17 = ssub.s32 1, %s15
  %s18 = scalar_select 0, %s17, %s15
  $region1: #{tpu_custom_call.1} parent=0
    #allocation2 [shape = 'u8[131072]{0}', space=vmem, size = 0x20000, scoped, tag = 'input window, operand 0']
    #allocation3 [shape = 's32[2]{0}', space=sflag, size = 0x8, scoped, tag = 'scoped memory for tpu_custom_call.1']
    #allocation4 [shape = 's32[2]{0}', space=sflag, size = 0x8, scoped, tag = 'scoped memory for tpu_custom_call.1']
    #allocation5 [shape = 'u8[131072]{0}', space=vmem, size = 0x20000, scoped, tag = 'input window, operand 1']
    #allocation6 [shape = 's32[2]{0}', space=sflag, size = 0x8, scoped, tag = 'scoped memory for tpu_custom_call.1']
    #allocation7 [shape = 'u8[131072]{0}', space=vmem, size = 0x20000, scoped, tag = 'input window, operand 2']
    #allocation8 [shape = 'u8[131072]{0}', space=vmem, size = 0x20000, scoped, tag = 'input window, operand 3']
    #allocation9 [shape = 's32[2]{0}', space=sflag, size = 0x8, scoped, tag = 'scoped memory for tpu_custom_call.1']
    #allocation10 [shape = 'u8[131072]{0}', space=vmem, size = 0x20000, scoped, tag = 'input window, operand 4, single buffered']
    #allocation11 [shape = 'u8[131072]{0}', space=vmem, size = 0x20000, scoped, tag = 'input window, operand 5, single buffered']
    #allocation12 [shape = 's32[1]{0}', space=sflag, size = 0x4, scoped, tag = 'scoped memory for tpu_custom_call.1']
    #allocation13 [shape = 'u8[131072]{0}', space=vmem, size = 0x20000, scoped, tag = 'input window, operand 6, single buffered']
    #allocation14 [shape = 'u8[131072]{0}', space=vmem, size = 0x20000, scoped, tag = 'input window, operand 7, single buffered']
    #allocation15 [shape = 's32[1]{0}', space=sflag, size = 0x4, scoped, tag = 'scoped memory for tpu_custom_call.1']
    #allocation16 [shape = 'u8[131072]{0}', space=vmem, size = 0x20000, scoped, tag = 'input window, operand 12, single buffered']
    #allocation17 [shape = 'u8[262144]{0}', space=vmem, size = 0x40000, scoped, tag = 'output window, operand 0']
    %19 = vsyncpa [#allocation3], 0
    %s20 = scalar_lea.sflag [#allocation3], 1
    %21 = vsyncpa %s20, 0
    %22 = vsyncpa [#allocation6], 0
    %s23 = scalar_lea.sflag [#allocation6], 1
    %24 = vsyncpa %s23, 0
    %25 = vsyncpa [#allocation9], 0
    %s26 = scalar_lea.sflag [#allocation9], 1
    %27 = vsyncpa %s26, 0
    %28 = vsyncpa [#allocation12], 0
    %29 = vsyncpa [#allocation15], 0
    %30 = vsyncpa [#allocation4], 0
    %s31 = scalar_lea.sflag [#allocation4], 1
    %32 = vsyncpa %s31, 0
    loop: start=0, step=1, limit=4
    $region2: #{tpu_custom_call.1} parent=1 // loop_pre_header
      _
    $region3: #{tpu_custom_call.1} parent=1 // loop_header
      %s34 = sphi 0, %s38
      %p35 = scmp.ge.s32.totalorder %s34, 4
      %s44 = sphi 0, %s46
      %s47 = sphi 0, %s44
      %s48 = sphi 0, %s47
      %s64 = sphi 0, %s48
      %s70 = sphi 0, %s72
      %s73 = sphi 0, %s70
      %s74 = sphi 0, %s73
      %s90 = sphi 0, %s74
      %s96 = sphi 0, %s98
      %s99 = sphi 0, %s96
      %s100 = sphi 0, %s99
      %s116 = sphi 0, %s100
      %s122 = sphi 0, %s124
      %s125 = sphi 0, %s122
      %s126 = sphi 0, %s125
      %s142 = sphi 0, %s126
      %s146 = sphi 0, %s146
      %s148 = sphi 0, %s146
      %s149 = sphi 0, %s148
      %s163 = sphi 0, %s149
      %s167 = sphi 0, %s167
      %s169 = sphi 0, %s167
      %s170 = sphi 0, %s169
      %s184 = sphi 0, %s170
      %s188 = sphi 0, %s188
      %s190 = sphi 0, %s188
      %s191 = sphi 0, %s190
      %s205 = sphi 0, %s191
      %s209 = sphi 0, %s209
      %s211 = sphi 0, %s209
      %s212 = sphi 0, %s211
      %s226 = sphi 0, %s212
      %s230 = sphi 0, %s230
      %s232 = sphi 0, %s230
      %s233 = sphi 0, %s232
      %s247 = sphi 0, %s233
      %s251 = sphi 0, %s251
      %s253 = sphi 0, %s251
      %s254 = sphi 0, %s253
      %s268 = sphi 0, %s254
      %s272 = sphi 0, %s272
      %s274 = sphi 0, %s272
      %s275 = sphi 0, %s274
      %s289 = sphi 0, %s275
      %s293 = sphi 0, %s293
      %s295 = sphi 0, %s293
      %s296 = sphi 0, %s295
      %s310 = sphi 0, %s296
      %s314 = sphi 0, %s314
      %s316 = sphi 0, %s314
      %s317 = sphi 0, %s316
      %s331 = sphi 0, %s317
      %s335 = sphi 0, %s335
      %s337 = sphi 0, %s335
      %s338 = sphi 0, %s337
      %s352 = sphi 0, %s338
      %s358 = sphi 0, %s360
      %s361 = sphi 0, %s358
      %s362 = sphi 0, %s361
      %s378 = sphi 0, %s362
    $region4: #{tpu_custom_call.1} parent=1 // loop_header_branch
      %37 = sbr.rel (%p35) target = $region8
    $region5: #{tpu_custom_call.1} parent=1 // loop_body
      %s39 = ssub.s32 %s34, 1
      %s40 = ssub.s32 %s34, 2
      %s41 = sadd.s32 %s34, 1
      %s42 = ssub.s32 %s34, %s41
      %p43 = scmp.eq.s32.totalorder %s42, 0
      %s45 = sadd.s32 %s44, 1
      %s46 = scalar_select %p43, %s44, %s45
      %p49 = pneg %p43
      %p50 = scmp.eq.s32.totalorder %s34, 1
      %p51 = por %p49, %p50
      %p52 = scmp.ne.s32.totalorder %s44, %s47
      %p53 = scmp.eq.s32.totalorder %s34, 0
      %p54 = por %p52, %p53
      %p55 = scmp.ne.s32.totalorder %s44, %s47
      %p56 = scmp.eq.s32.totalorder %s39, 1
      %p57 = por %p55, %p56
      %p58 = scmp.ne.s32.totalorder %s47, %s48
      %p59 = scmp.eq.s32.totalorder %s39, 0
      %p60 = por %p58, %p59
      %p61 = scmp.ne.s32.totalorder %s47, %s48
      %p62 = scmp.eq.s32.totalorder %s40, 1
      %p63 = por %p61, %p62
      %p65 = scmp.ne.s32.totalorder %s48, %s64
      %p66 = scmp.eq.s32.totalorder %s40, 0
      %p67 = por %p65, %p66
      %s68 = ssub.s32 %s34, %s41
      %p69 = scmp.eq.s32.totalorder %s68, 0
      %s71 = sadd.s32 %s70, 1
      %s72 = scalar_select %p69, %s70, %s71
      %p75 = pneg %p69
      %p76 = scmp.eq.s32.totalorder %s34, 1
      %p77 = por %p75, %p76
      %p78 = scmp.ne.s32.totalorder %s70, %s73
      %p79 = scmp.eq.s32.totalorder %s34, 0
      %p80 = por %p78, %p79
      %p81 = scmp.ne.s32.totalorder %s70, %s73
      %p82 = scmp.eq.s32.totalorder %s39, 1
      %p83 = por %p81, %p82
      %p84 = scmp.ne.s32.totalorder %s73, %s74
      %p85 = scmp.eq.s32.totalorder %s39, 0
      %p86 = por %p84, %p85
      %p87 = scmp.ne.s32.totalorder %s73, %s74
      %p88 = scmp.eq.s32.totalorder %s40, 1
      %p89 = por %p87, %p88
      %p91 = scmp.ne.s32.totalorder %s74, %s90
      %p92 = scmp.eq.s32.totalorder %s40, 0
      %p93 = por %p91, %p92
      %s94 = ssub.s32 %s34, %s41
      %p95 = scmp.eq.s32.totalorder %s94, 0
      %s97 = sadd.s32 %s96, 1
      %s98 = scalar_select %p95, %s96, %s97
      %p101 = pneg %p95
      %p102 = scmp.eq.s32.totalorder %s34, 1
      %p103 = por %p101, %p102
      %p104 = scmp.ne.s32.totalorder %s96, %s99
      %p105 = scmp.eq.s32.totalorder %s34, 0
      %p106 = por %p104, %p105
      %p107 = scmp.ne.s32.totalorder %s96, %s99
      %p108 = scmp.eq.s32.totalorder %s39, 1
      %p109 = por %p107, %p108
      %p110 = scmp.ne.s32.totalorder %s99, %s100
      %p111 = scmp.eq.s32.totalorder %s39, 0
      %p112 = por %p110, %p111
      %p113 = scmp.ne.s32.totalorder %s99, %s100
      %p114 = scmp.eq.s32.totalorder %s40, 1
      %p115 = por %p113, %p114
      %p117 = scmp.ne.s32.totalorder %s100, %s116
      %p118 = scmp.eq.s32.totalorder %s40, 0
      %p119 = por %p117, %p118
      %s120 = ssub.s32 %s34, %s41
      %p121 = scmp.eq.s32.totalorder %s120, 0
      %s123 = sadd.s32 %s122, 1
      %s124 = scalar_select %p121, %s122, %s123
      %p127 = pneg %p121
      %p128 = scmp.eq.s32.totalorder %s34, 1
      %p129 = por %p127, %p128
      %p130 = scmp.ne.s32.totalorder %s122, %s125
      %p131 = scmp.eq.s32.totalorder %s34, 0
      %p132 = por %p130, %p131
      %p133 = scmp.ne.s32.totalorder %s122, %s125
      %p134 = scmp.eq.s32.totalorder %s39, 1
      %p135 = por %p133, %p134
      %p136 = scmp.ne.s32.totalorder %s125, %s126
      %p137 = scmp.eq.s32.totalorder %s39, 0
      %p138 = por %p136, %p137
      %p139 = scmp.ne.s32.totalorder %s125, %s126
      %p140 = scmp.eq.s32.totalorder %s40, 1
      %p141 = por %p139, %p140
      %p143 = scmp.ne.s32.totalorder %s126, %s142
      %p144 = scmp.eq.s32.totalorder %s40, 0
      %p145 = por %p143, %p144
      %s147 = sadd.s32 %s146, 1
      %p150 = scmp.eq.s32.totalorder %s34, 1
      %p151 = scmp.ne.s32.totalorder %s146, %s148
      %p152 = scmp.eq.s32.totalorder %s34, 0
      %p153 = por %p151, %p152
      %p154 = scmp.ne.s32.totalorder %s146, %s148
      %p155 = scmp.eq.s32.totalorder %s39, 1
      %p156 = por %p154, %p155
      %p157 = scmp.ne.s32.totalorder %s148, %s149
      %p158 = scmp.eq.s32.totalorder %s39, 0
      %p159 = por %p157, %p158
      %p160 = scmp.ne.s32.totalorder %s148, %s149
      %p161 = scmp.eq.s32.totalorder %s40, 1
      %p162 = por %p160, %p161
      %p164 = scmp.ne.s32.totalorder %s149, %s163
      %p165 = scmp.eq.s32.totalorder %s40, 0
      %p166 = por %p164, %p165
      %s168 = sadd.s32 %s167, 1
      %p171 = scmp.eq.s32.totalorder %s34, 1
      %p172 = scmp.ne.s32.totalorder %s167, %s169
      %p173 = scmp.eq.s32.totalorder %s34, 0
      %p174 = por %p172, %p173
      %p175 = scmp.ne.s32.totalorder %s167, %s169
      %p176 = scmp.eq.s32.totalorder %s39, 1
      %p177 = por %p175, %p176
      %p178 = scmp.ne.s32.totalorder %s169, %s170
      %p179 = scmp.eq.s32.totalorder %s39, 0
      %p180 = por %p178, %p179
      %p181 = scmp.ne.s32.totalorder %s169, %s170
      %p182 = scmp.eq.s32.totalorder %s40, 1
      %p183 = por %p181, %p182
      %p185 = scmp.ne.s32.totalorder %s170, %s184
      %p186 = scmp.eq.s32.totalorder %s40, 0
      %p187 = por %p185, %p186
      %s189 = sadd.s32 %s188, 1
      %p192 = scmp.eq.s32.totalorder %s34, 1
      %p193 = scmp.ne.s32.totalorder %s188, %s190
      %p194 = scmp.eq.s32.totalorder %s34, 0
      %p195 = por %p193, %p194
      %p196 = scmp.ne.s32.totalorder %s188, %s190
      %p197 = scmp.eq.s32.totalorder %s39, 1
      %p198 = por %p196, %p197
      %p199 = scmp.ne.s32.totalorder %s190, %s191
      %p200 = scmp.eq.s32.totalorder %s39, 0
      %p201 = por %p199, %p200
      %p202 = scmp.ne.s32.totalorder %s190, %s191
      %p203 = scmp.eq.s32.totalorder %s40, 1
      %p204 = por %p202, %p203
      %p206 = scmp.ne.s32.totalorder %s191, %s205
      %p207 = scmp.eq.s32.totalorder %s40, 0
      %p208 = por %p206, %p207
      %s210 = sadd.s32 %s209, 1
      %p213 = scmp.eq.s32.totalorder %s34, 1
      %p214 = scmp.ne.s32.totalorder %s209, %s211
      %p215 = scmp.eq.s32.totalorder %s34, 0
      %p216 = por %p214, %p215
      %p217 = scmp.ne.s32.totalorder %s209, %s211
      %p218 = scmp.eq.s32.totalorder %s39, 1
      %p219 = por %p217, %p218
      %p220 = scmp.ne.s32.totalorder %s211, %s212
      %p221 = scmp.eq.s32.totalorder %s39, 0
      %p222 = por %p220, %p221
      %p223 = scmp.ne.s32.totalorder %s211, %s212
      %p224 = scmp.eq.s32.totalorder %s40, 1
      %p225 = por %p223, %p224
      %p227 = scmp.ne.s32.totalorder %s212, %s226
      %p228 = scmp.eq.s32.totalorder %s40, 0
      %p229 = por %p227, %p228
      %s231 = sadd.s32 %s230, 1
      %p234 = scmp.eq.s32.totalorder %s34, 1
      %p235 = scmp.ne.s32.totalorder %s230, %s232
      %p236 = scmp.eq.s32.totalorder %s34, 0
      %p237 = por %p235, %p236
      %p238 = scmp.ne.s32.totalorder %s230, %s232
      %p239 = scmp.eq.s32.totalorder %s39, 1
      %p240 = por %p238, %p239
      %p241 = scmp.ne.s32.totalorder %s232, %s233
      %p242 = scmp.eq.s32.totalorder %s39, 0
      %p243 = por %p241, %p242
      %p244 = scmp.ne.s32.totalorder %s232, %s233
      %p245 = scmp.eq.s32.totalorder %s40, 1
      %p246 = por %p244, %p245
      %p248 = scmp.ne.s32.totalorder %s233, %s247
      %p249 = scmp.eq.s32.totalorder %s40, 0
      %p250 = por %p248, %p249
      %s252 = sadd.s32 %s251, 1
      %p255 = scmp.eq.s32.totalorder %s34, 1
      %p256 = scmp.ne.s32.totalorder %s251, %s253
      %p257 = scmp.eq.s32.totalorder %s34, 0
      %p258 = por %p256, %p257
      %p259 = scmp.ne.s32.totalorder %s251, %s253
      %p260 = scmp.eq.s32.totalorder %s39, 1
      %p261 = por %p259, %p260
      %p262 = scmp.ne.s32.totalorder %s253, %s254
      %p263 = scmp.eq.s32.totalorder %s39, 0
      %p264 = por %p262, %p263
      %p265 = scmp.ne.s32.totalorder %s253, %s254
      %p266 = scmp.eq.s32.totalorder %s40, 1
      %p267 = por %p265, %p266
      %p269 = scmp.ne.s32.totalorder %s254, %s268
      %p270 = scmp.eq.s32.totalorder %s40, 0
      %p271 = por %p269, %p270
      %s273 = sadd.s32 %s272, 1
      %p276 = scmp.eq.s32.totalorder %s34, 1
      %p277 = scmp.ne.s32.totalorder %s272, %s274
      %p278 = scmp.eq.s32.totalorder %s34, 0
      %p279 = por %p277, %p278
      %p280 = scmp.ne.s32.totalorder %s272, %s274
      %p281 = scmp.eq.s32.totalorder %s39, 1
      %p282 = por %p280, %p281
      %p283 = scmp.ne.s32.totalorder %s274, %s275
      %p284 = scmp.eq.s32.totalorder %s39, 0
      %p285 = por %p283, %p284
      %p286 = scmp.ne.s32.totalorder %s274, %s275
      %p287 = scmp.eq.s32.totalorder %s40, 1
      %p288 = por %p286, %p287
      %p290 = scmp.ne.s32.totalorder %s275, %s289
      %p291 = scmp.eq.s32.totalorder %s40, 0
      %p292 = por %p290, %p291
      %s294 = sadd.s32 %s293, 1
      %p297 = scmp.eq.s32.totalorder %s34, 1
      %p298 = scmp.ne.s32.totalorder %s293, %s295
      %p299 = scmp.eq.s32.totalorder %s34, 0
      %p300 = por %p298, %p299
      %p301 = scmp.ne.s32.totalorder %s293, %s295
      %p302 = scmp.eq.s32.totalorder %s39, 1
      %p303 = por %p301, %p302
      %p304 = scmp.ne.s32.totalorder %s295, %s296
      %p305 = scmp.eq.s32.totalorder %s39, 0
      %p306 = por %p304, %p305
      %p307 = scmp.ne.s32.totalorder %s295, %s296
      %p308 = scmp.eq.s32.totalorder %s40, 1
      %p309 = por %p307, %p308
      %p311 = scmp.ne.s32.totalorder %s296, %s310
      %p312 = scmp.eq.s32.totalorder %s40, 0
      %p313 = por %p311, %p312
      %s315 = sadd.s32 %s314, 1
      %p318 = scmp.eq.s32.totalorder %s34, 1
      %p319 = scmp.ne.s32.totalorder %s314, %s316
      %p320 = scmp.eq.s32.totalorder %s34, 0
      %p321 = por %p319, %p320
      %p322 = scmp.ne.s32.totalorder %s314, %s316
      %p323 = scmp.eq.s32.totalorder %s39, 1
      %p324 = por %p322, %p323
      %p325 = scmp.ne.s32.totalorder %s316, %s317
      %p326 = scmp.eq.s32.totalorder %s39, 0
      %p327 = por %p325, %p326
      %p328 = scmp.ne.s32.totalorder %s316, %s317
      %p329 = scmp.eq.s32.totalorder %s40, 1
      %p330 = por %p328, %p329
      %p332 = scmp.ne.s32.totalorder %s317, %s331
      %p333 = scmp.eq.s32.totalorder %s40, 0
      %p334 = por %p332, %p333
      %s336 = sadd.s32 %s335, 1
      %p339 = scmp.eq.s32.totalorder %s34, 1
      %p340 = scmp.ne.s32.totalorder %s335, %s337
      %p341 = scmp.eq.s32.totalorder %s34, 0
      %p342 = por %p340, %p341
      %p343 = scmp.ne.s32.totalorder %s335, %s337
      %p344 = scmp.eq.s32.totalorder %s39, 1
      %p345 = por %p343, %p344
      %p346 = scmp.ne.s32.totalorder %s337, %s338
      %p347 = scmp.eq.s32.totalorder %s39, 0
      %p348 = por %p346, %p347
      %p349 = scmp.ne.s32.totalorder %s337, %s338
      %p350 = scmp.eq.s32.totalorder %s40, 1
      %p351 = por %p349, %p350
      %p353 = scmp.ne.s32.totalorder %s338, %s352
      %p354 = scmp.eq.s32.totalorder %s40, 0
      %p355 = por %p353, %p354
      %s356 = ssub.s32 %s34, %s41
      %p357 = scmp.eq.s32.totalorder %s356, 0
      %s359 = sadd.s32 %s358, 1
      %s360 = scalar_select %p357, %s358, %s359
      %p363 = pneg %p357
      %p364 = scmp.eq.s32.totalorder %s34, 1
      %p365 = por %p363, %p364
      %p366 = scmp.ne.s32.totalorder %s358, %s361
      %p367 = scmp.eq.s32.totalorder %s34, 0
      %p368 = por %p366, %p367
      %p369 = scmp.ne.s32.totalorder %s358, %s361
      %p370 = scmp.eq.s32.totalorder %s39, 1
      %p371 = por %p369, %p370
      %p372 = scmp.ne.s32.totalorder %s361, %s362
      %p373 = scmp.eq.s32.totalorder %s39, 0
      %p374 = por %p372, %p373
      %p375 = scmp.ne.s32.totalorder %s361, %s362
      %p376 = scmp.eq.s32.totalorder %s40, 1
      %p377 = por %p375, %p376
      %p379 = scmp.ne.s32.totalorder %s362, %s378
      %p380 = scmp.eq.s32.totalorder %s40, 0
      %p381 = por %p379, %p380
      %p382 = scmp.le.s32.totalorder 1, %s34
      %p383 = scmp.lt.s32.totalorder %s34, 3
      %p384 = pnand %p382, %p383
      %p385 = pneg %p384
      // Predicated region
      $region9: #{tpu_custom_call.1} parent=5 // pred_check
        _
      $region10: #{tpu_custom_call.1} parent=5 // pred_check_branch
        %387 = sbr.rel (%p384) target = $region12
      $region11: #{tpu_custom_call.1} parent=5 // pred_region
        %s388 = ssub.s32 %s34, 1
        // Predicated region
        $region13: #{tpu_custom_call.1} parent=11 // pred_check
          %p389 = pneg %p159
        $region14: #{tpu_custom_call.1} parent=11 // pred_check_branch
          %391 = sbr.rel (%p389) target = $region16
        $region15: #{tpu_custom_call.1} parent=11 // pred_region
          %s393 = ssub.s32 4096, 4096
          %394 = vsyncadd [#allocation9], %s393
          %s395 = sshll.u32 [#allocation10], 4
          %s396 = int_to_ptr.vmem [resolvable:$true] %s395
          %401 = dma.hbm_to_vmem [thread:$0]  %s4, 4096, %s396, [#allocation9], 128, 128, 8
        $region16: #{tpu_custom_call.1} parent=11 // pred_fallthru
          _
        // Predicated region
        $region17: #{tpu_custom_call.1} parent=11 // pred_check
          %p402 = pneg %p180
        $region18: #{tpu_custom_call.1} parent=11 // pred_check_branch
          %404 = sbr.rel (%p402) target = $region20
        $region19: #{tpu_custom_call.1} parent=11 // pred_region
          %s406 = ssub.s32 4096, 4096
          %407 = vsyncadd [#allocation12], %s406
          %s408 = sshll.u32 [#allocation11], 4
          %s409 = int_to_ptr.vmem [resolvable:$true] %s408
          %414 = dma.hbm_to_vmem [thread:$0]  %s5, 4096, %s409, [#allocation12], 128, 128, 8
        $region20: #{tpu_custom_call.1} parent=11 // pred_fallthru
          _
        // Predicated region
        $region21: #{tpu_custom_call.1} parent=11 // pred_check
          %p415 = pneg %p201
        $region22: #{tpu_custom_call.1} parent=11 // pred_check_branch
          %417 = sbr.rel (%p415) target = $region24
        $region23: #{tpu_custom_call.1} parent=11 // pred_region
          %s419 = ssub.s32 4096, 4096
          %420 = vsyncadd [#allocation12], %s419
          %s421 = sshll.u32 [#allocation13], 4
          %s422 = int_to_ptr.vmem [resolvable:$true] %s421
          %427 = dma.hbm_to_vmem [thread:$0]  %s6, 4096, %s422, [#allocation12], 128, 128, 8
        $region24: #{tpu_custom_call.1} parent=11 // pred_fallthru
          _
        // Predicated region
        $region25: #{tpu_custom_call.1} parent=11 // pred_check
          %p428 = pneg %p222
        $region26: #{tpu_custom_call.1} parent=11 // pred_check_branch
          %430 = sbr.rel (%p428) target = $region28
        $region27: #{tpu_custom_call.1} parent=11 // pred_region
          %s432 = ssub.s32 4096, 4096
          %433 = vsyncadd [#allocation15], %s432
          %s434 = sshll.u32 [#allocation14], 4
          %s435 = int_to_ptr.vmem [resolvable:$true] %s434
          %440 = dma.hbm_to_vmem [thread:$0]  %s7, 4096, %s435, [#allocation15], 128, 128, 8
        $region28: #{tpu_custom_call.1} parent=11 // pred_fallthru
          _
        // Predicated region
        $region29: #{tpu_custom_call.1} parent=11 // pred_check
          %p441 = pneg %p243
        $region30: #{tpu_custom_call.1} parent=11 // pred_check_branch
          %443 = sbr.rel (%p441) target = $region32
        $region31: #{tpu_custom_call.1} parent=11 // pred_region
          _
        $region32: #{tpu_custom_call.1} parent=11 // pred_fallthru
          _
        // Predicated region
        $region33: #{tpu_custom_call.1} parent=11 // pred_check
          %p444 = pneg %p264
        $region34: #{tpu_custom_call.1} parent=11 // pred_check_branch
          %446 = sbr.rel (%p444) target = $region36
        $region35: #{tpu_custom_call.1} parent=11 // pred_region
          _
        $region36: #{tpu_custom_call.1} parent=11 // pred_fallthru
          _
        // Predicated region
        $region37: #{tpu_custom_call.1} parent=11 // pred_check
          %p447 = pneg %p285
        $region38: #{tpu_custom_call.1} parent=11 // pred_check_branch
          %449 = sbr.rel (%p447) target = $region40
        $region39: #{tpu_custom_call.1} parent=11 // pred_region
          _
        $region40: #{tpu_custom_call.1} parent=11 // pred_fallthru
          _
        // Predicated region
        $region41: #{tpu_custom_call.1} parent=11 // pred_check
          %p450 = pneg %p306
        $region42: #{tpu_custom_call.1} parent=11 // pred_check_branch
          %452 = sbr.rel (%p450) target = $region44
        $region43: #{tpu_custom_call.1} parent=11 // pred_region
          _
        $region44: #{tpu_custom_call.1} parent=11 // pred_fallthru
          _
        // Predicated region
        $region45: #{tpu_custom_call.1} parent=11 // pred_check
          %p453 = pneg %p327
        $region46: #{tpu_custom_call.1} parent=11 // pred_check_branch
          %455 = sbr.rel (%p453) target = $region48
        $region47: #{tpu_custom_call.1} parent=11 // pred_region
          %s457 = ssub.s32 4096, 4096
          %458 = vsyncadd [#allocation15], %s457
          %s459 = sshll.u32 [#allocation16], 4
          %s460 = int_to_ptr.vmem [resolvable:$true] %s459
          %465 = dma.hbm_to_vmem [thread:$0]  %s12, 4096, %s460, [#allocation15], 128, 128, 8
        $region48: #{tpu_custom_call.1} parent=11 // pred_fallthru
          _
        // Predicated region
        $region49: #{tpu_custom_call.1} parent=11 // pred_check
          %p466 = pneg %p348
        $region50: #{tpu_custom_call.1} parent=11 // pred_check_branch
          %468 = sbr.rel (%p466) target = $region52
        $region51: #{tpu_custom_call.1} parent=11 // pred_region
          _
        $region52: #{tpu_custom_call.1} parent=11 // pred_fallthru
          _
      $region12: #{tpu_custom_call.1} parent=5 // pred_fallthru
        _
      %p469 = scmp.lt.s32.totalorder %s34, 2
      // Predicated region
      $region53: #{tpu_custom_call.1} parent=5 // pred_check
        %p470 = pneg %p469
      $region54: #{tpu_custom_call.1} parent=5 // pred_check_branch
        %472 = sbr.rel (%p470) target = $region56
      $region55: #{tpu_custom_call.1} parent=5 // pred_region
        // Predicated region
        $region57: #{tpu_custom_call.1} parent=55 // pred_check
          %p473 = pneg %p54
        $region58: #{tpu_custom_call.1} parent=55 // pred_check_branch
          %475 = sbr.rel (%p473) target = $region60
        $region59: #{tpu_custom_call.1} parent=55 // pred_region
          %s476 = sand.u32 %s44, 1
          %s477 = scalar_lea.sflag [#allocation3], %s476
          %s478 = sand.u32 %s44, 1
          %s479 = smul.addr %s478, 128
          %s480 = scalar_lea.vmem [#allocation2], %s479
          %s482 = ssub.s32 2048, 2048
          %483 = vsyncadd %s477, %s482
          %s484 = smul.addr %s34, 32
          %s485 = smul.addr %s484, 64
          %s486 = scalar_lea.hbm %s0, %s485
          %s487 = sshll.u32 %s480, 4
          %s488 = int_to_ptr.vmem [resolvable:$true] %s487
          %493 = dma.hbm_to_vmem [thread:$0]  %s486, 2048, %s488, %s477, 128, 128, 8
        $region60: #{tpu_custom_call.1} parent=55 // pred_fallthru
          _
        // Predicated region
        $region61: #{tpu_custom_call.1} parent=55 // pred_check
          %p494 = pneg %p80
        $region62: #{tpu_custom_call.1} parent=55 // pred_check_branch
          %496 = sbr.rel (%p494) target = $region64
        $region63: #{tpu_custom_call.1} parent=55 // pred_region
          %s497 = sand.u32 %s34, 1
          %s498 = scalar_lea.sflag [#allocation6], %s497
          %s499 = sand.u32 %s70, 1
          %s500 = smul.addr %s499, 128
          %s501 = scalar_lea.vmem [#allocation5], %s500
          %s503 = ssub.s32 2048, 2048
          %504 = vsyncadd %s498, %s503
          %s505 = smul.addr %s34, 32
          %s506 = smul.addr %s505, 64
          %s507 = scalar_lea.hbm %s1, %s506
          %s508 = sshll.u32 %s501, 4
          %s509 = int_to_ptr.vmem [resolvable:$true] %s508
          %514 = dma.hbm_to_vmem [thread:$0]  %s507, 2048, %s509, %s498, 128, 128, 8
        $region64: #{tpu_custom_call.1} parent=55 // pred_fallthru
          _
        // Predicated region
        $region65: #{tpu_custom_call.1} parent=55 // pred_check
          %p515 = pneg %p106
        $region66: #{tpu_custom_call.1} parent=55 // pred_check_branch
          %517 = sbr.rel (%p515) target = $region68
        $region67: #{tpu_custom_call.1} parent=55 // pred_region
          %s518 = sand.u32 %s34, 1
          %s519 = scalar_lea.sflag [#allocation6], %s518
          %s520 = sand.u32 %s96, 1
          %s521 = smul.addr %s520, 128
          %s522 = scalar_lea.vmem [#allocation7], %s521
          %s524 = ssub.s32 2048, 2048
          %525 = vsyncadd %s519, %s524
          %s526 = smul.addr %s34, 32
          %s527 = smul.addr %s526, 64
          %s528 = scalar_lea.hbm %s2, %s527
          %s529 = sshll.u32 %s522, 4
          %s530 = int_to_ptr.vmem [resolvable:$true] %s529
          %535 = dma.hbm_to_vmem [thread:$0]  %s528, 2048, %s530, %s519, 128, 128, 8
        $region68: #{tpu_custom_call.1} parent=55 // pred_fallthru
          _
        // Predicated region
        $region69: #{tpu_custom_call.1} parent=55 // pred_check
          %p536 = pneg %p132
        $region70: #{tpu_custom_call.1} parent=55 // pred_check_branch
          %538 = sbr.rel (%p536) target = $region72
        $region71: #{tpu_custom_call.1} parent=55 // pred_region
          %s539 = sand.u32 %s34, 1
          %s540 = scalar_lea.sflag [#allocation9], %s539
          %s541 = sand.u32 %s122, 1
          %s542 = smul.addr %s541, 128
          %s543 = scalar_lea.vmem [#allocation8], %s542
          %s545 = ssub.s32 2048, 2048
          %546 = vsyncadd %s540, %s545
          %s547 = smul.addr %s34, 32
          %s548 = smul.addr %s547, 64
          %s549 = scalar_lea.hbm %s3, %s548
          %s550 = sshll.u32 %s543, 4
          %s551 = int_to_ptr.vmem [resolvable:$true] %s550
          %556 = dma.hbm_to_vmem [thread:$0]  %s549, 2048, %s551, %s540, 128, 128, 8
        $region72: #{tpu_custom_call.1} parent=55 // pred_fallthru
          _
      $region56: #{tpu_custom_call.1} parent=5 // pred_fallthru
        _
      %p557 = scmp.le.s32.totalorder 1, %s34
      %p558 = scmp.lt.s32.totalorder %s34, 3
      %p559 = pnand %p557, %p558
      %p560 = pneg %p559
      // Predicated region
      $region73: #{tpu_custom_call.1} parent=5 // pred_check
        _
      $region74: #{tpu_custom_call.1} parent=5 // pred_check_branch
        %562 = sbr.rel (%p559) target = $region76
      $region75: #{tpu_custom_call.1} parent=5 // pred_region
        %s563 = ssub.s32 %s34, 1
        %s564 = sand.u32 %s47, 1
        %s565 = scalar_lea.sflag [#allocation3], %s564
        %s566 = sand.u32 %s47, 1
        %s567 = smul.addr %s566, 128
        %s568 = scalar_lea.vmem [#allocation2], %s567
        // Predicated region
        $region77: #{tpu_custom_call.1} parent=75 // pred_check
          %p569 = pneg %p60
        $region78: #{tpu_custom_call.1} parent=75 // pred_check_branch
          %571 = sbr.rel (%p569) target = $region80
        $region79: #{tpu_custom_call.1} parent=75 // pred_region
          %572 = dma.done %s565, 2048
        $region80: #{tpu_custom_call.1} parent=75 // pred_fallthru
          _
        %s573 = sand.u32 %s39, 1
        %s574 = scalar_lea.sflag [#allocation6], %s573
        %s575 = sand.u32 %s73, 1
        %s576 = smul.addr %s575, 128
        %s577 = scalar_lea.vmem [#allocation5], %s576
        // Predicated region
        $region81: #{tpu_custom_call.1} parent=75 // pred_check
          %p578 = pneg %p86
        $region82: #{tpu_custom_call.1} parent=75 // pred_check_branch
          %580 = sbr.rel (%p578) target = $region84
        $region83: #{tpu_custom_call.1} parent=75 // pred_region
          %581 = dma.done %s574, 2048
        $region84: #{tpu_custom_call.1} parent=75 // pred_fallthru
          _
        %s582 = sand.u32 %s39, 1
        %s583 = scalar_lea.sflag [#allocation6], %s582
        %s584 = sand.u32 %s99, 1
        %s585 = smul.addr %s584, 128
        %s586 = scalar_lea.vmem [#allocation7], %s585
        // Predicated region
        $region85: #{tpu_custom_call.1} parent=75 // pred_check
          %p587 = pneg %p112
        $region86: #{tpu_custom_call.1} parent=75 // pred_check_branch
          %589 = sbr.rel (%p587) target = $region88
        $region87: #{tpu_custom_call.1} parent=75 // pred_region
          %590 = dma.done %s583, 2048
        $region88: #{tpu_custom_call.1} parent=75 // pred_fallthru
          _
        %s591 = sand.u32 %s39, 1
        %s592 = scalar_lea.sflag [#allocation9], %s591
        %s593 = sand.u32 %s125, 1
        %s594 = smul.addr %s593, 128
        %s595 = scalar_lea.vmem [#allocation8], %s594
        // Predicated region
        $region89: #{tpu_custom_call.1} parent=75 // pred_check
          %p596 = pneg %p138
        $region90: #{tpu_custom_call.1} parent=75 // pred_check_branch
          %598 = sbr.rel (%p596) target = $region92
        $region91: #{tpu_custom_call.1} parent=75 // pred_region
          %599 = dma.done %s592, 2048
        $region92: #{tpu_custom_call.1} parent=75 // pred_fallthru
          _
        // Predicated region
        $region93: #{tpu_custom_call.1} parent=75 // pred_check
          %p600 = pneg %p159
        $region94: #{tpu_custom_call.1} parent=75 // pred_check_branch
          %602 = sbr.rel (%p600) target = $region96
        $region95: #{tpu_custom_call.1} parent=75 // pred_region
          %603 = dma.done [#allocation9], 4096
        $region96: #{tpu_custom_call.1} parent=75 // pred_fallthru
          _
        // Predicated region
        $region97: #{tpu_custom_call.1} parent=75 // pred_check
          %p604 = pneg %p180
        $region98: #{tpu_custom_call.1} parent=75 // pred_check_branch
          %606 = sbr.rel (%p604) target = $region100
        $region99: #{tpu_custom_call.1} parent=75 // pred_region
          %607 = dma.done [#allocation12], 4096
        $region100: #{tpu_custom_call.1} parent=75 // pred_fallthru
          _
        // Predicated region
        $region101: #{tpu_custom_call.1} parent=75 // pred_check
          %p608 = pneg %p201
        $region102: #{tpu_custom_call.1} parent=75 // pred_check_branch
          %610 = sbr.rel (%p608) target = $region104
        $region103: #{tpu_custom_call.1} parent=75 // pred_region
          %611 = dma.done [#allocation12], 4096
        $region104: #{tpu_custom_call.1} parent=75 // pred_fallthru
          _
        // Predicated region
        $region105: #{tpu_custom_call.1} parent=75 // pred_check
          %p612 = pneg %p222
        $region106: #{tpu_custom_call.1} parent=75 // pred_check_branch
          %614 = sbr.rel (%p612) target = $region108
        $region107: #{tpu_custom_call.1} parent=75 // pred_region
          %615 = dma.done [#allocation15], 4096
        $region108: #{tpu_custom_call.1} parent=75 // pred_fallthru
          _
        // Predicated region
        $region109: #{tpu_custom_call.1} parent=75 // pred_check
          %p616 = pneg %p327
        $region110: #{tpu_custom_call.1} parent=75 // pred_check_branch
          %618 = sbr.rel (%p616) target = $region112
        $region111: #{tpu_custom_call.1} parent=75 // pred_region
          %619 = dma.done [#allocation15], 4096
        $region112: #{tpu_custom_call.1} parent=75 // pred_fallthru
          _
        %s620 = sand.u32 %s47, 1
        %s621 = scalar_lea.sflag [#allocation3], %s620
        %s622 = sand.u32 %s47, 1
        %s623 = smul.addr %s622, 128
        %s624 = scalar_lea.vmem [#allocation2], %s623
        %p625 = pneg %p60
        %p626 = pneg %p57
        %s627 = sand.u32 %s39, 1
        %s628 = scalar_lea.sflag [#allocation6], %s627
        %s629 = sand.u32 %s73, 1
        %s630 = smul.addr %s629, 128
        %s631 = scalar_lea.vmem [#allocation5], %s630
        %p632 = pneg %p86
        %p633 = pneg %p83
        %s634 = sand.u32 %s39, 1
        %s635 = scalar_lea.sflag [#allocation6], %s634
        %s636 = sand.u32 %s99, 1
        %s637 = smul.addr %s636, 128
        %s638 = scalar_lea.vmem [#allocation7], %s637
        %p639 = pneg %p112
        %p640 = pneg %p109
        %s641 = sand.u32 %s39, 1
        %s642 = scalar_lea.sflag [#allocation9], %s641
        %s643 = sand.u32 %s125, 1
        %s644 = smul.addr %s643, 128
        %s645 = scalar_lea.vmem [#allocation8], %s644
        %p646 = pneg %p138
        %p647 = pneg %p135
        %p648 = pneg %p159
        %p649 = pneg %p156
        %p650 = pneg %p180
        %p651 = pneg %p177
        %p652 = pneg %p201
        %p653 = pneg %p198
        %p654 = pneg %p222
        %p655 = pneg %p219
        %p656 = pneg %p243
        %p657 = pneg %p240
        %p658 = pneg %p264
        %p659 = pneg %p261
        %p660 = pneg %p285
        %p661 = pneg %p282
        %p662 = pneg %p306
        %p663 = pneg %p303
        %p664 = pneg %p327
        %p665 = pneg %p324
        %p666 = pneg %p348
        %p667 = pneg %p345
        %p668 = pneg %p374
        %p669 = pneg %p371
        %s670 = sand.u32 %s361, 1
        %s671 = scalar_lea.sflag [#allocation4], %s670
        %s672 = sand.u32 %s361, 1
        %s673 = smul.addr %s672, 256
        %s674 = scalar_lea.vmem [#allocation17], %s673
        %v676 = vld [vmem:[%s568] sm:$0xff]
        %v677 = vld [vmem:[%s568 + $0x8] sm:$0xff]
        %v678 = vld [vmem:[%s568 + $0x10] sm:$0xff]
        %v679 = vld [vmem:[%s568 + $0x18] sm:$0xff]
        %v680 = vld [vmem:[%s568 + $0x20] sm:$0xff]
        %v681 = vld [vmem:[%s568 + $0x28] sm:$0xff]
        %v682 = vld [vmem:[%s568 + $0x30] sm:$0xff]
        %v683 = vld [vmem:[%s568 + $0x38] sm:$0xff]
        %v684 = vld [vmem:[%s568 + $0x40] sm:$0xff]
        %v685 = vld [vmem:[%s568 + $0x48] sm:$0xff]
        %v686 = vld [vmem:[%s568 + $0x50] sm:$0xff]
        %v687 = vld [vmem:[%s568 + $0x58] sm:$0xff]
        %v688 = vld [vmem:[%s568 + $0x60] sm:$0xff]
        %v689 = vld [vmem:[%s568 + $0x68] sm:$0xff]
        %v690 = vld [vmem:[%s568 + $0x70] sm:$0xff]
        %v691 = vld [vmem:[%s568 + $0x78] sm:$0xff]
        %v692 = vld [vmem:[#allocation10] sm:$0xff]
        %v693 = vld [vmem:[#allocation10 + $0x8] sm:$0xff]
        %v694 = vld [vmem:[#allocation10 + $0x10] sm:$0xff]
        %v695 = vld [vmem:[#allocation10 + $0x18] sm:$0xff]
        %v696 = vld [vmem:[#allocation10 + $0x20] sm:$0xff]
        %v697 = vld [vmem:[#allocation10 + $0x28] sm:$0xff]
        %v698 = vld [vmem:[#allocation10 + $0x30] sm:$0xff]
        %v699 = vld [vmem:[#allocation10 + $0x38] sm:$0xff]
        %v700 = vld [vmem:[#allocation10 + $0x40] sm:$0xff]
        %v701 = vld [vmem:[#allocation10 + $0x48] sm:$0xff]
        %v702 = vld [vmem:[#allocation10 + $0x50] sm:$0xff]
        %v703 = vld [vmem:[#allocation10 + $0x58] sm:$0xff]
        %v704 = vld [vmem:[#allocation10 + $0x60] sm:$0xff]
        %v705 = vld [vmem:[#allocation10 + $0x68] sm:$0xff]
        %v706 = vld [vmem:[#allocation10 + $0x70] sm:$0xff]
        %v707 = vld [vmem:[#allocation10 + $0x78] sm:$0xff]
        %v708 = vld [vmem:[#allocation10 + $0x80] sm:$0xff]
        %v709 = vld [vmem:[#allocation10 + $0x88] sm:$0xff]
        %v710 = vld [vmem:[#allocation10 + $0x90] sm:$0xff]
        %v711 = vld [vmem:[#allocation10 + $0x98] sm:$0xff]
        %v712 = vld [vmem:[#allocation10 + $0xa0] sm:$0xff]
        %v713 = vld [vmem:[#allocation10 + $0xa8] sm:$0xff]
        %v714 = vld [vmem:[#allocation10 + $0xb0] sm:$0xff]
        %v715 = vld [vmem:[#allocation10 + $0xb8] sm:$0xff]
        %v716 = vld [vmem:[#allocation10 + $0xc0] sm:$0xff]
        %v717 = vld [vmem:[#allocation10 + $0xc8] sm:$0xff]
        %v718 = vld [vmem:[#allocation10 + $0xd0] sm:$0xff]
        %v719 = vld [vmem:[#allocation10 + $0xd8] sm:$0xff]
        %v720 = vld [vmem:[#allocation10 + $0xe0] sm:$0xff]
        %v721 = vld [vmem:[#allocation10 + $0xe8] sm:$0xff]
        %v722 = vld [vmem:[#allocation10 + $0xf0] sm:$0xff]
        %v723 = vld [vmem:[#allocation10 + $0xf8] sm:$0xff]
        %v724 = vld [vmem:[%s8] sm:$0x3]
        %v726 = vlaneseq
        %v727 = vshrl.u32 %v726, 7
        %v728 = vsub.s32 0, %v727
        %v729 = vrot.slane %v724, %v728
        %v730 = vlaneseq
        %v731 = vshrl.u32 %v730, 7
        %v732 = vsub.s32 1, %v731
        %v733 = vrot.slane %v724, %v732
        %v752 = vunpack.c.l.b16 %v676
        %v753 = vunpack.c.h.b16 %v676
        %v754 = vunpack.c.l.b16 %v677
        %v755 = vunpack.c.h.b16 %v677
        %v756 = vunpack.c.l.b16 %v678
        %v757 = vunpack.c.h.b16 %v678
        %v758 = vunpack.c.l.b16 %v679
        %v759 = vunpack.c.h.b16 %v679
        %v760 = vunpack.c.l.b16 %v680
        %v761 = vunpack.c.h.b16 %v680
        %v762 = vunpack.c.l.b16 %v681
        %v763 = vunpack.c.h.b16 %v681
        %v764 = vunpack.c.l.b16 %v682
        %v765 = vunpack.c.h.b16 %v682
        %v766 = vunpack.c.l.b16 %v683
        %v767 = vunpack.c.h.b16 %v683
        %v768 = vunpack.c.l.b16 %v684
        %v769 = vunpack.c.h.b16 %v684
        %v770 = vunpack.c.l.b16 %v685
        %v771 = vunpack.c.h.b16 %v685
        %v772 = vunpack.c.l.b16 %v686
        %v773 = vunpack.c.h.b16 %v686
        %v774 = vunpack.c.l.b16 %v687
        %v775 = vunpack.c.h.b16 %v687
        %v776 = vunpack.c.l.b16 %v688
        %v777 = vunpack.c.h.b16 %v688
        %v778 = vunpack.c.l.b16 %v689
        %v779 = vunpack.c.h.b16 %v689
        %v780 = vunpack.c.l.b16 %v690
        %v781 = vunpack.c.h.b16 %v690
        %v782 = vunpack.c.l.b16 %v691
        %v783 = vunpack.c.h.b16 %v691
        %v784 = vpack.c.b16 %v754, %v752
        %v785 = vpack.c.b16 %v755, %v753
        %v786 = vpack.c.b16 %v758, %v756
        %v787 = vpack.c.b16 %v759, %v757
        %v788 = vpack.c.b16 %v762, %v760
        %v789 = vpack.c.b16 %v763, %v761
        %v790 = vpack.c.b16 %v766, %v764
        %v791 = vpack.c.b16 %v767, %v765
        %v792 = vpack.c.b16 %v770, %v768
        %v793 = vpack.c.b16 %v771, %v769
        %v794 = vpack.c.b16 %v774, %v772
        %v795 = vpack.c.b16 %v775, %v773
        %v796 = vpack.c.b16 %v778, %v776
        %v797 = vpack.c.b16 %v779, %v777
        %v798 = vpack.c.b16 %v782, %v780
        %v799 = vpack.c.b16 %v783, %v781
        %v848 = vunpack.c.l.b16 %v692
        %v849 = vunpack.c.h.b16 %v692
        %v850 = vunpack.c.l.b16 %v693
        %v851 = vunpack.c.h.b16 %v693
        %v852 = vunpack.c.l.b16 %v694
        %v853 = vunpack.c.h.b16 %v694
        %v854 = vunpack.c.l.b16 %v695
        %v855 = vunpack.c.h.b16 %v695
        %v856 = vunpack.c.l.b16 %v696
        %v857 = vunpack.c.h.b16 %v696
        %v858 = vunpack.c.l.b16 %v697
        %v859 = vunpack.c.h.b16 %v697
        %v860 = vunpack.c.l.b16 %v698
        %v861 = vunpack.c.h.b16 %v698
        %v862 = vunpack.c.l.b16 %v699
        %v863 = vunpack.c.h.b16 %v699
        %v864 = vunpack.c.l.b16 %v700
        %v865 = vunpack.c.h.b16 %v700
        %v866 = vunpack.c.l.b16 %v701
        %v867 = vunpack.c.h.b16 %v701
        %v868 = vunpack.c.l.b16 %v702
        %v869 = vunpack.c.h.b16 %v702
        %v870 = vunpack.c.l.b16 %v703
        %v871 = vunpack.c.h.b16 %v703
        %v872 = vunpack.c.l.b16 %v704
        %v873 = vunpack.c.h.b16 %v704
        %v874 = vunpack.c.l.b16 %v705
        %v875 = vunpack.c.h.b16 %v705
        %v876 = vunpack.c.l.b16 %v706
        %v877 = vunpack.c.h.b16 %v706
        %v878 = vunpack.c.l.b16 %v707
        %v879 = vunpack.c.h.b16 %v707
        %v880 = vunpack.c.l.b16 %v708
        %v881 = vunpack.c.h.b16 %v708
        %v882 = vunpack.c.l.b16 %v709
        %v883 = vunpack.c.h.b16 %v709
        %v884 = vunpack.c.l.b16 %v710
        %v885 = vunpack.c.h.b16 %v710
        %v886 = vunpack.c.l.b16 %v711
        %v887 = vunpack.c.h.b16 %v711
        %v888 = vunpack.c.l.b16 %v712
        %v889 = vunpack.c.h.b16 %v712
        %v890 = vunpack.c.l.b16 %v713
        %v891 = vunpack.c.h.b16 %v713
        %v892 = vunpack.c.l.b16 %v714
        %v893 = vunpack.c.h.b16 %v714
        %v894 = vunpack.c.l.b16 %v715
        %v895 = vunpack.c.h.b16 %v715
        %v896 = vunpack.c.l.b16 %v716
        %v897 = vunpack.c.h.b16 %v716
        %v898 = vunpack.c.l.b16 %v717
        %v899 = vunpack.c.h.b16 %v717
        %v900 = vunpack.c.l.b16 %v718
        %v901 = vunpack.c.h.b16 %v718
        %v902 = vunpack.c.l.b16 %v719
        %v903 = vunpack.c.h.b16 %v719
        %v904 = vunpack.c.l.b16 %v720
        %v905 = vunpack.c.h.b16 %v720
        %v906 = vunpack.c.l.b16 %v721
        %v907 = vunpack.c.h.b16 %v721
        %v908 = vunpack.c.l.b16 %v722
        %v909 = vunpack.c.h.b16 %v722
        %v910 = vunpack.c.l.b16 %v723
        %v911 = vunpack.c.h.b16 %v723
        %v912 = vpack.c.b16 %v850, %v848
        %v913 = vpack.c.b16 %v851, %v849
        %v914 = vpack.c.b16 %v854, %v852
        %v915 = vpack.c.b16 %v855, %v853
        %v916 = vpack.c.b16 %v858, %v856
        %v917 = vpack.c.b16 %v859, %v857
        %v918 = vpack.c.b16 %v862, %v860
        %v919 = vpack.c.b16 %v863, %v861
        %v920 = vpack.c.b16 %v866, %v864
        %v921 = vpack.c.b16 %v867, %v865
        %v922 = vpack.c.b16 %v870, %v868
        %v923 = vpack.c.b16 %v871, %v869
        %v924 = vpack.c.b16 %v874, %v872
        %v925 = vpack.c.b16 %v875, %v873
        %v926 = vpack.c.b16 %v878, %v876
        %v927 = vpack.c.b16 %v879, %v877
        %v928 = vpack.c.b16 %v882, %v880
        %v929 = vpack.c.b16 %v883, %v881
        %v930 = vpack.c.b16 %v886, %v884
        %v931 = vpack.c.b16 %v887, %v885
        %v932 = vpack.c.b16 %v890, %v888
        %v933 = vpack.c.b16 %v891, %v889
        %v934 = vpack.c.b16 %v894, %v892
        %v935 = vpack.c.b16 %v895, %v893
        %v936 = vpack.c.b16 %v898, %v896
        %v937 = vpack.c.b16 %v899, %v897
        %v938 = vpack.c.b16 %v902, %v900
        %v939 = vpack.c.b16 %v903, %v901
        %v940 = vpack.c.b16 %v906, %v904
        %v941 = vpack.c.b16 %v907, %v905
        %v942 = vpack.c.b16 %v910, %v908
        %v943 = vpack.c.b16 %v911, %v909
        %976 = vmatprep.subr.bf16.mxu0 %v927
        %977 = vmatpush1.bf16.msra.mxu0 %v926
        %978 = vmatprep.subr.bf16.mxu0 %v925
        %979 = vmatpush1.bf16.msra.mxu0 %v924
        %980 = vmatprep.subr.bf16.mxu0 %v923
        %981 = vmatpush1.bf16.msra.mxu0 %v922
        %982 = vmatprep.subr.bf16.mxu0 %v921
        %983 = vmatpush1.bf16.msra.mxu0 %v920
        %984 = vmatprep.subr.bf16.mxu0 %v919
        %985 = vmatpush1.bf16.msra.mxu0 %v918
        %986 = vmatprep.subr.bf16.mxu0 %v917
        %987 = vmatpush1.bf16.msra.mxu0 %v916
        %988 = vmatprep.subr.bf16.mxu0 %v915
        %989 = vmatpush1.bf16.msra.mxu0 %v914
        %990 = vmatprep.subr.bf16.mxu0 %v913
        %991 = vmatpush1.bf16.msra.mxu0 %v912
        %992 = vmatprep.subr.bf16.mxu0 %v943
        %993 = vmatpush2.bf16.msra.mxu0 %v942
        %994 = vmatprep.subr.bf16.mxu0 %v941
        %995 = vmatpush2.bf16.msra.mxu0 %v940
        %996 = vmatprep.subr.bf16.mxu0 %v939
        %997 = vmatpush2.bf16.msra.mxu0 %v938
        %998 = vmatprep.subr.bf16.mxu0 %v937
        %999 = vmatpush2.bf16.msra.mxu0 %v936
        %1000 = vmatprep.subr.bf16.mxu0 %v935
        %1001 = vmatpush2.bf16.msra.mxu0 %v934
        %1002 = vmatprep.subr.bf16.mxu0 %v933
        %1003 = vmatpush2.bf16.msra.mxu0 %v932
        %1004 = vmatprep.subr.bf16.mxu0 %v931
        %1005 = vmatpush2.bf16.msra.mxu0 %v930
        %1006 = vmatprep.subr.bf16.mxu0 %v929
        %1007 = vmatpush2.bf16.msra.mxu0 %v928
        %1008 = vmatprep.mubr.bf16.mxu0 %v785
        %1009 = vmatmul.mubr.bf16.gmra.mxu0 %v784
        %v1010 = vpop.f32.mrf.mxu0
        %v1011 = vadd.f32 %v729, %v1010
        %v1012 = vpop.f32.mrf.mxu0
        %v1013 = vadd.f32 %v733, %v1012
        %v1014 = vpop.f32.mrf.mxu0
        %v1015 = vadd.f32 %v729, %v1014
        %v1016 = vpop.f32.mrf.mxu0
        %v1017 = vadd.f32 %v733, %v1016
        %1018 = vmatprep.mubr.bf16.mxu0 %v787
        %1019 = vmatmul.mubr.bf16.gmra.mxu0 %v786
        %v1020 = vpop.f32.mrf.mxu0
        %v1021 = vadd.f32 %v729, %v1020
        %v1022 = vpop.f32.mrf.mxu0
        %v1023 = vadd.f32 %v733, %v1022
        %v1024 = vpop.f32.mrf.mxu0
        %v1025 = vadd.f32 %v729, %v1024
        %v1026 = vpop.f32.mrf.mxu0
        %v1027 = vadd.f32 %v733, %v1026
        %1028 = vmatprep.mubr.bf16.mxu0 %v789
        %1029 = vmatmul.mubr.bf16.gmra.mxu0 %v788
        %v1030 = vpop.f32.mrf.mxu0
        %v1031 = vadd.f32 %v729, %v1030
        %v1032 = vpop.f32.mrf.mxu0
        %v1033 = vadd.f32 %v733, %v1032
        %v1034 = vpop.f32.mrf.mxu0
        %v1035 = vadd.f32 %v729, %v1034
        %v1036 = vpop.f32.mrf.mxu0
        %v1037 = vadd.f32 %v733, %v1036
        %1038 = vmatprep.mubr.bf16.mxu0 %v791
        %1039 = vmatmul.mubr.bf16.gmra.mxu0 %v790
        %v1040 = vpop.f32.mrf.mxu0
        %v1041 = vadd.f32 %v729, %v1040
        %v1042 = vpop.f32.mrf.mxu0
        %v1043 = vadd.f32 %v733, %v1042
        %v1044 = vpop.f32.mrf.mxu0
        %v1045 = vadd.f32 %v729, %v1044
        %v1046 = vpop.f32.mrf.mxu0
        %v1047 = vadd.f32 %v733, %v1046
        %1048 = vmatprep.mubr.bf16.mxu0 %v793
        %1049 = vmatmul.mubr.bf16.gmra.mxu0 %v792
        %v1050 = vpop.f32.mrf.mxu0
        %v1051 = vadd.f32 %v729, %v1050
        %v1052 = vpop.f32.mrf.mxu0
        %v1053 = vadd.f32 %v733, %v1052
        %v1054 = vpop.f32.mrf.mxu0
        %v1055 = vadd.f32 %v729, %v1054
        %v1056 = vpop.f32.mrf.mxu0
        %v1057 = vadd.f32 %v733, %v1056
        %1058 = vmatprep.mubr.bf16.mxu0 %v795
        %1059 = vmatmul.mubr.bf16.gmra.mxu0 %v794
        %v1060 = vpop.f32.mrf.mxu0
        %v1061 = vadd.f32 %v729, %v1060
        %v1062 = vpop.f32.mrf.mxu0
        %v1063 = vadd.f32 %v733, %v1062
        %v1064 = vpop.f32.mrf.mxu0
        %v1065 = vadd.f32 %v729, %v1064
        %v1066 = vpop.f32.mrf.mxu0
        %v1067 = vadd.f32 %v733, %v1066
        %1068 = vmatprep.mubr.bf16.mxu0 %v797
        %1069 = vmatmul.mubr.bf16.gmra.mxu0 %v796
        %v1070 = vpop.f32.mrf.mxu0
        %v1071 = vadd.f32 %v729, %v1070
        %v1072 = vpop.f32.mrf.mxu0
        %v1073 = vadd.f32 %v733, %v1072
        %v1074 = vpop.f32.mrf.mxu0
        %v1075 = vadd.f32 %v729, %v1074
        %v1076 = vpop.f32.mrf.mxu0
        %v1077 = vadd.f32 %v733, %v1076
        %1078 = vmatprep.mubr.bf16.mxu0 %v799
        %1079 = vmatmul.mubr.bf16.gmra.mxu0 %v798
        %v1080 = vpop.f32.mrf.mxu0
        %v1081 = vadd.f32 %v729, %v1080
        %v1082 = vpop.f32.mrf.mxu0
        %v1083 = vadd.f32 %v733, %v1082
        %v1084 = vpop.f32.mrf.mxu0
        %v1085 = vadd.f32 %v729, %v1084
        %v1086 = vpop.f32.mrf.mxu0
        %v1087 = vadd.f32 %v733, %v1086
        %1088 = vdwg.mxu0
        %v1089 = vmul.f32 %v1011, 0.0625
        %v1090 = vmul.f32 %v1013, 0.0625
        %v1091 = vmul.f32 %v1015, 0.0625
        %v1092 = vmul.f32 %v1017, 0.0625
        %v1093 = vmul.f32 %v1021, 0.0625
        %v1094 = vmul.f32 %v1023, 0.0625
        %v1095 = vmul.f32 %v1025, 0.0625
        %v1096 = vmul.f32 %v1027, 0.0625
        %v1097 = vmul.f32 %v1031, 0.0625
        %v1098 = vmul.f32 %v1033, 0.0625
        %v1099 = vmul.f32 %v1035, 0.0625
        %v1100 = vmul.f32 %v1037, 0.0625
        %v1101 = vmul.f32 %v1041, 0.0625
        %v1102 = vmul.f32 %v1043, 0.0625
        %v1103 = vmul.f32 %v1045, 0.0625
        %v1104 = vmul.f32 %v1047, 0.0625
        %v1105 = vmul.f32 %v1051, 0.0625
        %v1106 = vmul.f32 %v1053, 0.0625
        %v1107 = vmul.f32 %v1055, 0.0625
        %v1108 = vmul.f32 %v1057, 0.0625
        %v1109 = vmul.f32 %v1061, 0.0625
        %v1110 = vmul.f32 %v1063, 0.0625
        %v1111 = vmul.f32 %v1065, 0.0625
        %v1112 = vmul.f32 %v1067, 0.0625
        %v1113 = vmul.f32 %v1071, 0.0625
        %v1114 = vmul.f32 %v1073, 0.0625
        %v1115 = vmul.f32 %v1075, 0.0625
        %v1116 = vmul.f32 %v1077, 0.0625
        %v1117 = vmul.f32 %v1081, 0.0625
        %v1118 = vmul.f32 %v1083, 0.0625
        %v1119 = vmul.f32 %v1085, 0.0625
        %v1120 = vmul.f32 %v1087, 0.0625
        %v1121 = vpack.c.bf16 %v1091, %v1089
        %v1122 = vpack.c.bf16 %v1092, %v1090
        %v1123 = vpack.c.bf16 %v1095, %v1093
        %v1124 = vpack.c.bf16 %v1096, %v1094
        %v1125 = vpack.c.bf16 %v1099, %v1097
        %v1126 = vpack.c.bf16 %v1100, %v1098
        %v1127 = vpack.c.bf16 %v1103, %v1101
        %v1128 = vpack.c.bf16 %v1104, %v1102
        %v1129 = vpack.c.bf16 %v1107, %v1105
        %v1130 = vpack.c.bf16 %v1108, %v1106
        %v1131 = vpack.c.bf16 %v1111, %v1109
        %v1132 = vpack.c.bf16 %v1112, %v1110
        %v1133 = vpack.c.bf16 %v1115, %v1113
        %v1134 = vpack.c.bf16 %v1116, %v1114
        %v1135 = vpack.c.bf16 %v1119, %v1117
        %v1136 = vpack.c.bf16 %v1120, %v1118
        %v1137 = vld [vmem:[%s577] sm:$0xff]
        %v1138 = vld [vmem:[%s577 + $0x8] sm:$0xff]
        %v1139 = vld [vmem:[%s577 + $0x10] sm:$0xff]
        %v1140 = vld [vmem:[%s577 + $0x18] sm:$0xff]
        %v1141 = vld [vmem:[%s577 + $0x20] sm:$0xff]
        %v1142 = vld [vmem:[%s577 + $0x28] sm:$0xff]
        %v1143 = vld [vmem:[%s577 + $0x30] sm:$0xff]
        %v1144 = vld [vmem:[%s577 + $0x38] sm:$0xff]
        %v1145 = vld [vmem:[%s577 + $0x40] sm:$0xff]
        %v1146 = vld [vmem:[%s577 + $0x48] sm:$0xff]
        %v1147 = vld [vmem:[%s577 + $0x50] sm:$0xff]
        %v1148 = vld [vmem:[%s577 + $0x58] sm:$0xff]
        %v1149 = vld [vmem:[%s577 + $0x60] sm:$0xff]
        %v1150 = vld [vmem:[%s577 + $0x68] sm:$0xff]
        %v1151 = vld [vmem:[%s577 + $0x70] sm:$0xff]
        %v1152 = vld [vmem:[%s577 + $0x78] sm:$0xff]
        %v1153 = vld [vmem:[#allocation11] sm:$0xff]
        %v1154 = vld [vmem:[#allocation11 + $0x8] sm:$0xff]
        %v1155 = vld [vmem:[#allocation11 + $0x10] sm:$0xff]
        %v1156 = vld [vmem:[#allocation11 + $0x18] sm:$0xff]
        %v1157 = vld [vmem:[#allocation11 + $0x20] sm:$0xff]
        %v1158 = vld [vmem:[#allocation11 + $0x28] sm:$0xff]
        %v1159 = vld [vmem:[#allocation11 + $0x30] sm:$0xff]
        %v1160 = vld [vmem:[#allocation11 + $0x38] sm:$0xff]
        %v1161 = vld [vmem:[#allocation11 + $0x40] sm:$0xff]
        %v1162 = vld [vmem:[#allocation11 + $0x48] sm:$0xff]
        %v1163 = vld [vmem:[#allocation11 + $0x50] sm:$0xff]
        %v1164 = vld [vmem:[#allocation11 + $0x58] sm:$0xff]
        %v1165 = vld [vmem:[#allocation11 + $0x60] sm:$0xff]
        %v1166 = vld [vmem:[#allocation11 + $0x68] sm:$0xff]
        %v1167 = vld [vmem:[#allocation11 + $0x70] sm:$0xff]
        %v1168 = vld [vmem:[#allocation11 + $0x78] sm:$0xff]
        %v1169 = vld [vmem:[#allocation11 + $0x80] sm:$0xff]
        %v1170 = vld [vmem:[#allocation11 + $0x88] sm:$0xff]
        %v1171 = vld [vmem:[#allocation11 + $0x90] sm:$0xff]
        %v1172 = vld [vmem:[#allocation11 + $0x98] sm:$0xff]
        %v1173 = vld [vmem:[#allocation11 + $0xa0] sm:$0xff]
        %v1174 = vld [vmem:[#allocation11 + $0xa8] sm:$0xff]
        %v1175 = vld [vmem:[#allocation11 + $0xb0] sm:$0xff]
        %v1176 = vld [vmem:[#allocation11 + $0xb8] sm:$0xff]
        %v1177 = vld [vmem:[#allocation11 + $0xc0] sm:$0xff]
        %v1178 = vld [vmem:[#allocation11 + $0xc8] sm:$0xff]
        %v1179 = vld [vmem:[#allocation11 + $0xd0] sm:$0xff]
        %v1180 = vld [vmem:[#allocation11 + $0xd8] sm:$0xff]
        %v1181 = vld [vmem:[#allocation11 + $0xe0] sm:$0xff]
        %v1182 = vld [vmem:[#allocation11 + $0xe8] sm:$0xff]
        %v1183 = vld [vmem:[#allocation11 + $0xf0] sm:$0xff]
        %v1184 = vld [vmem:[#allocation11 + $0xf8] sm:$0xff]
        %v1185 = vld [vmem:[%s9] sm:$0x3]
        %v1187 = vlaneseq
        %v1188 = vshrl.u32 %v1187, 7
        %v1189 = vsub.s32 0, %v1188
        %v1190 = vrot.slane %v1185, %v1189
        %v1191 = vlaneseq
        %v1192 = vshrl.u32 %v1191, 7
        %v1193 = vsub.s32 1, %v1192
        %v1194 = vrot.slane %v1185, %v1193
        %v1213 = vunpack.c.l.b16 %v1137
        %v1214 = vunpack.c.h.b16 %v1137
        %v1215 = vunpack.c.l.b16 %v1138
        %v1216 = vunpack.c.h.b16 %v1138
        %v1217 = vunpack.c.l.b16 %v1139
        %v1218 = vunpack.c.h.b16 %v1139
        %v1219 = vunpack.c.l.b16 %v1140
        %v1220 = vunpack.c.h.b16 %v1140
        %v1221 = vunpack.c.l.b16 %v1141
        %v1222 = vunpack.c.h.b16 %v1141
        %v1223 = vunpack.c.l.b16 %v1142
        %v1224 = vunpack.c.h.b16 %v1142
        %v1225 = vunpack.c.l.b16 %v1143
        %v1226 = vunpack.c.h.b16 %v1143
        %v1227 = vunpack.c.l.b16 %v1144
        %v1228 = vunpack.c.h.b16 %v1144
        %v1229 = vunpack.c.l.b16 %v1145
        %v1230 = vunpack.c.h.b16 %v1145
        %v1231 = vunpack.c.l.b16 %v1146
        %v1232 = vunpack.c.h.b16 %v1146
        %v1233 = vunpack.c.l.b16 %v1147
        %v1234 = vunpack.c.h.b16 %v1147
        %v1235 = vunpack.c.l.b16 %v1148
        %v1236 = vunpack.c.h.b16 %v1148
        %v1237 = vunpack.c.l.b16 %v1149
        %v1238 = vunpack.c.h.b16 %v1149
        %v1239 = vunpack.c.l.b16 %v1150
        %v1240 = vunpack.c.h.b16 %v1150
        %v1241 = vunpack.c.l.b16 %v1151
        %v1242 = vunpack.c.h.b16 %v1151
        %v1243 = vunpack.c.l.b16 %v1152
        %v1244 = vunpack.c.h.b16 %v1152
        %v1245 = vpack.c.b16 %v1215, %v1213
        %v1246 = vpack.c.b16 %v1216, %v1214
        %v1247 = vpack.c.b16 %v1219, %v1217
        %v1248 = vpack.c.b16 %v1220, %v1218
        %v1249 = vpack.c.b16 %v1223, %v1221
        %v1250 = vpack.c.b16 %v1224, %v1222
        %v1251 = vpack.c.b16 %v1227, %v1225
        %v1252 = vpack.c.b16 %v1228, %v1226
        %v1253 = vpack.c.b16 %v1231, %v1229
        %v1254 = vpack.c.b16 %v1232, %v1230
        %v1255 = vpack.c.b16 %v1235, %v1233
        %v1256 = vpack.c.b16 %v1236, %v1234
        %v1257 = vpack.c.b16 %v1239, %v1237
        %v1258 = vpack.c.b16 %v1240, %v1238
        %v1259 = vpack.c.b16 %v1243, %v1241
        %v1260 = vpack.c.b16 %v1244, %v1242
        %v1309 = vunpack.c.l.b16 %v1153
        %v1310 = vunpack.c.h.b16 %v1153
        %v1311 = vunpack.c.l.b16 %v1154
        %v1312 = vunpack.c.h.b16 %v1154
        %v1313 = vunpack.c.l.b16 %v1155
        %v1314 = vunpack.c.h.b16 %v1155
        %v1315 = vunpack.c.l.b16 %v1156
        %v1316 = vunpack.c.h.b16 %v1156
        %v1317 = vunpack.c.l.b16 %v1157
        %v1318 = vunpack.c.h.b16 %v1157
        %v1319 = vunpack.c.l.b16 %v1158
        %v1320 = vunpack.c.h.b16 %v1158
        %v1321 = vunpack.c.l.b16 %v1159
        %v1322 = vunpack.c.h.b16 %v1159
        %v1323 = vunpack.c.l.b16 %v1160
        %v1324 = vunpack.c.h.b16 %v1160
        %v1325 = vunpack.c.l.b16 %v1161
        %v1326 = vunpack.c.h.b16 %v1161
        %v1327 = vunpack.c.l.b16 %v1162
        %v1328 = vunpack.c.h.b16 %v1162
        %v1329 = vunpack.c.l.b16 %v1163
        %v1330 = vunpack.c.h.b16 %v1163
        %v1331 = vunpack.c.l.b16 %v1164
        %v1332 = vunpack.c.h.b16 %v1164
        %v1333 = vunpack.c.l.b16 %v1165
        %v1334 = vunpack.c.h.b16 %v1165
        %v1335 = vunpack.c.l.b16 %v1166
        %v1336 = vunpack.c.h.b16 %v1166
        %v1337 = vunpack.c.l.b16 %v1167
        %v1338 = vunpack.c.h.b16 %v1167
        %v1339 = vunpack.c.l.b16 %v1168
        %v1340 = vunpack.c.h.b16 %v1168
        %v1341 = vunpack.c.l.b16 %v1169
        %v1342 = vunpack.c.h.b16 %v1169
        %v1343 = vunpack.c.l.b16 %v1170
        %v1344 = vunpack.c.h.b16 %v1170
        %v1345 = vunpack.c.l.b16 %v1171
        %v1346 = vunpack.c.h.b16 %v1171
        %v1347 = vunpack.c.l.b16 %v1172
        %v1348 = vunpack.c.h.b16 %v1172
        %v1349 = vunpack.c.l.b16 %v1173
        %v1350 = vunpack.c.h.b16 %v1173
        %v1351 = vunpack.c.l.b16 %v1174
        %v1352 = vunpack.c.h.b16 %v1174
        %v1353 = vunpack.c.l.b16 %v1175
        %v1354 = vunpack.c.h.b16 %v1175
        %v1355 = vunpack.c.l.b16 %v1176
        %v1356 = vunpack.c.h.b16 %v1176
        %v1357 = vunpack.c.l.b16 %v1177
        %v1358 = vunpack.c.h.b16 %v1177
        %v1359 = vunpack.c.l.b16 %v1178
        %v1360 = vunpack.c.h.b16 %v1178
        %v1361 = vunpack.c.l.b16 %v1179
        %v1362 = vunpack.c.h.b16 %v1179
        %v1363 = vunpack.c.l.b16 %v1180
        %v1364 = vunpack.c.h.b16 %v1180
        %v1365 = vunpack.c.l.b16 %v1181
        %v1366 = vunpack.c.h.b16 %v1181
        %v1367 = vunpack.c.l.b16 %v1182
        %v1368 = vunpack.c.h.b16 %v1182
        %v1369 = vunpack.c.l.b16 %v1183
        %v1370 = vunpack.c.h.b16 %v1183
        %v1371 = vunpack.c.l.b16 %v1184
        %v1372 = vunpack.c.h.b16 %v1184
        %v1373 = vpack.c.b16 %v1311, %v1309
        %v1374 = vpack.c.b16 %v1312, %v1310
        %v1375 = vpack.c.b16 %v1315, %v1313
        %v1376 = vpack.c.b16 %v1316, %v1314
        %v1377 = vpack.c.b16 %v1319, %v1317
        %v1378 = vpack.c.b16 %v1320, %v1318
        %v1379 = vpack.c.b16 %v1323, %v1321
        %v1380 = vpack.c.b16 %v1324, %v1322
        %v1381 = vpack.c.b16 %v1327, %v1325
        %v1382 = vpack.c.b16 %v1328, %v1326
        %v1383 = vpack.c.b16 %v1331, %v1329
        %v1384 = vpack.c.b16 %v1332, %v1330
        %v1385 = vpack.c.b16 %v1335, %v1333
        %v1386 = vpack.c.b16 %v1336, %v1334
        %v1387 = vpack.c.b16 %v1339, %v1337
        %v1388 = vpack.c.b16 %v1340, %v1338
        %v1389 = vpack.c.b16 %v1343, %v1341
        %v1390 = vpack.c.b16 %v1344, %v1342
        %v1391 = vpack.c.b16 %v1347, %v1345
        %v1392 = vpack.c.b16 %v1348, %v1346
        %v1393 = vpack.c.b16 %v1351, %v1349
        %v1394 = vpack.c.b16 %v1352, %v1350
        %v1395 = vpack.c.b16 %v1355, %v1353
        %v1396 = vpack.c.b16 %v1356, %v1354
        %v1397 = vpack.c.b16 %v1359, %v1357
        %v1398 = vpack.c.b16 %v1360, %v1358
        %v1399 = vpack.c.b16 %v1363, %v1361
        %v1400 = vpack.c.b16 %v1364, %v1362
        %v1401 = vpack.c.b16 %v1367, %v1365
        %v1402 = vpack.c.b16 %v1368, %v1366
        %v1403 = vpack.c.b16 %v1371, %v1369
        %v1404 = vpack.c.b16 %v1372, %v1370
        %1437 = vmatprep.subr.bf16.mxu0 %v1388
        %1438 = vmatpush1.bf16.msra.mxu0 %v1387
        %1439 = vmatprep.subr.bf16.mxu0 %v1386
        %1440 = vmatpush1.bf16.msra.mxu0 %v1385
        %1441 = vmatprep.subr.bf16.mxu0 %v1384
        %1442 = vmatpush1.bf16.msra.mxu0 %v1383
        %1443 = vmatprep.subr.bf16.mxu0 %v1382
        %1444 = vmatpush1.bf16.msra.mxu0 %v1381
        %1445 = vmatprep.subr.bf16.mxu0 %v1380
        %1446 = vmatpush1.bf16.msra.mxu0 %v1379
        %1447 = vmatprep.subr.bf16.mxu0 %v1378
        %1448 = vmatpush1.bf16.msra.mxu0 %v1377
        %1449 = vmatprep.subr.bf16.mxu0 %v1376
        %1450 = vmatpush1.bf16.msra.mxu0 %v1375
        %1451 = vmatprep.subr.bf16.mxu0 %v1374
        %1452 = vmatpush1.bf16.msra.mxu0 %v1373
        %1453 = vmatprep.subr.bf16.mxu0 %v1404
        %1454 = vmatpush2.bf16.msra.mxu0 %v1403
        %1455 = vmatprep.subr.bf16.mxu0 %v1402
        %1456 = vmatpush2.bf16.msra.mxu0 %v1401
        %1457 = vmatprep.subr.bf16.mxu0 %v1400
        %1458 = vmatpush2.bf16.msra.mxu0 %v1399
        %1459 = vmatprep.subr.bf16.mxu0 %v1398
        %1460 = vmatpush2.bf16.msra.mxu0 %v1397
        %1461 = vmatprep.subr.bf16.mxu0 %v1396
        %1462 = vmatpush2.bf16.msra.mxu0 %v1395
        %1463 = vmatprep.subr.bf16.mxu0 %v1394
        %1464 = vmatpush2.bf16.msra.mxu0 %v1393
        %1465 = vmatprep.subr.bf16.mxu0 %v1392
        %1466 = vmatpush2.bf16.msra.mxu0 %v1391
        %1467 = vmatprep.subr.bf16.mxu0 %v1390
        %1468 = vmatpush2.bf16.msra.mxu0 %v1389
        %1469 = vmatprep.mubr.bf16.mxu0 %v1246
        %1470 = vmatmul.mubr.bf16.gmra.mxu0 %v1245
        %v1471 = vpop.f32.mrf.mxu0
        %v1472 = vadd.f32 %v1190, %v1471
        %v1473 = vpop.f32.mrf.mxu0
        %v1474 = vadd.f32 %v1194, %v1473
        %v1475 = vpop.f32.mrf.mxu0
        %v1476 = vadd.f32 %v1190, %v1475
        %v1477 = vpop.f32.mrf.mxu0
        %v1478 = vadd.f32 %v1194, %v1477
        %1479 = vmatprep.mubr.bf16.mxu0 %v1248
        %1480 = vmatmul.mubr.bf16.gmra.mxu0 %v1247
        %v1481 = vpop.f32.mrf.mxu0
        %v1482 = vadd.f32 %v1190, %v1481
        %v1483 = vpop.f32.mrf.mxu0
        %v1484 = vadd.f32 %v1194, %v1483
        %v1485 = vpop.f32.mrf.mxu0
        %v1486 = vadd.f32 %v1190, %v1485
        %v1487 = vpop.f32.mrf.mxu0
        %v1488 = vadd.f32 %v1194, %v1487
        %1489 = vmatprep.mubr.bf16.mxu0 %v1250
        %1490 = vmatmul.mubr.bf16.gmra.mxu0 %v1249
        %v1491 = vpop.f32.mrf.mxu0
        %v1492 = vadd.f32 %v1190, %v1491
        %v1493 = vpop.f32.mrf.mxu0
        %v1494 = vadd.f32 %v1194, %v1493
        %v1495 = vpop.f32.mrf.mxu0
        %v1496 = vadd.f32 %v1190, %v1495
        %v1497 = vpop.f32.mrf.mxu0
        %v1498 = vadd.f32 %v1194, %v1497
        %1499 = vmatprep.mubr.bf16.mxu0 %v1252
        %1500 = vmatmul.mubr.bf16.gmra.mxu0 %v1251
        %v1501 = vpop.f32.mrf.mxu0
        %v1502 = vadd.f32 %v1190, %v1501
        %v1503 = vpop.f32.mrf.mxu0
        %v1504 = vadd.f32 %v1194, %v1503
        %v1505 = vpop.f32.mrf.mxu0
        %v1506 = vadd.f32 %v1190, %v1505
        %v1507 = vpop.f32.mrf.mxu0
        %v1508 = vadd.f32 %v1194, %v1507
        %1509 = vmatprep.mubr.bf16.mxu0 %v1254
        %1510 = vmatmul.mubr.bf16.gmra.mxu0 %v1253
        %v1511 = vpop.f32.mrf.mxu0
        %v1512 = vadd.f32 %v1190, %v1511
        %v1513 = vpop.f32.mrf.mxu0
        %v1514 = vadd.f32 %v1194, %v1513
        %v1515 = vpop.f32.mrf.mxu0
        %v1516 = vadd.f32 %v1190, %v1515
        %v1517 = vpop.f32.mrf.mxu0
        %v1518 = vadd.f32 %v1194, %v1517
        %1519 = vmatprep.mubr.bf16.mxu0 %v1256
        %1520 = vmatmul.mubr.bf16.gmra.mxu0 %v1255
        %v1521 = vpop.f32.mrf.mxu0
        %v1522 = vadd.f32 %v1190, %v1521
        %v1523 = vpop.f32.mrf.mxu0
        %v1524 = vadd.f32 %v1194, %v1523
        %v1525 = vpop.f32.mrf.mxu0
        %v1526 = vadd.f32 %v1190, %v1525
        %v1527 = vpop.f32.mrf.mxu0
        %v1528 = vadd.f32 %v1194, %v1527
        %1529 = vmatprep.mubr.bf16.mxu0 %v1258
        %1530 = vmatmul.mubr.bf16.gmra.mxu0 %v1257
        %v1531 = vpop.f32.mrf.mxu0
        %v1532 = vadd.f32 %v1190, %v1531
        %v1533 = vpop.f32.mrf.mxu0
        %v1534 = vadd.f32 %v1194, %v1533
        %v1535 = vpop.f32.mrf.mxu0
        %v1536 = vadd.f32 %v1190, %v1535
        %v1537 = vpop.f32.mrf.mxu0
        %v1538 = vadd.f32 %v1194, %v1537
        %1539 = vmatprep.mubr.bf16.mxu0 %v1260
        %1540 = vmatmul.mubr.bf16.gmra.mxu0 %v1259
        %v1541 = vpop.f32.mrf.mxu0
        %v1542 = vadd.f32 %v1190, %v1541
        %v1543 = vpop.f32.mrf.mxu0
        %v1544 = vadd.f32 %v1194, %v1543
        %v1545 = vpop.f32.mrf.mxu0
        %v1546 = vadd.f32 %v1190, %v1545
        %v1547 = vpop.f32.mrf.mxu0
        %v1548 = vadd.f32 %v1194, %v1547
        %1549 = vdwg.mxu0
        %v1550 = vpack.c.bf16 %v1476, %v1472
        %v1551 = vpack.c.bf16 %v1478, %v1474
        %v1552 = vpack.c.bf16 %v1486, %v1482
        %v1553 = vpack.c.bf16 %v1488, %v1484
        %v1554 = vpack.c.bf16 %v1496, %v1492
        %v1555 = vpack.c.bf16 %v1498, %v1494
        %v1556 = vpack.c.bf16 %v1506, %v1502
        %v1557 = vpack.c.bf16 %v1508, %v1504
        %v1558 = vpack.c.bf16 %v1516, %v1512
        %v1559 = vpack.c.bf16 %v1518, %v1514
        %v1560 = vpack.c.bf16 %v1526, %v1522
        %v1561 = vpack.c.bf16 %v1528, %v1524
        %v1562 = vpack.c.bf16 %v1536, %v1532
        %v1563 = vpack.c.bf16 %v1538, %v1534
        %v1564 = vpack.c.bf16 %v1546, %v1542
        %v1565 = vpack.c.bf16 %v1548, %v1544
        %v1566 = vld [vmem:[%s586] sm:$0xff]
        %v1567 = vld [vmem:[%s586 + $0x8] sm:$0xff]
        %v1568 = vld [vmem:[%s586 + $0x10] sm:$0xff]
        %v1569 = vld [vmem:[%s586 + $0x18] sm:$0xff]
        %v1570 = vld [vmem:[%s586 + $0x20] sm:$0xff]
        %v1571 = vld [vmem:[%s586 + $0x28] sm:$0xff]
        %v1572 = vld [vmem:[%s586 + $0x30] sm:$0xff]
        %v1573 = vld [vmem:[%s586 + $0x38] sm:$0xff]
        %v1574 = vld [vmem:[%s586 + $0x40] sm:$0xff]
        %v1575 = vld [vmem:[%s586 + $0x48] sm:$0xff]
        %v1576 = vld [vmem:[%s586 + $0x50] sm:$0xff]
        %v1577 = vld [vmem:[%s586 + $0x58] sm:$0xff]
        %v1578 = vld [vmem:[%s586 + $0x60] sm:$0xff]
        %v1579 = vld [vmem:[%s586 + $0x68] sm:$0xff]
        %v1580 = vld [vmem:[%s586 + $0x70] sm:$0xff]
        %v1581 = vld [vmem:[%s586 + $0x78] sm:$0xff]
        %v1582 = vld [vmem:[#allocation13] sm:$0xff]
        %v1583 = vld [vmem:[#allocation13 + $0x8] sm:$0xff]
        %v1584 = vld [vmem:[#allocation13 + $0x10] sm:$0xff]
        %v1585 = vld [vmem:[#allocation13 + $0x18] sm:$0xff]
        %v1586 = vld [vmem:[#allocation13 + $0x20] sm:$0xff]
        %v1587 = vld [vmem:[#allocation13 + $0x28] sm:$0xff]
        %v1588 = vld [vmem:[#allocation13 + $0x30] sm:$0xff]
        %v1589 = vld [vmem:[#allocation13 + $0x38] sm:$0xff]
        %v1590 = vld [vmem:[#allocation13 + $0x40] sm:$0xff]
        %v1591 = vld [vmem:[#allocation13 + $0x48] sm:$0xff]
        %v1592 = vld [vmem:[#allocation13 + $0x50] sm:$0xff]
        %v1593 = vld [vmem:[#allocation13 + $0x58] sm:$0xff]
        %v1594 = vld [vmem:[#allocation13 + $0x60] sm:$0xff]
        %v1595 = vld [vmem:[#allocation13 + $0x68] sm:$0xff]
        %v1596 = vld [vmem:[#allocation13 + $0x70] sm:$0xff]
        %v1597 = vld [vmem:[#allocation13 + $0x78] sm:$0xff]
        %v1598 = vld [vmem:[#allocation13 + $0x80] sm:$0xff]
        %v1599 = vld [vmem:[#allocation13 + $0x88] sm:$0xff]
        %v1600 = vld [vmem:[#allocation13 + $0x90] sm:$0xff]
        %v1601 = vld [vmem:[#allocation13 + $0x98] sm:$0xff]
        %v1602 = vld [vmem:[#allocation13 + $0xa0] sm:$0xff]
        %v1603 = vld [vmem:[#allocation13 + $0xa8] sm:$0xff]
        %v1604 = vld [vmem:[#allocation13 + $0xb0] sm:$0xff]
        %v1605 = vld [vmem:[#allocation13 + $0xb8] sm:$0xff]
        %v1606 = vld [vmem:[#allocation13 + $0xc0] sm:$0xff]
        %v1607 = vld [vmem:[#allocation13 + $0xc8] sm:$0xff]
        %v1608 = vld [vmem:[#allocation13 + $0xd0] sm:$0xff]
        %v1609 = vld [vmem:[#allocation13 + $0xd8] sm:$0xff]
        %v1610 = vld [vmem:[#allocation13 + $0xe0] sm:$0xff]
        %v1611 = vld [vmem:[#allocation13 + $0xe8] sm:$0xff]
        %v1612 = vld [vmem:[#allocation13 + $0xf0] sm:$0xff]
        %v1613 = vld [vmem:[#allocation13 + $0xf8] sm:$0xff]
        %v1614 = vld [vmem:[%s10] sm:$0x3]
        %v1616 = vlaneseq
        %v1617 = vshrl.u32 %v1616, 7
        %v1618 = vsub.s32 0, %v1617
        %v1619 = vrot.slane %v1614, %v1618
        %v1620 = vlaneseq
        %v1621 = vshrl.u32 %v1620, 7
        %v1622 = vsub.s32 1, %v1621
        %v1623 = vrot.slane %v1614, %v1622
        %v1642 = vunpack.c.l.b16 %v1566
        %v1643 = vunpack.c.h.b16 %v1566
        %v1644 = vunpack.c.l.b16 %v1567
        %v1645 = vunpack.c.h.b16 %v1567
        %v1646 = vunpack.c.l.b16 %v1568
        %v1647 = vunpack.c.h.b16 %v1568
        %v1648 = vunpack.c.l.b16 %v1569
        %v1649 = vunpack.c.h.b16 %v1569
        %v1650 = vunpack.c.l.b16 %v1570
        %v1651 = vunpack.c.h.b16 %v1570
        %v1652 = vunpack.c.l.b16 %v1571
        %v1653 = vunpack.c.h.b16 %v1571
        %v1654 = vunpack.c.l.b16 %v1572
        %v1655 = vunpack.c.h.b16 %v1572
        %v1656 = vunpack.c.l.b16 %v1573
        %v1657 = vunpack.c.h.b16 %v1573
        %v1658 = vunpack.c.l.b16 %v1574
        %v1659 = vunpack.c.h.b16 %v1574
        %v1660 = vunpack.c.l.b16 %v1575
        %v1661 = vunpack.c.h.b16 %v1575
        %v1662 = vunpack.c.l.b16 %v1576
        %v1663 = vunpack.c.h.b16 %v1576
        %v1664 = vunpack.c.l.b16 %v1577
        %v1665 = vunpack.c.h.b16 %v1577
        %v1666 = vunpack.c.l.b16 %v1578
        %v1667 = vunpack.c.h.b16 %v1578
        %v1668 = vunpack.c.l.b16 %v1579
        %v1669 = vunpack.c.h.b16 %v1579
        %v1670 = vunpack.c.l.b16 %v1580
        %v1671 = vunpack.c.h.b16 %v1580
        %v1672 = vunpack.c.l.b16 %v1581
        %v1673 = vunpack.c.h.b16 %v1581
        %v1674 = vpack.c.b16 %v1644, %v1642
        %v1675 = vpack.c.b16 %v1645, %v1643
        %v1676 = vpack.c.b16 %v1648, %v1646
        %v1677 = vpack.c.b16 %v1649, %v1647
        %v1678 = vpack.c.b16 %v1652, %v1650
        %v1679 = vpack.c.b16 %v1653, %v1651
        %v1680 = vpack.c.b16 %v1656, %v1654
        %v1681 = vpack.c.b16 %v1657, %v1655
        %v1682 = vpack.c.b16 %v1660, %v1658
        %v1683 = vpack.c.b16 %v1661, %v1659
        %v1684 = vpack.c.b16 %v1664, %v1662
        %v1685 = vpack.c.b16 %v1665, %v1663
        %v1686 = vpack.c.b16 %v1668, %v1666
        %v1687 = vpack.c.b16 %v1669, %v1667
        %v1688 = vpack.c.b16 %v1672, %v1670
        %v1689 = vpack.c.b16 %v1673, %v1671
        %v1738 = vunpack.c.l.b16 %v1582
        %v1739 = vunpack.c.h.b16 %v1582
        %v1740 = vunpack.c.l.b16 %v1583
        %v1741 = vunpack.c.h.b16 %v1583
        %v1742 = vunpack.c.l.b16 %v1584
        %v1743 = vunpack.c.h.b16 %v1584
        %v1744 = vunpack.c.l.b16 %v1585
        %v1745 = vunpack.c.h.b16 %v1585
        %v1746 = vunpack.c.l.b16 %v1586
        %v1747 = vunpack.c.h.b16 %v1586
        %v1748 = vunpack.c.l.b16 %v1587
        %v1749 = vunpack.c.h.b16 %v1587
        %v1750 = vunpack.c.l.b16 %v1588
        %v1751 = vunpack.c.h.b16 %v1588
        %v1752 = vunpack.c.l.b16 %v1589
        %v1753 = vunpack.c.h.b16 %v1589
        %v1754 = vunpack.c.l.b16 %v1590
        %v1755 = vunpack.c.h.b16 %v1590
        %v1756 = vunpack.c.l.b16 %v1591
        %v1757 = vunpack.c.h.b16 %v1591
        %v1758 = vunpack.c.l.b16 %v1592
        %v1759 = vunpack.c.h.b16 %v1592
        %v1760 = vunpack.c.l.b16 %v1593
        %v1761 = vunpack.c.h.b16 %v1593
        %v1762 = vunpack.c.l.b16 %v1594
        %v1763 = vunpack.c.h.b16 %v1594
        %v1764 = vunpack.c.l.b16 %v1595
        %v1765 = vunpack.c.h.b16 %v1595
        %v1766 = vunpack.c.l.b16 %v1596
        %v1767 = vunpack.c.h.b16 %v1596
        %v1768 = vunpack.c.l.b16 %v1597
        %v1769 = vunpack.c.h.b16 %v1597
        %v1770 = vunpack.c.l.b16 %v1598
        %v1771 = vunpack.c.h.b16 %v1598
        %v1772 = vunpack.c.l.b16 %v1599
        %v1773 = vunpack.c.h.b16 %v1599
        %v1774 = vunpack.c.l.b16 %v1600
        %v1775 = vunpack.c.h.b16 %v1600
        %v1776 = vunpack.c.l.b16 %v1601
        %v1777 = vunpack.c.h.b16 %v1601
        %v1778 = vunpack.c.l.b16 %v1602
        %v1779 = vunpack.c.h.b16 %v1602
        %v1780 = vunpack.c.l.b16 %v1603
        %v1781 = vunpack.c.h.b16 %v1603
        %v1782 = vunpack.c.l.b16 %v1604
        %v1783 = vunpack.c.h.b16 %v1604
        %v1784 = vunpack.c.l.b16 %v1605
        %v1785 = vunpack.c.h.b16 %v1605
        %v1786 = vunpack.c.l.b16 %v1606
        %v1787 = vunpack.c.h.b16 %v1606
        %v1788 = vunpack.c.l.b16 %v1607
        %v1789 = vunpack.c.h.b16 %v1607
        %v1790 = vunpack.c.l.b16 %v1608
        %v1791 = vunpack.c.h.b16 %v1608
        %v1792 = vunpack.c.l.b16 %v1609
        %v1793 = vunpack.c.h.b16 %v1609
        %v1794 = vunpack.c.l.b16 %v1610
        %v1795 = vunpack.c.h.b16 %v1610
        %v1796 = vunpack.c.l.b16 %v1611
        %v1797 = vunpack.c.h.b16 %v1611
        %v1798 = vunpack.c.l.b16 %v1612
        %v1799 = vunpack.c.h.b16 %v1612
        %v1800 = vunpack.c.l.b16 %v1613
        %v1801 = vunpack.c.h.b16 %v1613
        %v1802 = vpack.c.b16 %v1740, %v1738
        %v1803 = vpack.c.b16 %v1741, %v1739
        %v1804 = vpack.c.b16 %v1744, %v1742
        %v1805 = vpack.c.b16 %v1745, %v1743
        %v1806 = vpack.c.b16 %v1748, %v1746
        %v1807 = vpack.c.b16 %v1749, %v1747
        %v1808 = vpack.c.b16 %v1752, %v1750
        %v1809 = vpack.c.b16 %v1753, %v1751
        %v1810 = vpack.c.b16 %v1756, %v1754
        %v1811 = vpack.c.b16 %v1757, %v1755
        %v1812 = vpack.c.b16 %v1760, %v1758
        %v1813 = vpack.c.b16 %v1761, %v1759
        %v1814 = vpack.c.b16 %v1764, %v1762
        %v1815 = vpack.c.b16 %v1765, %v1763
        %v1816 = vpack.c.b16 %v1768, %v1766
        %v1817 = vpack.c.b16 %v1769, %v1767
        %v1818 = vpack.c.b16 %v1772, %v1770
        %v1819 = vpack.c.b16 %v1773, %v1771
        %v1820 = vpack.c.b16 %v1776, %v1774
        %v1821 = vpack.c.b16 %v1777, %v1775
        %v1822 = vpack.c.b16 %v1780, %v1778
        %v1823 = vpack.c.b16 %v1781, %v1779
        %v1824 = vpack.c.b16 %v1784, %v1782
        %v1825 = vpack.c.b16 %v1785, %v1783
        %v1826 = vpack.c.b16 %v1788, %v1786
        %v1827 = vpack.c.b16 %v1789, %v1787
        %v1828 = vpack.c.b16 %v1792, %v1790
        %v1829 = vpack.c.b16 %v1793, %v1791
        %v1830 = vpack.c.b16 %v1796, %v1794
        %v1831 = vpack.c.b16 %v1797, %v1795
        %v1832 = vpack.c.b16 %v1800, %v1798
        %v1833 = vpack.c.b16 %v1801, %v1799
        %1866 = vmatprep.subr.bf16.mxu0 %v1817
        %1867 = vmatpush1.bf16.msra.mxu0 %v1816
        %1868 = vmatprep.subr.bf16.mxu0 %v1815
        %1869 = vmatpush1.bf16.msra.mxu0 %v1814
        %1870 = vmatprep.subr.bf16.mxu0 %v1813
        %1871 = vmatpush1.bf16.msra.mxu0 %v1812
        %1872 = vmatprep.subr.bf16.mxu0 %v1811
        %1873 = vmatpush1.bf16.msra.mxu0 %v1810
        %1874 = vmatprep.subr.bf16.mxu0 %v1809
        %1875 = vmatpush1.bf16.msra.mxu0 %v1808
        %1876 = vmatprep.subr.bf16.mxu0 %v1807
        %1877 = vmatpush1.bf16.msra.mxu0 %v1806
        %1878 = vmatprep.subr.bf16.mxu0 %v1805
        %1879 = vmatpush1.bf16.msra.mxu0 %v1804
        %1880 = vmatprep.subr.bf16.mxu0 %v1803
        %1881 = vmatpush1.bf16.msra.mxu0 %v1802
        %1882 = vmatprep.subr.bf16.mxu0 %v1833
        %1883 = vmatpush2.bf16.msra.mxu0 %v1832
        %1884 = vmatprep.subr.bf16.mxu0 %v1831
        %1885 = vmatpush2.bf16.msra.mxu0 %v1830
        %1886 = vmatprep.subr.bf16.mxu0 %v1829
        %1887 = vmatpush2.bf16.msra.mxu0 %v1828
        %1888 = vmatprep.subr.bf16.mxu0 %v1827
        %1889 = vmatpush2.bf16.msra.mxu0 %v1826
        %1890 = vmatprep.subr.bf16.mxu0 %v1825
        %1891 = vmatpush2.bf16.msra.mxu0 %v1824
        %1892 = vmatprep.subr.bf16.mxu0 %v1823
        %1893 = vmatpush2.bf16.msra.mxu0 %v1822
        %1894 = vmatprep.subr.bf16.mxu0 %v1821
        %1895 = vmatpush2.bf16.msra.mxu0 %v1820
        %1896 = vmatprep.subr.bf16.mxu0 %v1819
        %1897 = vmatpush2.bf16.msra.mxu0 %v1818
        %1898 = vmatprep.mubr.bf16.mxu0 %v1675
        %1899 = vmatmul.mubr.bf16.gmra.mxu0 %v1674
        %v1900 = vpop.f32.mrf.mxu0
        %v1901 = vadd.f32 %v1619, %v1900
        %v1902 = vpop.f32.mrf.mxu0
        %v1903 = vadd.f32 %v1623, %v1902
        %v1904 = vpop.f32.mrf.mxu0
        %v1905 = vadd.f32 %v1619, %v1904
        %v1906 = vpop.f32.mrf.mxu0
        %v1907 = vadd.f32 %v1623, %v1906
        %1908 = vmatprep.mubr.bf16.mxu0 %v1677
        %1909 = vmatmul.mubr.bf16.gmra.mxu0 %v1676
        %v1910 = vpop.f32.mrf.mxu0
        %v1911 = vadd.f32 %v1619, %v1910
        %v1912 = vpop.f32.mrf.mxu0
        %v1913 = vadd.f32 %v1623, %v1912
        %v1914 = vpop.f32.mrf.mxu0
        %v1915 = vadd.f32 %v1619, %v1914
        %v1916 = vpop.f32.mrf.mxu0
        %v1917 = vadd.f32 %v1623, %v1916
        %1918 = vmatprep.mubr.bf16.mxu0 %v1679
        %1919 = vmatmul.mubr.bf16.gmra.mxu0 %v1678
        %v1920 = vpop.f32.mrf.mxu0
        %v1921 = vadd.f32 %v1619, %v1920
        %v1922 = vpop.f32.mrf.mxu0
        %v1923 = vadd.f32 %v1623, %v1922
        %v1924 = vpop.f32.mrf.mxu0
        %v1925 = vadd.f32 %v1619, %v1924
        %v1926 = vpop.f32.mrf.mxu0
        %v1927 = vadd.f32 %v1623, %v1926
        %1928 = vmatprep.mubr.bf16.mxu0 %v1681
        %1929 = vmatmul.mubr.bf16.gmra.mxu0 %v1680
        %v1930 = vpop.f32.mrf.mxu0
        %v1931 = vadd.f32 %v1619, %v1930
        %v1932 = vpop.f32.mrf.mxu0
        %v1933 = vadd.f32 %v1623, %v1932
        %v1934 = vpop.f32.mrf.mxu0
        %v1935 = vadd.f32 %v1619, %v1934
        %v1936 = vpop.f32.mrf.mxu0
        %v1937 = vadd.f32 %v1623, %v1936
        %1938 = vmatprep.mubr.bf16.mxu0 %v1683
        %1939 = vmatmul.mubr.bf16.gmra.mxu0 %v1682
        %v1940 = vpop.f32.mrf.mxu0
        %v1941 = vadd.f32 %v1619, %v1940
        %v1942 = vpop.f32.mrf.mxu0
        %v1943 = vadd.f32 %v1623, %v1942
        %v1944 = vpop.f32.mrf.mxu0
        %v1945 = vadd.f32 %v1619, %v1944
        %v1946 = vpop.f32.mrf.mxu0
        %v1947 = vadd.f32 %v1623, %v1946
        %1948 = vmatprep.mubr.bf16.mxu0 %v1685
        %1949 = vmatmul.mubr.bf16.gmra.mxu0 %v1684
        %v1950 = vpop.f32.mrf.mxu0
        %v1951 = vadd.f32 %v1619, %v1950
        %v1952 = vpop.f32.mrf.mxu0
        %v1953 = vadd.f32 %v1623, %v1952
        %v1954 = vpop.f32.mrf.mxu0
        %v1955 = vadd.f32 %v1619, %v1954
        %v1956 = vpop.f32.mrf.mxu0
        %v1957 = vadd.f32 %v1623, %v1956
        %1958 = vmatprep.mubr.bf16.mxu0 %v1687
        %1959 = vmatmul.mubr.bf16.gmra.mxu0 %v1686
        %v1960 = vpop.f32.mrf.mxu0
        %v1961 = vadd.f32 %v1619, %v1960
        %v1962 = vpop.f32.mrf.mxu0
        %v1963 = vadd.f32 %v1623, %v1962
        %v1964 = vpop.f32.mrf.mxu0
        %v1965 = vadd.f32 %v1619, %v1964
        %v1966 = vpop.f32.mrf.mxu0
        %v1967 = vadd.f32 %v1623, %v1966
        %1968 = vmatprep.mubr.bf16.mxu0 %v1689
        %1969 = vmatmul.mubr.bf16.gmra.mxu0 %v1688
        %v1970 = vpop.f32.mrf.mxu0
        %v1971 = vadd.f32 %v1619, %v1970
        %v1972 = vpop.f32.mrf.mxu0
        %v1973 = vadd.f32 %v1623, %v1972
        %v1974 = vpop.f32.mrf.mxu0
        %v1975 = vadd.f32 %v1619, %v1974
        %v1976 = vpop.f32.mrf.mxu0
        %v1977 = vadd.f32 %v1623, %v1976
        %1978 = vdwg.mxu0
        %v1979 = vpack.c.bf16 %v1905, %v1901
        %v1980 = vpack.c.bf16 %v1907, %v1903
        %v1981 = vpack.c.bf16 %v1915, %v1911
        %v1982 = vpack.c.bf16 %v1917, %v1913
        %v1983 = vpack.c.bf16 %v1925, %v1921
        %v1984 = vpack.c.bf16 %v1927, %v1923
        %v1985 = vpack.c.bf16 %v1935, %v1931
        %v1986 = vpack.c.bf16 %v1937, %v1933
        %v1987 = vpack.c.bf16 %v1945, %v1941
        %v1988 = vpack.c.bf16 %v1947, %v1943
        %v1989 = vpack.c.bf16 %v1955, %v1951
        %v1990 = vpack.c.bf16 %v1957, %v1953
        %v1991 = vpack.c.bf16 %v1965, %v1961
        %v1992 = vpack.c.bf16 %v1967, %v1963
        %v1993 = vpack.c.bf16 %v1975, %v1971
        %v1994 = vpack.c.bf16 %v1977, %v1973
        %v1995 = vld [vmem:[%s595] sm:$0xff]
        %v1996 = vld [vmem:[%s595 + $0x8] sm:$0xff]
        %v1997 = vld [vmem:[%s595 + $0x10] sm:$0xff]
        %v1998 = vld [vmem:[%s595 + $0x18] sm:$0xff]
        %v1999 = vld [vmem:[%s595 + $0x20] sm:$0xff]
        %v2000 = vld [vmem:[%s595 + $0x28] sm:$0xff]
        %v2001 = vld [vmem:[%s595 + $0x30] sm:$0xff]
        %v2002 = vld [vmem:[%s595 + $0x38] sm:$0xff]
        %v2003 = vld [vmem:[%s595 + $0x40] sm:$0xff]
        %v2004 = vld [vmem:[%s595 + $0x48] sm:$0xff]
        %v2005 = vld [vmem:[%s595 + $0x50] sm:$0xff]
        %v2006 = vld [vmem:[%s595 + $0x58] sm:$0xff]
        %v2007 = vld [vmem:[%s595 + $0x60] sm:$0xff]
        %v2008 = vld [vmem:[%s595 + $0x68] sm:$0xff]
        %v2009 = vld [vmem:[%s595 + $0x70] sm:$0xff]
        %v2010 = vld [vmem:[%s595 + $0x78] sm:$0xff]
        %v2011 = vld [vmem:[#allocation14] sm:$0xff]
        %v2012 = vld [vmem:[#allocation14 + $0x8] sm:$0xff]
        %v2013 = vld [vmem:[#allocation14 + $0x10] sm:$0xff]
        %v2014 = vld [vmem:[#allocation14 + $0x18] sm:$0xff]
        %v2015 = vld [vmem:[#allocation14 + $0x20] sm:$0xff]
        %v2016 = vld [vmem:[#allocation14 + $0x28] sm:$0xff]
        %v2017 = vld [vmem:[#allocation14 + $0x30] sm:$0xff]
        %v2018 = vld [vmem:[#allocation14 + $0x38] sm:$0xff]
        %v2019 = vld [vmem:[#allocation14 + $0x40] sm:$0xff]
        %v2020 = vld [vmem:[#allocation14 + $0x48] sm:$0xff]
        %v2021 = vld [vmem:[#allocation14 + $0x50] sm:$0xff]
        %v2022 = vld [vmem:[#allocation14 + $0x58] sm:$0xff]
        %v2023 = vld [vmem:[#allocation14 + $0x60] sm:$0xff]
        %v2024 = vld [vmem:[#allocation14 + $0x68] sm:$0xff]
        %v2025 = vld [vmem:[#allocation14 + $0x70] sm:$0xff]
        %v2026 = vld [vmem:[#allocation14 + $0x78] sm:$0xff]
        %v2027 = vld [vmem:[#allocation14 + $0x80] sm:$0xff]
        %v2028 = vld [vmem:[#allocation14 + $0x88] sm:$0xff]
        %v2029 = vld [vmem:[#allocation14 + $0x90] sm:$0xff]
        %v2030 = vld [vmem:[#allocation14 + $0x98] sm:$0xff]
        %v2031 = vld [vmem:[#allocation14 + $0xa0] sm:$0xff]
        %v2032 = vld [vmem:[#allocation14 + $0xa8] sm:$0xff]
        %v2033 = vld [vmem:[#allocation14 + $0xb0] sm:$0xff]
        %v2034 = vld [vmem:[#allocation14 + $0xb8] sm:$0xff]
        %v2035 = vld [vmem:[#allocation14 + $0xc0] sm:$0xff]
        %v2036 = vld [vmem:[#allocation14 + $0xc8] sm:$0xff]
        %v2037 = vld [vmem:[#allocation14 + $0xd0] sm:$0xff]
        %v2038 = vld [vmem:[#allocation14 + $0xd8] sm:$0xff]
        %v2039 = vld [vmem:[#allocation14 + $0xe0] sm:$0xff]
        %v2040 = vld [vmem:[#allocation14 + $0xe8] sm:$0xff]
        %v2041 = vld [vmem:[#allocation14 + $0xf0] sm:$0xff]
        %v2042 = vld [vmem:[#allocation14 + $0xf8] sm:$0xff]
        %v2059 = vunpack.c.l.b16 %v1995
        %v2060 = vunpack.c.h.b16 %v1995
        %v2061 = vunpack.c.l.b16 %v1996
        %v2062 = vunpack.c.h.b16 %v1996
        %v2063 = vunpack.c.l.b16 %v1997
        %v2064 = vunpack.c.h.b16 %v1997
        %v2065 = vunpack.c.l.b16 %v1998
        %v2066 = vunpack.c.h.b16 %v1998
        %v2067 = vunpack.c.l.b16 %v1999
        %v2068 = vunpack.c.h.b16 %v1999
        %v2069 = vunpack.c.l.b16 %v2000
        %v2070 = vunpack.c.h.b16 %v2000
        %v2071 = vunpack.c.l.b16 %v2001
        %v2072 = vunpack.c.h.b16 %v2001
        %v2073 = vunpack.c.l.b16 %v2002
        %v2074 = vunpack.c.h.b16 %v2002
        %v2075 = vunpack.c.l.b16 %v2003
        %v2076 = vunpack.c.h.b16 %v2003
        %v2077 = vunpack.c.l.b16 %v2004
        %v2078 = vunpack.c.h.b16 %v2004
        %v2079 = vunpack.c.l.b16 %v2005
        %v2080 = vunpack.c.h.b16 %v2005
        %v2081 = vunpack.c.l.b16 %v2006
        %v2082 = vunpack.c.h.b16 %v2006
        %v2083 = vunpack.c.l.b16 %v2007
        %v2084 = vunpack.c.h.b16 %v2007
        %v2085 = vunpack.c.l.b16 %v2008
        %v2086 = vunpack.c.h.b16 %v2008
        %v2087 = vunpack.c.l.b16 %v2009
        %v2088 = vunpack.c.h.b16 %v2009
        %v2089 = vunpack.c.l.b16 %v2010
        %v2090 = vunpack.c.h.b16 %v2010
        %v2091 = vpack.c.b16 %v2061, %v2059
        %v2092 = vpack.c.b16 %v2062, %v2060
        %v2093 = vpack.c.b16 %v2065, %v2063
        %v2094 = vpack.c.b16 %v2066, %v2064
        %v2095 = vpack.c.b16 %v2069, %v2067
        %v2096 = vpack.c.b16 %v2070, %v2068
        %v2097 = vpack.c.b16 %v2073, %v2071
        %v2098 = vpack.c.b16 %v2074, %v2072
        %v2099 = vpack.c.b16 %v2077, %v2075
        %v2100 = vpack.c.b16 %v2078, %v2076
        %v2101 = vpack.c.b16 %v2081, %v2079
        %v2102 = vpack.c.b16 %v2082, %v2080
        %v2103 = vpack.c.b16 %v2085, %v2083
        %v2104 = vpack.c.b16 %v2086, %v2084
        %v2105 = vpack.c.b16 %v2089, %v2087
        %v2106 = vpack.c.b16 %v2090, %v2088
        %v2155 = vunpack.c.l.b16 %v2011
        %v2156 = vunpack.c.h.b16 %v2011
        %v2157 = vunpack.c.l.b16 %v2012
        %v2158 = vunpack.c.h.b16 %v2012
        %v2159 = vunpack.c.l.b16 %v2013
        %v2160 = vunpack.c.h.b16 %v2013
        %v2161 = vunpack.c.l.b16 %v2014
        %v2162 = vunpack.c.h.b16 %v2014
        %v2163 = vunpack.c.l.b16 %v2015
        %v2164 = vunpack.c.h.b16 %v2015
        %v2165 = vunpack.c.l.b16 %v2016
        %v2166 = vunpack.c.h.b16 %v2016
        %v2167 = vunpack.c.l.b16 %v2017
        %v2168 = vunpack.c.h.b16 %v2017
        %v2169 = vunpack.c.l.b16 %v2018
        %v2170 = vunpack.c.h.b16 %v2018
        %v2171 = vunpack.c.l.b16 %v2019
        %v2172 = vunpack.c.h.b16 %v2019
        %v2173 = vunpack.c.l.b16 %v2020
        %v2174 = vunpack.c.h.b16 %v2020
        %v2175 = vunpack.c.l.b16 %v2021
        %v2176 = vunpack.c.h.b16 %v2021
        %v2177 = vunpack.c.l.b16 %v2022
        %v2178 = vunpack.c.h.b16 %v2022
        %v2179 = vunpack.c.l.b16 %v2023
        %v2180 = vunpack.c.h.b16 %v2023
        %v2181 = vunpack.c.l.b16 %v2024
        %v2182 = vunpack.c.h.b16 %v2024
        %v2183 = vunpack.c.l.b16 %v2025
        %v2184 = vunpack.c.h.b16 %v2025
        %v2185 = vunpack.c.l.b16 %v2026
        %v2186 = vunpack.c.h.b16 %v2026
        %v2187 = vunpack.c.l.b16 %v2027
        %v2188 = vunpack.c.h.b16 %v2027
        %v2189 = vunpack.c.l.b16 %v2028
        %v2190 = vunpack.c.h.b16 %v2028
        %v2191 = vunpack.c.l.b16 %v2029
        %v2192 = vunpack.c.h.b16 %v2029
        %v2193 = vunpack.c.l.b16 %v2030
        %v2194 = vunpack.c.h.b16 %v2030
        %v2195 = vunpack.c.l.b16 %v2031
        %v2196 = vunpack.c.h.b16 %v2031
        %v2197 = vunpack.c.l.b16 %v2032
        %v2198 = vunpack.c.h.b16 %v2032
        %v2199 = vunpack.c.l.b16 %v2033
        %v2200 = vunpack.c.h.b16 %v2033
        %v2201 = vunpack.c.l.b16 %v2034
        %v2202 = vunpack.c.h.b16 %v2034
        %v2203 = vunpack.c.l.b16 %v2035
        %v2204 = vunpack.c.h.b16 %v2035
        %v2205 = vunpack.c.l.b16 %v2036
        %v2206 = vunpack.c.h.b16 %v2036
        %v2207 = vunpack.c.l.b16 %v2037
        %v2208 = vunpack.c.h.b16 %v2037
        %v2209 = vunpack.c.l.b16 %v2038
        %v2210 = vunpack.c.h.b16 %v2038
        %v2211 = vunpack.c.l.b16 %v2039
        %v2212 = vunpack.c.h.b16 %v2039
        %v2213 = vunpack.c.l.b16 %v2040
        %v2214 = vunpack.c.h.b16 %v2040
        %v2215 = vunpack.c.l.b16 %v2041
        %v2216 = vunpack.c.h.b16 %v2041
        %v2217 = vunpack.c.l.b16 %v2042
        %v2218 = vunpack.c.h.b16 %v2042
        %v2219 = vpack.c.b16 %v2157, %v2155
        %v2220 = vpack.c.b16 %v2158, %v2156
        %v2221 = vpack.c.b16 %v2161, %v2159
        %v2222 = vpack.c.b16 %v2162, %v2160
        %v2223 = vpack.c.b16 %v2165, %v2163
        %v2224 = vpack.c.b16 %v2166, %v2164
        %v2225 = vpack.c.b16 %v2169, %v2167
        %v2226 = vpack.c.b16 %v2170, %v2168
        %v2227 = vpack.c.b16 %v2173, %v2171
        %v2228 = vpack.c.b16 %v2174, %v2172
        %v2229 = vpack.c.b16 %v2177, %v2175
        %v2230 = vpack.c.b16 %v2178, %v2176
        %v2231 = vpack.c.b16 %v2181, %v2179
        %v2232 = vpack.c.b16 %v2182, %v2180
        %v2233 = vpack.c.b16 %v2185, %v2183
        %v2234 = vpack.c.b16 %v2186, %v2184
        %v2235 = vpack.c.b16 %v2189, %v2187
        %v2236 = vpack.c.b16 %v2190, %v2188
        %v2237 = vpack.c.b16 %v2193, %v2191
        %v2238 = vpack.c.b16 %v2194, %v2192
        %v2239 = vpack.c.b16 %v2197, %v2195
        %v2240 = vpack.c.b16 %v2198, %v2196
        %v2241 = vpack.c.b16 %v2201, %v2199
        %v2242 = vpack.c.b16 %v2202, %v2200
        %v2243 = vpack.c.b16 %v2205, %v2203
        %v2244 = vpack.c.b16 %v2206, %v2204
        %v2245 = vpack.c.b16 %v2209, %v2207
        %v2246 = vpack.c.b16 %v2210, %v2208
        %v2247 = vpack.c.b16 %v2213, %v2211
        %v2248 = vpack.c.b16 %v2214, %v2212
        %v2249 = vpack.c.b16 %v2217, %v2215
        %v2250 = vpack.c.b16 %v2218, %v2216
        %2283 = vmatprep.subr.bf16.mxu0 %v2234
        %2284 = vmatpush1.bf16.msra.mxu0 %v2233
        %2285 = vmatprep.subr.bf16.mxu0 %v2232
        %2286 = vmatpush1.bf16.msra.mxu0 %v2231
        %2287 = vmatprep.subr.bf16.mxu0 %v2230
        %2288 = vmatpush1.bf16.msra.mxu0 %v2229
        %2289 = vmatprep.subr.bf16.mxu0 %v2228
        %2290 = vmatpush1.bf16.msra.mxu0 %v2227
        %2291 = vmatprep.subr.bf16.mxu0 %v2226
        %2292 = vmatpush1.bf16.msra.mxu0 %v2225
        %2293 = vmatprep.subr.bf16.mxu0 %v2224
        %2294 = vmatpush1.bf16.msra.mxu0 %v2223
        %2295 = vmatprep.subr.bf16.mxu0 %v2222
        %2296 = vmatpush1.bf16.msra.mxu0 %v2221
        %2297 = vmatprep.subr.bf16.mxu0 %v2220
        %2298 = vmatpush1.bf16.msra.mxu0 %v2219
        %2299 = vmatprep.subr.bf16.mxu0 %v2250
        %2300 = vmatpush2.bf16.msra.mxu0 %v2249
        %2301 = vmatprep.subr.bf16.mxu0 %v2248
        %2302 = vmatpush2.bf16.msra.mxu0 %v2247
        %2303 = vmatprep.subr.bf16.mxu0 %v2246
        %2304 = vmatpush2.bf16.msra.mxu0 %v2245
        %2305 = vmatprep.subr.bf16.mxu0 %v2244
        %2306 = vmatpush2.bf16.msra.mxu0 %v2243
        %2307 = vmatprep.subr.bf16.mxu0 %v2242
        %2308 = vmatpush2.bf16.msra.mxu0 %v2241
        %2309 = vmatprep.subr.bf16.mxu0 %v2240
        %2310 = vmatpush2.bf16.msra.mxu0 %v2239
        %2311 = vmatprep.subr.bf16.mxu0 %v2238
        %2312 = vmatpush2.bf16.msra.mxu0 %v2237
        %2313 = vmatprep.subr.bf16.mxu0 %v2236
        %2314 = vmatpush2.bf16.msra.mxu0 %v2235
        %2315 = vmatprep.mubr.bf16.mxu0 %v2092
        %2316 = vmatmul.mubr.bf16.gmra.mxu0 %v2091
        %v2317 = vpop.f32.mrf.mxu0
        %v2318 = vadd.f32 0.0, %v2317
        %v2319 = vpop.f32.mrf.mxu0
        %v2320 = vadd.f32 0.0, %v2319
        %v2321 = vpop.f32.mrf.mxu0
        %v2322 = vadd.f32 0.0, %v2321
        %v2323 = vpop.f32.mrf.mxu0
        %v2324 = vadd.f32 0.0, %v2323
        %2325 = vmatprep.mubr.bf16.mxu0 %v2094
        %2326 = vmatmul.mubr.bf16.gmra.mxu0 %v2093
        %v2327 = vpop.f32.mrf.mxu0
        %v2328 = vadd.f32 0.0, %v2327
        %v2329 = vpop.f32.mrf.mxu0
        %v2330 = vadd.f32 0.0, %v2329
        %v2331 = vpop.f32.mrf.mxu0
        %v2332 = vadd.f32 0.0, %v2331
        %v2333 = vpop.f32.mrf.mxu0
        %v2334 = vadd.f32 0.0, %v2333
        %2335 = vmatprep.mubr.bf16.mxu0 %v2096
        %2336 = vmatmul.mubr.bf16.gmra.mxu0 %v2095
        %v2337 = vpop.f32.mrf.mxu0
        %v2338 = vadd.f32 0.0, %v2337
        %v2339 = vpop.f32.mrf.mxu0
        %v2340 = vadd.f32 0.0, %v2339
        %v2341 = vpop.f32.mrf.mxu0
        %v2342 = vadd.f32 0.0, %v2341
        %v2343 = vpop.f32.mrf.mxu0
        %v2344 = vadd.f32 0.0, %v2343
        %2345 = vmatprep.mubr.bf16.mxu0 %v2098
        %2346 = vmatmul.mubr.bf16.gmra.mxu0 %v2097
        %v2347 = vpop.f32.mrf.mxu0
        %v2348 = vadd.f32 0.0, %v2347
        %v2349 = vpop.f32.mrf.mxu0
        %v2350 = vadd.f32 0.0, %v2349
        %v2351 = vpop.f32.mrf.mxu0
        %v2352 = vadd.f32 0.0, %v2351
        %v2353 = vpop.f32.mrf.mxu0
        %v2354 = vadd.f32 0.0, %v2353
        %2355 = vmatprep.mubr.bf16.mxu0 %v2100
        %2356 = vmatmul.mubr.bf16.gmra.mxu0 %v2099
        %v2357 = vpop.f32.mrf.mxu0
        %v2358 = vadd.f32 0.0, %v2357
        %v2359 = vpop.f32.mrf.mxu0
        %v2360 = vadd.f32 0.0, %v2359
        %v2361 = vpop.f32.mrf.mxu0
        %v2362 = vadd.f32 0.0, %v2361
        %v2363 = vpop.f32.mrf.mxu0
        %v2364 = vadd.f32 0.0, %v2363
        %2365 = vmatprep.mubr.bf16.mxu0 %v2102
        %2366 = vmatmul.mubr.bf16.gmra.mxu0 %v2101
        %v2367 = vpop.f32.mrf.mxu0
        %v2368 = vadd.f32 0.0, %v2367
        %v2369 = vpop.f32.mrf.mxu0
        %v2370 = vadd.f32 0.0, %v2369
        %v2371 = vpop.f32.mrf.mxu0
        %v2372 = vadd.f32 0.0, %v2371
        %v2373 = vpop.f32.mrf.mxu0
        %v2374 = vadd.f32 0.0, %v2373
        %2375 = vmatprep.mubr.bf16.mxu0 %v2104
        %2376 = vmatmul.mubr.bf16.gmra.mxu0 %v2103
        %v2377 = vpop.f32.mrf.mxu0
        %v2378 = vadd.f32 0.0, %v2377
        %v2379 = vpop.f32.mrf.mxu0
        %v2380 = vadd.f32 0.0, %v2379
        %v2381 = vpop.f32.mrf.mxu0
        %v2382 = vadd.f32 0.0, %v2381
        %v2383 = vpop.f32.mrf.mxu0
        %v2384 = vadd.f32 0.0, %v2383
        %2385 = vmatprep.mubr.bf16.mxu0 %v2106
        %2386 = vmatmul.mubr.bf16.gmra.mxu0 %v2105
        %v2387 = vpop.f32.mrf.mxu0
        %v2388 = vadd.f32 0.0, %v2387
        %v2389 = vpop.f32.mrf.mxu0
        %v2390 = vadd.f32 0.0, %v2389
        %v2391 = vpop.f32.mrf.mxu0
        %v2392 = vadd.f32 0.0, %v2391
        %v2393 = vpop.f32.mrf.mxu0
        %v2394 = vadd.f32 0.0, %v2393
        %2395 = vdwg.mxu0
        %v2396 = vpack.c.bf16 %v2322, %v2318
        %v2397 = vpack.c.bf16 %v2324, %v2320
        %v2398 = vpack.c.bf16 %v2332, %v2328
        %v2399 = vpack.c.bf16 %v2334, %v2330
        %v2400 = vpack.c.bf16 %v2342, %v2338
        %v2401 = vpack.c.bf16 %v2344, %v2340
        %v2402 = vpack.c.bf16 %v2352, %v2348
        %v2403 = vpack.c.bf16 %v2354, %v2350
        %v2404 = vpack.c.bf16 %v2362, %v2358
        %v2405 = vpack.c.bf16 %v2364, %v2360
        %v2406 = vpack.c.bf16 %v2372, %v2368
        %v2407 = vpack.c.bf16 %v2374, %v2370
        %v2408 = vpack.c.bf16 %v2382, %v2378
        %v2409 = vpack.c.bf16 %v2384, %v2380
        %v2410 = vpack.c.bf16 %v2392, %v2388
        %v2411 = vpack.c.bf16 %v2394, %v2390
        %v2412 = vld [vmem:[%s11] sm:$0xff]
        %v2413 = vmul.f32 %v2412, 0.0625
        %v2414 = vpack.c.bf16 %v2413, %v2413
        %v2415 = vlaneseq
        %v2416 = vshrl.u32 %v2415, 7
        %v2417 = vadd.s32 %v2416, 8
        %v2418 = vadd.s32 %v2416, 16
        %v2419 = vadd.s32 %v2416, 24
        %v2420 = vadd.s32 %v2416, 32
        %v2421 = vadd.s32 %v2416, 40
        %v2422 = vadd.s32 %v2416, 48
        %v2423 = vadd.s32 %v2416, 56
        %v2424 = vadd.s32 %v2416, 64
        %v2425 = vadd.s32 %v2416, 72
        %v2426 = vadd.s32 %v2416, 80
        %v2427 = vadd.s32 %v2416, 88
        %v2428 = vadd.s32 %v2416, 96
        %v2429 = vadd.s32 %v2416, 104
        %v2430 = vadd.s32 %v2416, 112
        %v2431 = vadd.s32 %v2416, 120
        %v2432 = vlaneseq
        %v2433 = vand.u32 %v2432, 127
        %v2434 = vsub.s32 %v2433, %v2416
        %v2435 = vsub.s32 %v2433, %v2417
        %v2436 = vsub.s32 %v2433, %v2418
        %v2437 = vsub.s32 %v2433, %v2419
        %v2438 = vsub.s32 %v2433, %v2420
        %v2439 = vsub.s32 %v2433, %v2421
        %v2440 = vsub.s32 %v2433, %v2422
        %v2441 = vsub.s32 %v2433, %v2423
        %v2442 = vsub.s32 %v2433, %v2424
        %v2443 = vsub.s32 %v2433, %v2425
        %v2444 = vsub.s32 %v2433, %v2426
        %v2445 = vsub.s32 %v2433, %v2427
        %v2446 = vsub.s32 %v2433, %v2428
        %v2447 = vsub.s32 %v2433, %v2429
        %v2448 = vsub.s32 %v2433, %v2430
        %v2449 = vsub.s32 %v2433, %v2431
        %vm2450 = vcmp.le.s32.totalorder %v2434, 0
        %vm2451 = vcmp.le.s32.totalorder %v2435, 0
        %vm2452 = vcmp.le.s32.totalorder %v2436, 0
        %vm2453 = vcmp.le.s32.totalorder %v2437, 0
        %vm2454 = vcmp.le.s32.totalorder %v2438, 0
        %vm2455 = vcmp.le.s32.totalorder %v2439, 0
        %vm2456 = vcmp.le.s32.totalorder %v2440, 0
        %vm2457 = vcmp.le.s32.totalorder %v2441, 0
        %vm2458 = vcmp.le.s32.totalorder %v2442, 0
        %vm2459 = vcmp.le.s32.totalorder %v2443, 0
        %vm2460 = vcmp.le.s32.totalorder %v2444, 0
        %vm2461 = vcmp.le.s32.totalorder %v2445, 0
        %vm2462 = vcmp.le.s32.totalorder %v2446, 0
        %vm2463 = vcmp.le.s32.totalorder %v2447, 0
        %vm2464 = vcmp.le.s32.totalorder %v2448, 0
        %vm2465 = vcmp.le.s32.totalorder %v2449, 0
        %vm2466 = vcmp.eq.s32.totalorder %v2434, 1
        %vm2467 = vcmp.eq.s32.totalorder %v2435, 1
        %vm2468 = vcmp.eq.s32.totalorder %v2436, 1
        %vm2469 = vcmp.eq.s32.totalorder %v2437, 1
        %vm2470 = vcmp.eq.s32.totalorder %v2438, 1
        %vm2471 = vcmp.eq.s32.totalorder %v2439, 1
        %vm2472 = vcmp.eq.s32.totalorder %v2440, 1
        %vm2473 = vcmp.eq.s32.totalorder %v2441, 1
        %vm2474 = vcmp.eq.s32.totalorder %v2442, 1
        %vm2475 = vcmp.eq.s32.totalorder %v2443, 1
        %vm2476 = vcmp.eq.s32.totalorder %v2444, 1
        %vm2477 = vcmp.eq.s32.totalorder %v2445, 1
        %vm2478 = vcmp.eq.s32.totalorder %v2446, 1
        %vm2479 = vcmp.eq.s32.totalorder %v2447, 1
        %vm2480 = vcmp.eq.s32.totalorder %v2448, 1
        %vm2481 = vcmp.eq.s32.totalorder %v2449, 1
        %vm2482 = vcmask 523264
        %v2484 = vsel %vm2482, %v1121, 0
        %v2487 = vsel %vm2482, %v1123, 0
        %v2490 = vsel %vm2482, %v1125, 0
        %v2493 = vsel %vm2482, %v1127, 0
        %v2496 = vsel %vm2482, %v1129, 0
        %v2499 = vsel %vm2482, %v1131, 0
        %v2502 = vsel %vm2482, %v1133, 0
        %v2505 = vsel %vm2482, %v1135, 0
        %v2508 = vsel %vm2482, %v1550, 0
        %v2511 = vsel %vm2482, %v1552, 0
        %v2514 = vsel %vm2482, %v1554, 0
        %v2517 = vsel %vm2482, %v1556, 0
        %v2520 = vsel %vm2482, %v1558, 0
        %v2523 = vsel %vm2482, %v1560, 0
        %v2526 = vsel %vm2482, %v1562, 0
        %v2529 = vsel %vm2482, %v1564, 0
        %v2532 = vsel %vm2482, %v2396, 0
        %v2535 = vsel %vm2482, %v2398, 0
        %v2538 = vsel %vm2482, %v2400, 0
        %v2541 = vsel %vm2482, %v2402, 0
        %v2544 = vsel %vm2482, %v2404, 0
        %v2547 = vsel %vm2482, %v2406, 0
        %v2550 = vsel %vm2482, %v2408, 0
        %v2553 = vsel %vm2482, %v2410, 0
        %2555 = vmatprep.subr.bf16.mxu0 0
        %2556 = vmatpush1.bf16.xpose.msra.mxu0 %v2529
        %2557 = vmatprep.subr.bf16.mxu0 0
        %2558 = vmatpush1.bf16.xpose.msra.mxu0 %v2526
        %2559 = vmatprep.subr.bf16.mxu0 0
        %2560 = vmatpush1.bf16.xpose.msra.mxu0 %v2523
        %2561 = vmatprep.subr.bf16.mxu0 0
        %2562 = vmatpush1.bf16.xpose.msra.mxu0 %v2520
        %2563 = vmatprep.subr.bf16.mxu0 0
        %2564 = vmatpush1.bf16.xpose.msra.mxu0 %v2517
        %2565 = vmatprep.subr.bf16.mxu0 0
        %2566 = vmatpush1.bf16.xpose.msra.mxu0 %v2514
        %2567 = vmatprep.subr.bf16.mxu0 0
        %2568 = vmatpush1.bf16.xpose.msra.mxu0 %v2511
        %2569 = vmatprep.subr.bf16.mxu0 0
        %2570 = vmatpush1.bf16.xpose.msra.mxu0 %v2508
        %2571 = vmatprep.subr.bf16.mxu0 0
        %2572 = vmatpush2.bf16.xpose.msra.mxu0 %v2553
        %2573 = vmatprep.subr.bf16.mxu0 0
        %2574 = vmatpush2.bf16.xpose.msra.mxu0 %v2550
        %2575 = vmatprep.subr.bf16.mxu0 0
        %2576 = vmatpush2.bf16.xpose.msra.mxu0 %v2547
        %2577 = vmatprep.subr.bf16.mxu0 0
        %2578 = vmatpush2.bf16.xpose.msra.mxu0 %v2544
        %2579 = vmatprep.subr.bf16.mxu0 0
        %2580 = vmatpush2.bf16.xpose.msra.mxu0 %v2541
        %2581 = vmatprep.subr.bf16.mxu0 0
        %2582 = vmatpush2.bf16.xpose.msra.mxu0 %v2538
        %2583 = vmatprep.subr.bf16.mxu0 0
        %2584 = vmatpush2.bf16.xpose.msra.mxu0 %v2535
        %2585 = vmatprep.subr.bf16.mxu0 0
        %2586 = vmatpush2.bf16.xpose.msra.mxu0 %v2532
        %2587 = vmatprep.mubr.bf16.mxu0 0
        %2588 = vmatmul.mubr.bf16.gmra.mxu0 %v2484
        %v2589 = vpop.f32.mrf.mxu0
        %v2590 = vadd.f32 0.0, %v2589
        %v2591 = vpop.f32.mrf.mxu0
        %v2592 = vadd.f32 0.0, %v2591
        %v2593 = vpop.f32.mrf.mxu0
        %v2594 = vadd.f32 0.0, %v2593
        %v2595 = vpop.f32.mrf.mxu0
        %v2596 = vadd.f32 0.0, %v2595
        %2597 = vmatprep.mubr.bf16.mxu0 0
        %2598 = vmatmul.mubr.bf16.gmra.mxu0 %v2487
        %v2599 = vpop.f32.mrf.mxu0
        %v2600 = vadd.f32 0.0, %v2599
        %v2601 = vpop.f32.mrf.mxu0
        %v2602 = vadd.f32 0.0, %v2601
        %v2603 = vpop.f32.mrf.mxu0
        %v2604 = vadd.f32 0.0, %v2603
        %v2605 = vpop.f32.mrf.mxu0
        %v2606 = vadd.f32 0.0, %v2605
        %2607 = vmatprep.mubr.bf16.mxu0 0
        %2608 = vmatmul.mubr.bf16.gmra.mxu0 %v2490
        %v2609 = vpop.f32.mrf.mxu0
        %v2610 = vadd.f32 0.0, %v2609
        %v2611 = vpop.f32.mrf.mxu0
        %v2612 = vadd.f32 0.0, %v2611
        %v2613 = vpop.f32.mrf.mxu0
        %v2614 = vadd.f32 0.0, %v2613
        %v2615 = vpop.f32.mrf.mxu0
        %v2616 = vadd.f32 0.0, %v2615
        %2617 = vmatprep.mubr.bf16.mxu0 0
        %2618 = vmatmul.mubr.bf16.gmra.mxu0 %v2493
        %v2619 = vpop.f32.mrf.mxu0
        %v2620 = vadd.f32 0.0, %v2619
        %v2621 = vpop.f32.mrf.mxu0
        %v2622 = vadd.f32 0.0, %v2621
        %v2623 = vpop.f32.mrf.mxu0
        %v2624 = vadd.f32 0.0, %v2623
        %v2625 = vpop.f32.mrf.mxu0
        %v2626 = vadd.f32 0.0, %v2625
        %2627 = vmatprep.mubr.bf16.mxu0 0
        %2628 = vmatmul.mubr.bf16.gmra.mxu0 %v2496
        %v2629 = vpop.f32.mrf.mxu0
        %v2630 = vadd.f32 0.0, %v2629
        %v2631 = vpop.f32.mrf.mxu0
        %v2632 = vadd.f32 0.0, %v2631
        %v2633 = vpop.f32.mrf.mxu0
        %v2634 = vadd.f32 0.0, %v2633
        %v2635 = vpop.f32.mrf.mxu0
        %v2636 = vadd.f32 0.0, %v2635
        %2637 = vmatprep.mubr.bf16.mxu0 0
        %2638 = vmatmul.mubr.bf16.gmra.mxu0 %v2499
        %v2639 = vpop.f32.mrf.mxu0
        %v2640 = vadd.f32 0.0, %v2639
        %v2641 = vpop.f32.mrf.mxu0
        %v2642 = vadd.f32 0.0, %v2641
        %v2643 = vpop.f32.mrf.mxu0
        %v2644 = vadd.f32 0.0, %v2643
        %v2645 = vpop.f32.mrf.mxu0
        %v2646 = vadd.f32 0.0, %v2645
        %2647 = vmatprep.mubr.bf16.mxu0 0
        %2648 = vmatmul.mubr.bf16.gmra.mxu0 %v2502
        %v2649 = vpop.f32.mrf.mxu0
        %v2650 = vadd.f32 0.0, %v2649
        %v2651 = vpop.f32.mrf.mxu0
        %v2652 = vadd.f32 0.0, %v2651
        %v2653 = vpop.f32.mrf.mxu0
        %v2654 = vadd.f32 0.0, %v2653
        %v2655 = vpop.f32.mrf.mxu0
        %v2656 = vadd.f32 0.0, %v2655
        %2657 = vmatprep.mubr.bf16.mxu0 0
        %2658 = vmatmul.mubr.bf16.gmra.mxu0 %v2505
        %v2659 = vpop.f32.mrf.mxu0
        %v2660 = vadd.f32 0.0, %v2659
        %v2661 = vpop.f32.mrf.mxu0
        %v2662 = vadd.f32 0.0, %v2661
        %v2663 = vpop.f32.mrf.mxu0
        %v2664 = vadd.f32 0.0, %v2663
        %v2665 = vpop.f32.mrf.mxu0
        %v2666 = vadd.f32 0.0, %v2665
        %2667 = vdwg.mxu0
        %v2669 = vsel %vm2482, %v2414, 0
        %2671 = vmatprep.subr.bf16.mxu0 0
        %2672 = vmatpush1.bf16.xpose.msra.mxu0 %v2529
        %2673 = vmatprep.subr.bf16.mxu0 0
        %2674 = vmatpush1.bf16.xpose.msra.mxu0 %v2526
        %2675 = vmatprep.subr.bf16.mxu0 0
        %2676 = vmatpush1.bf16.xpose.msra.mxu0 %v2523
        %2677 = vmatprep.subr.bf16.mxu0 0
        %2678 = vmatpush1.bf16.xpose.msra.mxu0 %v2520
        %2679 = vmatprep.subr.bf16.mxu0 0
        %2680 = vmatpush1.bf16.xpose.msra.mxu0 %v2517
        %2681 = vmatprep.subr.bf16.mxu0 0
        %2682 = vmatpush1.bf16.xpose.msra.mxu0 %v2514
        %2683 = vmatprep.subr.bf16.mxu0 0
        %2684 = vmatpush1.bf16.xpose.msra.mxu0 %v2511
        %2685 = vmatprep.subr.bf16.mxu0 0
        %2686 = vmatpush1.bf16.xpose.msra.mxu0 %v2508
        %2687 = vmatprep.subr.bf16.mxu0 0
        %2688 = vmatpush2.bf16.xpose.msra.mxu0 %v2553
        %2689 = vmatprep.subr.bf16.mxu0 0
        %2690 = vmatpush2.bf16.xpose.msra.mxu0 %v2550
        %2691 = vmatprep.subr.bf16.mxu0 0
        %2692 = vmatpush2.bf16.xpose.msra.mxu0 %v2547
        %2693 = vmatprep.subr.bf16.mxu0 0
        %2694 = vmatpush2.bf16.xpose.msra.mxu0 %v2544
        %2695 = vmatprep.subr.bf16.mxu0 0
        %2696 = vmatpush2.bf16.xpose.msra.mxu0 %v2541
        %2697 = vmatprep.subr.bf16.mxu0 0
        %2698 = vmatpush2.bf16.xpose.msra.mxu0 %v2538
        %2699 = vmatprep.subr.bf16.mxu0 0
        %2700 = vmatpush2.bf16.xpose.msra.mxu0 %v2535
        %2701 = vmatprep.subr.bf16.mxu0 0
        %2702 = vmatpush2.bf16.xpose.msra.mxu0 %v2532
        %2703 = vmatprep.mubr.bf16.mxu0 0
        %2704 = vmatmul.mubr.bf16.gmra.mxu0 %v2669
        %v2705 = vpop.f32.mrf.mxu0
        %v2706 = vadd.f32 0.0, %v2705
        %v2707 = vpop.f32.mrf.mxu0
        %v2708 = vadd.f32 0.0, %v2707
        %v2709 = vpop.f32.mrf.mxu0
        %v2710 = vpop.f32.mrf.mxu0
        %2711 = vdwg.mxu0
        %v2712 = vlaneseq
        %v2713 = vshrl.u32 %v2712, 7
        %v2714 = vsub.s32 0, %v2713
        %v2715 = vrot.slane %v2706, %v2714
        %v2716 = vadd.f32 %v2590, %v2715
        %v2717 = vadd.f32 %v2594, %v2715
        %v2718 = vadd.f32 %v2600, %v2715
        %v2719 = vadd.f32 %v2604, %v2715
        %v2720 = vadd.f32 %v2610, %v2715
        %v2721 = vadd.f32 %v2614, %v2715
        %v2722 = vadd.f32 %v2620, %v2715
        %v2723 = vadd.f32 %v2624, %v2715
        %v2724 = vadd.f32 %v2630, %v2715
        %v2725 = vadd.f32 %v2634, %v2715
        %v2726 = vadd.f32 %v2640, %v2715
        %v2727 = vadd.f32 %v2644, %v2715
        %v2728 = vadd.f32 %v2650, %v2715
        %v2729 = vadd.f32 %v2654, %v2715
        %v2730 = vadd.f32 %v2660, %v2715
        %v2731 = vadd.f32 %v2664, %v2715
        %v2732 = vlaneseq
        %v2733 = vshrl.u32 %v2732, 7
        %v2734 = vsub.s32 1, %v2733
        %v2735 = vrot.slane %v2708, %v2734
        %v2736 = vadd.f32 %v2592, %v2735
        %v2737 = vadd.f32 %v2596, %v2735
        %v2738 = vadd.f32 %v2602, %v2735
        %v2739 = vadd.f32 %v2606, %v2735
        %v2740 = vadd.f32 %v2612, %v2735
        %v2741 = vadd.f32 %v2616, %v2735
        %v2742 = vadd.f32 %v2622, %v2735
        %v2743 = vadd.f32 %v2626, %v2735
        %v2744 = vadd.f32 %v2632, %v2735
        %v2745 = vadd.f32 %v2636, %v2735
        %v2746 = vadd.f32 %v2642, %v2735
        %v2747 = vadd.f32 %v2646, %v2735
        %v2748 = vadd.f32 %v2652, %v2735
        %v2749 = vadd.f32 %v2656, %v2735
        %v2750 = vadd.f32 %v2662, %v2735
        %v2751 = vadd.f32 %v2666, %v2735
        %2752 = vrot.lane.b32.xlu0 %v2736, 1
        %v2753 = vpop.permute.xlu0 %2752
        %2754 = vrot.lane.b32.xlu0 %v2737, 1
        %v2755 = vpop.permute.xlu0 %2754
        %2756 = vrot.lane.b32.xlu0 %v2738, 1
        %v2757 = vpop.permute.xlu0 %2756
        %2758 = vrot.lane.b32.xlu0 %v2739, 1
        %v2759 = vpop.permute.xlu0 %2758
        %2760 = vrot.lane.b32.xlu0 %v2740, 1
        %v2761 = vpop.permute.xlu0 %2760
        %2762 = vrot.lane.b32.xlu0 %v2741, 1
        %v2763 = vpop.permute.xlu0 %2762
        %2764 = vrot.lane.b32.xlu0 %v2742, 1
        %v2765 = vpop.permute.xlu0 %2764
        %2766 = vrot.lane.b32.xlu0 %v2743, 1
        %v2767 = vpop.permute.xlu0 %2766
        %2768 = vrot.lane.b32.xlu0 %v2744, 1
        %v2769 = vpop.permute.xlu0 %2768
        %2770 = vrot.lane.b32.xlu0 %v2745, 1
        %v2771 = vpop.permute.xlu0 %2770
        %2772 = vrot.lane.b32.xlu0 %v2746, 1
        %v2773 = vpop.permute.xlu0 %2772
        %2774 = vrot.lane.b32.xlu0 %v2747, 1
        %v2775 = vpop.permute.xlu0 %2774
        %2776 = vrot.lane.b32.xlu0 %v2748, 1
        %v2777 = vpop.permute.xlu0 %2776
        %2778 = vrot.lane.b32.xlu0 %v2749, 1
        %v2779 = vpop.permute.xlu0 %2778
        %2780 = vrot.lane.b32.xlu0 %v2750, 1
        %v2781 = vpop.permute.xlu0 %2780
        %2782 = vrot.lane.b32.xlu0 %v2751, 1
        %v2783 = vpop.permute.xlu0 %2782
        %2785 = vrot.lane.b32.xlu0 %v2753, 256
        %v2786 = vpop.permute.xlu0 %2785
        %s2788 = sor.u32 256, 8
        %2789 = vrot.lane.b32.xlu0 %v2755, %s2788
        %v2790 = vpop.permute.xlu0 %2789
        %s2792 = sor.u32 256, 16
        %2793 = vrot.lane.b32.xlu0 %v2757, %s2792
        %v2794 = vpop.permute.xlu0 %2793
        %s2796 = sor.u32 256, 24
        %2797 = vrot.lane.b32.xlu0 %v2759, %s2796
        %v2798 = vpop.permute.xlu0 %2797
        %s2800 = sor.u32 256, 32
        %2801 = vrot.lane.b32.xlu0 %v2761, %s2800
        %v2802 = vpop.permute.xlu0 %2801
        %s2804 = sor.u32 256, 40
        %2805 = vrot.lane.b32.xlu0 %v2763, %s2804
        %v2806 = vpop.permute.xlu0 %2805
        %s2808 = sor.u32 256, 48
        %2809 = vrot.lane.b32.xlu0 %v2765, %s2808
        %v2810 = vpop.permute.xlu0 %2809
        %s2812 = sor.u32 256, 56
        %2813 = vrot.lane.b32.xlu0 %v2767, %s2812
        %v2814 = vpop.permute.xlu0 %2813
        %s2816 = sor.u32 256, 64
        %2817 = vrot.lane.b32.xlu0 %v2769, %s2816
        %v2818 = vpop.permute.xlu0 %2817
        %s2820 = sor.u32 256, 72
        %2821 = vrot.lane.b32.xlu0 %v2771, %s2820
        %v2822 = vpop.permute.xlu0 %2821
        %s2824 = sor.u32 256, 80
        %2825 = vrot.lane.b32.xlu0 %v2773, %s2824
        %v2826 = vpop.permute.xlu0 %2825
        %s2828 = sor.u32 256, 88
        %2829 = vrot.lane.b32.xlu0 %v2775, %s2828
        %v2830 = vpop.permute.xlu0 %2829
        %s2832 = sor.u32 256, 96
        %2833 = vrot.lane.b32.xlu0 %v2777, %s2832
        %v2834 = vpop.permute.xlu0 %2833
        %s2836 = sor.u32 256, 104
        %2837 = vrot.lane.b32.xlu0 %v2779, %s2836
        %v2838 = vpop.permute.xlu0 %2837
        %s2840 = sor.u32 256, 112
        %2841 = vrot.lane.b32.xlu0 %v2781, %s2840
        %v2842 = vpop.permute.xlu0 %2841
        %s2844 = sor.u32 256, 120
        %2845 = vrot.lane.b32.xlu0 %v2783, %s2844
        %v2846 = vpop.permute.xlu0 %2845
        %v2847 = vrot.slane %v2786, 1
        %v2848 = vrot.slane %v2790, 1
        %v2849 = vrot.slane %v2794, 1
        %v2850 = vrot.slane %v2798, 1
        %v2851 = vrot.slane %v2802, 1
        %v2852 = vrot.slane %v2806, 1
        %v2853 = vrot.slane %v2810, 1
        %v2854 = vrot.slane %v2814, 1
        %v2855 = vrot.slane %v2818, 1
        %v2856 = vrot.slane %v2822, 1
        %v2857 = vrot.slane %v2826, 1
        %v2858 = vrot.slane %v2830, 1
        %v2859 = vrot.slane %v2834, 1
        %v2860 = vrot.slane %v2838, 1
        %v2861 = vrot.slane %v2842, 1
        %v2862 = vrot.slane %v2846, 1
        %vm2863 = vcmp.lt.s32.totalorder %v2416, 7
        %v2864 = vsel %vm2863, %v2861, %v2862
        %v2865 = vsel %vm2863, %v2860, %v2861
        %v2866 = vsel %vm2863, %v2859, %v2860
        %v2867 = vsel %vm2863, %v2858, %v2859
        %v2868 = vsel %vm2863, %v2857, %v2858
        %v2869 = vsel %vm2863, %v2856, %v2857
        %v2870 = vsel %vm2863, %v2855, %v2856
        %v2871 = vsel %vm2863, %v2854, %v2855
        %v2872 = vsel %vm2863, %v2853, %v2854
        %v2873 = vsel %vm2863, %v2852, %v2853
        %v2874 = vsel %vm2863, %v2851, %v2852
        %v2875 = vsel %vm2863, %v2850, %v2851
        %v2876 = vsel %vm2863, %v2849, %v2850
        %v2877 = vsel %vm2863, %v2848, %v2849
        %v2878 = vsel %vm2863, %v2847, %v2848
        %v2879 = vsel %vm2863, %v2862, %v2847
        %v2880 = vsel %vm2466, 0.0, %v2878
        %v2881 = vsel %vm2467, 0.0, %v2877
        %v2882 = vsel %vm2468, 0.0, %v2876
        %v2883 = vsel %vm2469, 0.0, %v2875
        %v2884 = vsel %vm2470, 0.0, %v2874
        %v2885 = vsel %vm2471, 0.0, %v2873
        %v2886 = vsel %vm2472, 0.0, %v2872
        %v2887 = vsel %vm2473, 0.0, %v2871
        %v2888 = vsel %vm2474, 0.0, %v2870
        %v2889 = vsel %vm2475, 0.0, %v2869
        %v2890 = vsel %vm2476, 0.0, %v2868
        %v2891 = vsel %vm2477, 0.0, %v2867
        %v2892 = vsel %vm2478, 0.0, %v2866
        %v2893 = vsel %vm2479, 0.0, %v2865
        %v2894 = vsel %vm2480, 0.0, %v2864
        %v2895 = vsel %vm2481, 0.0, %v2879
        %v2896 = vsel %vm2450, %v2786, %v2880
        %v2897 = vsel %vm2451, %v2790, %v2881
        %v2898 = vsel %vm2452, %v2794, %v2882
        %v2899 = vsel %vm2453, %v2798, %v2883
        %v2900 = vsel %vm2454, %v2802, %v2884
        %v2901 = vsel %vm2455, %v2806, %v2885
        %v2902 = vsel %vm2456, %v2810, %v2886
        %v2903 = vsel %vm2457, %v2814, %v2887
        %v2904 = vsel %vm2458, %v2818, %v2888
        %v2905 = vsel %vm2459, %v2822, %v2889
        %v2906 = vsel %vm2460, %v2826, %v2890
        %v2907 = vsel %vm2461, %v2830, %v2891
        %v2908 = vsel %vm2462, %v2834, %v2892
        %v2909 = vsel %vm2463, %v2838, %v2893
        %v2910 = vsel %vm2464, %v2842, %v2894
        %v2911 = vsel %vm2465, %v2846, %v2895
        %v2912 = vadd.f32 %v2716, %v2896
        %v2913 = vadd.f32 %v2717, %v2897
        %v2914 = vadd.f32 %v2718, %v2898
        %v2915 = vadd.f32 %v2719, %v2899
        %v2916 = vadd.f32 %v2720, %v2900
        %v2917 = vadd.f32 %v2721, %v2901
        %v2918 = vadd.f32 %v2722, %v2902
        %v2919 = vadd.f32 %v2723, %v2903
        %v2920 = vadd.f32 %v2724, %v2904
        %v2921 = vadd.f32 %v2725, %v2905
        %v2922 = vadd.f32 %v2726, %v2906
        %v2923 = vadd.f32 %v2727, %v2907
        %v2924 = vadd.f32 %v2728, %v2908
        %v2925 = vadd.f32 %v2729, %v2909
        %v2926 = vadd.f32 %v2730, %v2910
        %v2927 = vadd.f32 %v2731, %v2911
        %2928 = vmax.xlane.f32.xlu0 %v2912
        %v2929 = vpop.xlane.xlu0 %2928
        %2930 = vmax.xlane.f32.xlu0 %v2913
        %v2931 = vpop.xlane.xlu0 %2930
        %2932 = vmax.xlane.f32.xlu0 %v2914
        %v2933 = vpop.xlane.xlu0 %2932
        %2934 = vmax.xlane.f32.xlu0 %v2915
        %v2935 = vpop.xlane.xlu0 %2934
        %2936 = vmax.xlane.f32.xlu0 %v2916
        %v2937 = vpop.xlane.xlu0 %2936
        %2938 = vmax.xlane.f32.xlu0 %v2917
        %v2939 = vpop.xlane.xlu0 %2938
        %2940 = vmax.xlane.f32.xlu0 %v2918
        %v2941 = vpop.xlane.xlu0 %2940
        %2942 = vmax.xlane.f32.xlu0 %v2919
        %v2943 = vpop.xlane.xlu0 %2942
        %2944 = vmax.xlane.f32.xlu0 %v2920
        %v2945 = vpop.xlane.xlu0 %2944
        %2946 = vmax.xlane.f32.xlu0 %v2921
        %v2947 = vpop.xlane.xlu0 %2946
        %2948 = vmax.xlane.f32.xlu0 %v2922
        %v2949 = vpop.xlane.xlu0 %2948
        %2950 = vmax.xlane.f32.xlu0 %v2923
        %v2951 = vpop.xlane.xlu0 %2950
        %2952 = vmax.xlane.f32.xlu0 %v2924
        %v2953 = vpop.xlane.xlu0 %2952
        %2954 = vmax.xlane.f32.xlu0 %v2925
        %v2955 = vpop.xlane.xlu0 %2954
        %2956 = vmax.xlane.f32.xlu0 %v2926
        %v2957 = vpop.xlane.xlu0 %2956
        %2958 = vmax.xlane.f32.xlu0 %v2927
        %v2959 = vpop.xlane.xlu0 %2958
        %v2960 = vsub.f32 %v2912, %v2929
        %v2961 = vsub.f32 %v2913, %v2931
        %v2962 = vsub.f32 %v2914, %v2933
        %v2963 = vsub.f32 %v2915, %v2935
        %v2964 = vsub.f32 %v2916, %v2937
        %v2965 = vsub.f32 %v2917, %v2939
        %v2966 = vsub.f32 %v2918, %v2941
        %v2967 = vsub.f32 %v2919, %v2943
        %v2968 = vsub.f32 %v2920, %v2945
        %v2969 = vsub.f32 %v2921, %v2947
        %v2970 = vsub.f32 %v2922, %v2949
        %v2971 = vsub.f32 %v2923, %v2951
        %v2972 = vsub.f32 %v2924, %v2953
        %v2973 = vsub.f32 %v2925, %v2955
        %v2974 = vsub.f32 %v2926, %v2957
        %v2975 = vsub.f32 %v2927, %v2959
        %v2976 = vmul.f32 %v2960, 1.442695
        %v2977 = vpow.pop %v2976
        %v2978 = vmul.f32 %v2961, 1.442695
        %v2979 = vpow.pop %v2978
        %v2980 = vmul.f32 %v2962, 1.442695
        %v2981 = vpow.pop %v2980
        %v2982 = vmul.f32 %v2963, 1.442695
        %v2983 = vpow.pop %v2982
        %v2984 = vmul.f32 %v2964, 1.442695
        %v2985 = vpow.pop %v2984
        %v2986 = vmul.f32 %v2965, 1.442695
        %v2987 = vpow.pop %v2986
        %v2988 = vmul.f32 %v2966, 1.442695
        %v2989 = vpow.pop %v2988
        %v2990 = vmul.f32 %v2967, 1.442695
        %v2991 = vpow.pop %v2990
        %v2992 = vmul.f32 %v2968, 1.442695
        %v2993 = vpow.pop %v2992
        %v2994 = vmul.f32 %v2969, 1.442695
        %v2995 = vpow.pop %v2994
        %v2996 = vmul.f32 %v2970, 1.442695
        %v2997 = vpow.pop %v2996
        %v2998 = vmul.f32 %v2971, 1.442695
        %v2999 = vpow.pop %v2998
        %v3000 = vmul.f32 %v2972, 1.442695
        %v3001 = vpow.pop %v3000
        %v3002 = vmul.f32 %v2973, 1.442695
        %v3003 = vpow.pop %v3002
        %v3004 = vmul.f32 %v2974, 1.442695
        %v3005 = vpow.pop %v3004
        %v3006 = vmul.f32 %v2975, 1.442695
        %v3007 = vpow.pop %v3006
        %3008 = vadd.xlane.f32.xlu0 %v2977
        %v3009 = vpop.xlane.xlu0 %3008
        %3010 = vadd.xlane.f32.xlu0 %v2979
        %v3011 = vpop.xlane.xlu0 %3010
        %3012 = vadd.xlane.f32.xlu0 %v2981
        %v3013 = vpop.xlane.xlu0 %3012
        %3014 = vadd.xlane.f32.xlu0 %v2983
        %v3015 = vpop.xlane.xlu0 %3014
        %3016 = vadd.xlane.f32.xlu0 %v2985
        %v3017 = vpop.xlane.xlu0 %3016
        %3018 = vadd.xlane.f32.xlu0 %v2987
        %v3019 = vpop.xlane.xlu0 %3018
        %3020 = vadd.xlane.f32.xlu0 %v2989
        %v3021 = vpop.xlane.xlu0 %3020
        %3022 = vadd.xlane.f32.xlu0 %v2991
        %v3023 = vpop.xlane.xlu0 %3022
        %3024 = vadd.xlane.f32.xlu0 %v2993
        %v3025 = vpop.xlane.xlu0 %3024
        %3026 = vadd.xlane.f32.xlu0 %v2995
        %v3027 = vpop.xlane.xlu0 %3026
        %3028 = vadd.xlane.f32.xlu0 %v2997
        %v3029 = vpop.xlane.xlu0 %3028
        %3030 = vadd.xlane.f32.xlu0 %v2999
        %v3031 = vpop.xlane.xlu0 %3030
        %3032 = vadd.xlane.f32.xlu0 %v3001
        %v3033 = vpop.xlane.xlu0 %3032
        %3034 = vadd.xlane.f32.xlu0 %v3003
        %v3035 = vpop.xlane.xlu0 %3034
        %3036 = vadd.xlane.f32.xlu0 %v3005
        %v3037 = vpop.xlane.xlu0 %3036
        %3038 = vadd.xlane.f32.xlu0 %v3007
        %v3039 = vpop.xlane.xlu0 %3038
        %v3040 = vrcp.pop %v3009
        %v3041 = vrcp.pop %v3011
        %v3042 = vrcp.pop %v3013
        %v3043 = vrcp.pop %v3015
        %v3044 = vrcp.pop %v3017
        %v3045 = vrcp.pop %v3019
        %v3046 = vrcp.pop %v3021
        %v3047 = vrcp.pop %v3023
        %v3048 = vrcp.pop %v3025
        %v3049 = vrcp.pop %v3027
        %v3050 = vrcp.pop %v3029
        %v3051 = vrcp.pop %v3031
        %v3052 = vrcp.pop %v3033
        %v3053 = vrcp.pop %v3035
        %v3054 = vrcp.pop %v3037
        %v3055 = vrcp.pop %v3039
        %v3056 = vmul.f32 %v2977, %v3040
        %v3057 = vmul.f32 %v2979, %v3041
        %v3058 = vmul.f32 %v2981, %v3042
        %v3059 = vmul.f32 %v2983, %v3043
        %v3060 = vmul.f32 %v2985, %v3044
        %v3061 = vmul.f32 %v2987, %v3045
        %v3062 = vmul.f32 %v2989, %v3046
        %v3063 = vmul.f32 %v2991, %v3047
        %v3064 = vmul.f32 %v2993, %v3048
        %v3065 = vmul.f32 %v2995, %v3049
        %v3066 = vmul.f32 %v2997, %v3050
        %v3067 = vmul.f32 %v2999, %v3051
        %v3068 = vmul.f32 %v3001, %v3052
        %v3069 = vmul.f32 %v3003, %v3053
        %v3070 = vmul.f32 %v3005, %v3054
        %v3071 = vmul.f32 %v3007, %v3055
        %v3072 = vpack.c.bf16 %v3057, %v3056
        %v3073 = vpack.c.bf16 %v3059, %v3058
        %v3074 = vpack.c.bf16 %v3061, %v3060
        %v3075 = vpack.c.bf16 %v3063, %v3062
        %v3076 = vpack.c.bf16 %v3065, %v3064
        %v3077 = vpack.c.bf16 %v3067, %v3066
        %v3078 = vpack.c.bf16 %v3069, %v3068
        %v3079 = vpack.c.bf16 %v3071, %v3070
        %3080 = vmatprep.subr.bf16.mxu0 0
        %3081 = vmatpush1.bf16.msra.mxu0 %v1993
        %3082 = vmatprep.subr.bf16.mxu0 0
        %3083 = vmatpush1.bf16.msra.mxu0 %v1991
        %3084 = vmatprep.subr.bf16.mxu0 0
        %3085 = vmatpush1.bf16.msra.mxu0 %v1989
        %3086 = vmatprep.subr.bf16.mxu0 0
        %3087 = vmatpush1.bf16.msra.mxu0 %v1987
        %3088 = vmatprep.subr.bf16.mxu0 0
        %3089 = vmatpush1.bf16.msra.mxu0 %v1985
        %3090 = vmatprep.subr.bf16.mxu0 0
        %3091 = vmatpush1.bf16.msra.mxu0 %v1983
        %3092 = vmatprep.subr.bf16.mxu0 0
        %3093 = vmatpush1.bf16.msra.mxu0 %v1981
        %3094 = vmatprep.subr.bf16.mxu0 0
        %3095 = vmatpush1.bf16.msra.mxu0 %v1979
        %3096 = vmatprep.subr.bf16.mxu0 0
        %3097 = vmatpush2.bf16.msra.mxu0 0
        %3098 = vmatprep.subr.bf16.mxu0 0
        %3099 = vmatpush2.bf16.msra.mxu0 0
        %3100 = vmatprep.subr.bf16.mxu0 0
        %3101 = vmatpush2.bf16.msra.mxu0 0
        %3102 = vmatprep.subr.bf16.mxu0 0
        %3103 = vmatpush2.bf16.msra.mxu0 0
        %3104 = vmatprep.subr.bf16.mxu0 0
        %3105 = vmatpush2.bf16.msra.mxu0 0
        %3106 = vmatprep.subr.bf16.mxu0 0
        %3107 = vmatpush2.bf16.msra.mxu0 0
        %3108 = vmatprep.subr.bf16.mxu0 0
        %3109 = vmatpush2.bf16.msra.mxu0 0
        %3110 = vmatprep.subr.bf16.mxu0 0
        %3111 = vmatpush2.bf16.msra.mxu0 0
        %3112 = vmatprep.mubr.bf16.mxu0 0
        %3113 = vmatmul.mubr.bf16.gmra.mxu0 %v3072
        %v3114 = vpop.f32.mrf.mxu0
        %v3115 = vadd.f32 0.0, %v3114
        %v3116 = vpop.f32.mrf.mxu0
        %v3117 = vpop.f32.mrf.mxu0
        %v3118 = vadd.f32 0.0, %v3117
        %v3119 = vpop.f32.mrf.mxu0
        %3120 = vmatprep.mubr.bf16.mxu0 0
        %3121 = vmatmul.mubr.bf16.gmra.mxu0 %v3073
        %v3122 = vpop.f32.mrf.mxu0
        %v3123 = vadd.f32 0.0, %v3122
        %v3124 = vpop.f32.mrf.mxu0
        %v3125 = vpop.f32.mrf.mxu0
        %v3126 = vadd.f32 0.0, %v3125
        %v3127 = vpop.f32.mrf.mxu0
        %3128 = vmatprep.mubr.bf16.mxu0 0
        %3129 = vmatmul.mubr.bf16.gmra.mxu0 %v3074
        %v3130 = vpop.f32.mrf.mxu0
        %v3131 = vadd.f32 0.0, %v3130
        %v3132 = vpop.f32.mrf.mxu0
        %v3133 = vpop.f32.mrf.mxu0
        %v3134 = vadd.f32 0.0, %v3133
        %v3135 = vpop.f32.mrf.mxu0
        %3136 = vmatprep.mubr.bf16.mxu0 0
        %3137 = vmatmul.mubr.bf16.gmra.mxu0 %v3075
        %v3138 = vpop.f32.mrf.mxu0
        %v3139 = vadd.f32 0.0, %v3138
        %v3140 = vpop.f32.mrf.mxu0
        %v3141 = vpop.f32.mrf.mxu0
        %v3142 = vadd.f32 0.0, %v3141
        %v3143 = vpop.f32.mrf.mxu0
        %3144 = vmatprep.mubr.bf16.mxu0 0
        %3145 = vmatmul.mubr.bf16.gmra.mxu0 %v3076
        %v3146 = vpop.f32.mrf.mxu0
        %v3147 = vadd.f32 0.0, %v3146
        %v3148 = vpop.f32.mrf.mxu0
        %v3149 = vpop.f32.mrf.mxu0
        %v3150 = vadd.f32 0.0, %v3149
        %v3151 = vpop.f32.mrf.mxu0
        %3152 = vmatprep.mubr.bf16.mxu0 0
        %3153 = vmatmul.mubr.bf16.gmra.mxu0 %v3077
        %v3154 = vpop.f32.mrf.mxu0
        %v3155 = vadd.f32 0.0, %v3154
        %v3156 = vpop.f32.mrf.mxu0
        %v3157 = vpop.f32.mrf.mxu0
        %v3158 = vadd.f32 0.0, %v3157
        %v3159 = vpop.f32.mrf.mxu0
        %3160 = vmatprep.mubr.bf16.mxu0 0
        %3161 = vmatmul.mubr.bf16.gmra.mxu0 %v3078
        %v3162 = vpop.f32.mrf.mxu0
        %v3163 = vadd.f32 0.0, %v3162
        %v3164 = vpop.f32.mrf.mxu0
        %v3165 = vpop.f32.mrf.mxu0
        %v3166 = vadd.f32 0.0, %v3165
        %v3167 = vpop.f32.mrf.mxu0
        %3168 = vmatprep.mubr.bf16.mxu0 0
        %3169 = vmatmul.mubr.bf16.gmra.mxu0 %v3079
        %v3170 = vpop.f32.mrf.mxu0
        %v3171 = vadd.f32 0.0, %v3170
        %v3172 = vpop.f32.mrf.mxu0
        %v3173 = vpop.f32.mrf.mxu0
        %v3174 = vadd.f32 0.0, %v3173
        %v3175 = vpop.f32.mrf.mxu0
        %3176 = vdwg.mxu0
        %v3177 = vld [vmem:[#allocation16] sm:$0xff]
        %v3178 = vld [vmem:[#allocation16 + $0x8] sm:$0xff]
        %v3179 = vld [vmem:[#allocation16 + $0x10] sm:$0xff]
        %v3180 = vld [vmem:[#allocation16 + $0x18] sm:$0xff]
        %v3181 = vld [vmem:[#allocation16 + $0x20] sm:$0xff]
        %v3182 = vld [vmem:[#allocation16 + $0x28] sm:$0xff]
        %v3183 = vld [vmem:[#allocation16 + $0x30] sm:$0xff]
        %v3184 = vld [vmem:[#allocation16 + $0x38] sm:$0xff]
        %v3185 = vpack.c.bf16 %v3118, %v3115
        %v3186 = vpack.c.bf16 %v3126, %v3123
        %v3187 = vpack.c.bf16 %v3134, %v3131
        %v3188 = vpack.c.bf16 %v3142, %v3139
        %v3189 = vpack.c.bf16 %v3150, %v3147
        %v3190 = vpack.c.bf16 %v3158, %v3155
        %v3191 = vpack.c.bf16 %v3166, %v3163
        %v3192 = vpack.c.bf16 %v3174, %v3171
        %3201 = vrot.lane.b32.xlu0 %v1121, 64
        %v3202 = vpop.permute.xlu0 %3201
        %3203 = vrot.lane.b32.xlu0 %v1123, 64
        %v3204 = vpop.permute.xlu0 %3203
        %3205 = vrot.lane.b32.xlu0 %v1125, 64
        %v3206 = vpop.permute.xlu0 %3205
        %3207 = vrot.lane.b32.xlu0 %v1127, 64
        %v3208 = vpop.permute.xlu0 %3207
        %3209 = vrot.lane.b32.xlu0 %v1129, 64
        %v3210 = vpop.permute.xlu0 %3209
        %3211 = vrot.lane.b32.xlu0 %v1131, 64
        %v3212 = vpop.permute.xlu0 %3211
        %3213 = vrot.lane.b32.xlu0 %v1133, 64
        %v3214 = vpop.permute.xlu0 %3213
        %3215 = vrot.lane.b32.xlu0 %v1135, 64
        %v3216 = vpop.permute.xlu0 %3215
        %3233 = vrot.lane.b32.xlu0 %v1550, 64
        %v3234 = vpop.permute.xlu0 %3233
        %3235 = vrot.lane.b32.xlu0 %v1552, 64
        %v3236 = vpop.permute.xlu0 %3235
        %3237 = vrot.lane.b32.xlu0 %v1554, 64
        %v3238 = vpop.permute.xlu0 %3237
        %3239 = vrot.lane.b32.xlu0 %v1556, 64
        %v3240 = vpop.permute.xlu0 %3239
        %3241 = vrot.lane.b32.xlu0 %v1558, 64
        %v3242 = vpop.permute.xlu0 %3241
        %3243 = vrot.lane.b32.xlu0 %v1560, 64
        %v3244 = vpop.permute.xlu0 %3243
        %3245 = vrot.lane.b32.xlu0 %v1562, 64
        %v3246 = vpop.permute.xlu0 %3245
        %3247 = vrot.lane.b32.xlu0 %v1564, 64
        %v3248 = vpop.permute.xlu0 %3247
        %3249 = vrot.lane.b32.xlu0 %v2396, 64
        %v3250 = vpop.permute.xlu0 %3249
        %3251 = vrot.lane.b32.xlu0 %v2398, 64
        %v3252 = vpop.permute.xlu0 %3251
        %3253 = vrot.lane.b32.xlu0 %v2400, 64
        %v3254 = vpop.permute.xlu0 %3253
        %3255 = vrot.lane.b32.xlu0 %v2402, 64
        %v3256 = vpop.permute.xlu0 %3255
        %3257 = vrot.lane.b32.xlu0 %v2404, 64
        %v3258 = vpop.permute.xlu0 %3257
        %3259 = vrot.lane.b32.xlu0 %v2406, 64
        %v3260 = vpop.permute.xlu0 %3259
        %3261 = vrot.lane.b32.xlu0 %v2408, 64
        %v3262 = vpop.permute.xlu0 %3261
        %3263 = vrot.lane.b32.xlu0 %v2410, 64
        %v3264 = vpop.permute.xlu0 %3263
        %v3266 = vsel %vm2482, %v3202, 0
        %v3269 = vsel %vm2482, %v3204, 0
        %v3272 = vsel %vm2482, %v3206, 0
        %v3275 = vsel %vm2482, %v3208, 0
        %v3278 = vsel %vm2482, %v3210, 0
        %v3281 = vsel %vm2482, %v3212, 0
        %v3284 = vsel %vm2482, %v3214, 0
        %v3287 = vsel %vm2482, %v3216, 0
        %v3290 = vsel %vm2482, %v3234, 0
        %v3293 = vsel %vm2482, %v3236, 0
        %v3296 = vsel %vm2482, %v3238, 0
        %v3299 = vsel %vm2482, %v3240, 0
        %v3302 = vsel %vm2482, %v3242, 0
        %v3305 = vsel %vm2482, %v3244, 0
        %v3308 = vsel %vm2482, %v3246, 0
        %v3311 = vsel %vm2482, %v3248, 0
        %v3314 = vsel %vm2482, %v3250, 0
        %v3317 = vsel %vm2482, %v3252, 0
        %v3320 = vsel %vm2482, %v3254, 0
        %v3323 = vsel %vm2482, %v3256, 0
        %v3326 = vsel %vm2482, %v3258, 0
        %v3329 = vsel %vm2482, %v3260, 0
        %v3332 = vsel %vm2482, %v3262, 0
        %v3335 = vsel %vm2482, %v3264, 0
        %3337 = vmatprep.subr.bf16.mxu0 0
        %3338 = vmatpush1.bf16.xpose.msra.mxu0 %v3311
        %3339 = vmatprep.subr.bf16.mxu0 0
        %3340 = vmatpush1.bf16.xpose.msra.mxu0 %v3308
        %3341 = vmatprep.subr.bf16.mxu0 0
        %3342 = vmatpush1.bf16.xpose.msra.mxu0 %v3305
        %3343 = vmatprep.subr.bf16.mxu0 0
        %3344 = vmatpush1.bf16.xpose.msra.mxu0 %v3302
        %3345 = vmatprep.subr.bf16.mxu0 0
        %3346 = vmatpush1.bf16.xpose.msra.mxu0 %v3299
        %3347 = vmatprep.subr.bf16.mxu0 0
        %3348 = vmatpush1.bf16.xpose.msra.mxu0 %v3296
        %3349 = vmatprep.subr.bf16.mxu0 0
        %3350 = vmatpush1.bf16.xpose.msra.mxu0 %v3293
        %3351 = vmatprep.subr.bf16.mxu0 0
        %3352 = vmatpush1.bf16.xpose.msra.mxu0 %v3290
        %3353 = vmatprep.subr.bf16.mxu0 0
        %3354 = vmatpush2.bf16.xpose.msra.mxu0 %v3335
        %3355 = vmatprep.subr.bf16.mxu0 0
        %3356 = vmatpush2.bf16.xpose.msra.mxu0 %v3332
        %3357 = vmatprep.subr.bf16.mxu0 0
        %3358 = vmatpush2.bf16.xpose.msra.mxu0 %v3329
        %3359 = vmatprep.subr.bf16.mxu0 0
        %3360 = vmatpush2.bf16.xpose.msra.mxu0 %v3326
        %3361 = vmatprep.subr.bf16.mxu0 0
        %3362 = vmatpush2.bf16.xpose.msra.mxu0 %v3323
        %3363 = vmatprep.subr.bf16.mxu0 0
        %3364 = vmatpush2.bf16.xpose.msra.mxu0 %v3320
        %3365 = vmatprep.subr.bf16.mxu0 0
        %3366 = vmatpush2.bf16.xpose.msra.mxu0 %v3317
        %3367 = vmatprep.subr.bf16.mxu0 0
        %3368 = vmatpush2.bf16.xpose.msra.mxu0 %v3314
        %3369 = vmatprep.mubr.bf16.mxu0 0
        %3370 = vmatmul.mubr.bf16.gmra.mxu0 %v3266
        %v3371 = vpop.f32.mrf.mxu0
        %v3372 = vadd.f32 0.0, %v3371
        %v3373 = vpop.f32.mrf.mxu0
        %v3374 = vadd.f32 0.0, %v3373
        %v3375 = vpop.f32.mrf.mxu0
        %v3376 = vadd.f32 0.0, %v3375
        %v3377 = vpop.f32.mrf.mxu0
        %v3378 = vadd.f32 0.0, %v3377
        %3379 = vmatprep.mubr.bf16.mxu0 0
        %3380 = vmatmul.mubr.bf16.gmra.mxu0 %v3269
        %v3381 = vpop.f32.mrf.mxu0
        %v3382 = vadd.f32 0.0, %v3381
        %v3383 = vpop.f32.mrf.mxu0
        %v3384 = vadd.f32 0.0, %v3383
        %v3385 = vpop.f32.mrf.mxu0
        %v3386 = vadd.f32 0.0, %v3385
        %v3387 = vpop.f32.mrf.mxu0
        %v3388 = vadd.f32 0.0, %v3387
        %3389 = vmatprep.mubr.bf16.mxu0 0
        %3390 = vmatmul.mubr.bf16.gmra.mxu0 %v3272
        %v3391 = vpop.f32.mrf.mxu0
        %v3392 = vadd.f32 0.0, %v3391
        %v3393 = vpop.f32.mrf.mxu0
        %v3394 = vadd.f32 0.0, %v3393
        %v3395 = vpop.f32.mrf.mxu0
        %v3396 = vadd.f32 0.0, %v3395
        %v3397 = vpop.f32.mrf.mxu0
        %v3398 = vadd.f32 0.0, %v3397
        %3399 = vmatprep.mubr.bf16.mxu0 0
        %3400 = vmatmul.mubr.bf16.gmra.mxu0 %v3275
        %v3401 = vpop.f32.mrf.mxu0
        %v3402 = vadd.f32 0.0, %v3401
        %v3403 = vpop.f32.mrf.mxu0
        %v3404 = vadd.f32 0.0, %v3403
        %v3405 = vpop.f32.mrf.mxu0
        %v3406 = vadd.f32 0.0, %v3405
        %v3407 = vpop.f32.mrf.mxu0
        %v3408 = vadd.f32 0.0, %v3407
        %3409 = vmatprep.mubr.bf16.mxu0 0
        %3410 = vmatmul.mubr.bf16.gmra.mxu0 %v3278
        %v3411 = vpop.f32.mrf.mxu0
        %v3412 = vadd.f32 0.0, %v3411
        %v3413 = vpop.f32.mrf.mxu0
        %v3414 = vadd.f32 0.0, %v3413
        %v3415 = vpop.f32.mrf.mxu0
        %v3416 = vadd.f32 0.0, %v3415
        %v3417 = vpop.f32.mrf.mxu0
        %v3418 = vadd.f32 0.0, %v3417
        %3419 = vmatprep.mubr.bf16.mxu0 0
        %3420 = vmatmul.mubr.bf16.gmra.mxu0 %v3281
        %v3421 = vpop.f32.mrf.mxu0
        %v3422 = vadd.f32 0.0, %v3421
        %v3423 = vpop.f32.mrf.mxu0
        %v3424 = vadd.f32 0.0, %v3423
        %v3425 = vpop.f32.mrf.mxu0
        %v3426 = vadd.f32 0.0, %v3425
        %v3427 = vpop.f32.mrf.mxu0
        %v3428 = vadd.f32 0.0, %v3427
        %3429 = vmatprep.mubr.bf16.mxu0 0
        %3430 = vmatmul.mubr.bf16.gmra.mxu0 %v3284
        %v3431 = vpop.f32.mrf.mxu0
        %v3432 = vadd.f32 0.0, %v3431
        %v3433 = vpop.f32.mrf.mxu0
        %v3434 = vadd.f32 0.0, %v3433
        %v3435 = vpop.f32.mrf.mxu0
        %v3436 = vadd.f32 0.0, %v3435
        %v3437 = vpop.f32.mrf.mxu0
        %v3438 = vadd.f32 0.0, %v3437
        %3439 = vmatprep.mubr.bf16.mxu0 0
        %3440 = vmatmul.mubr.bf16.gmra.mxu0 %v3287
        %v3441 = vpop.f32.mrf.mxu0
        %v3442 = vadd.f32 0.0, %v3441
        %v3443 = vpop.f32.mrf.mxu0
        %v3444 = vadd.f32 0.0, %v3443
        %v3445 = vpop.f32.mrf.mxu0
        %v3446 = vadd.f32 0.0, %v3445
        %v3447 = vpop.f32.mrf.mxu0
        %v3448 = vadd.f32 0.0, %v3447
        %3449 = vdwg.mxu0
        %v3451 = vrot.slane %v2414, 1
        %v3453 = vsel %vm2482, %v3451, 0
        %3455 = vmatprep.subr.bf16.mxu0 0
        %3456 = vmatpush1.bf16.xpose.msra.mxu0 %v3311
        %3457 = vmatprep.subr.bf16.mxu0 0
        %3458 = vmatpush1.bf16.xpose.msra.mxu0 %v3308
        %3459 = vmatprep.subr.bf16.mxu0 0
        %3460 = vmatpush1.bf16.xpose.msra.mxu0 %v3305
        %3461 = vmatprep.subr.bf16.mxu0 0
        %3462 = vmatpush1.bf16.xpose.msra.mxu0 %v3302
        %3463 = vmatprep.subr.bf16.mxu0 0
        %3464 = vmatpush1.bf16.xpose.msra.mxu0 %v3299
        %3465 = vmatprep.subr.bf16.mxu0 0
        %3466 = vmatpush1.bf16.xpose.msra.mxu0 %v3296
        %3467 = vmatprep.subr.bf16.mxu0 0
        %3468 = vmatpush1.bf16.xpose.msra.mxu0 %v3293
        %3469 = vmatprep.subr.bf16.mxu0 0
        %3470 = vmatpush1.bf16.xpose.msra.mxu0 %v3290
        %3471 = vmatprep.subr.bf16.mxu0 0
        %3472 = vmatpush2.bf16.xpose.msra.mxu0 %v3335
        %3473 = vmatprep.subr.bf16.mxu0 0
        %3474 = vmatpush2.bf16.xpose.msra.mxu0 %v3332
        %3475 = vmatprep.subr.bf16.mxu0 0
        %3476 = vmatpush2.bf16.xpose.msra.mxu0 %v3329
        %3477 = vmatprep.subr.bf16.mxu0 0
        %3478 = vmatpush2.bf16.xpose.msra.mxu0 %v3326
        %3479 = vmatprep.subr.bf16.mxu0 0
        %3480 = vmatpush2.bf16.xpose.msra.mxu0 %v3323
        %3481 = vmatprep.subr.bf16.mxu0 0
        %3482 = vmatpush2.bf16.xpose.msra.mxu0 %v3320
        %3483 = vmatprep.subr.bf16.mxu0 0
        %3484 = vmatpush2.bf16.xpose.msra.mxu0 %v3317
        %3485 = vmatprep.subr.bf16.mxu0 0
        %3486 = vmatpush2.bf16.xpose.msra.mxu0 %v3314
        %3487 = vmatprep.mubr.bf16.mxu0 0
        %3488 = vmatmul.mubr.bf16.gmra.mxu0 %v3453
        %v3489 = vpop.f32.mrf.mxu0
        %v3490 = vadd.f32 0.0, %v3489
        %v3491 = vpop.f32.mrf.mxu0
        %v3492 = vadd.f32 0.0, %v3491
        %v3493 = vpop.f32.mrf.mxu0
        %v3494 = vpop.f32.mrf.mxu0
        %3495 = vdwg.mxu0
        %v3496 = vlaneseq
        %v3497 = vshrl.u32 %v3496, 7
        %v3498 = vsub.s32 0, %v3497
        %v3499 = vrot.slane %v3490, %v3498
        %v3500 = vadd.f32 %v3372, %v3499
        %v3501 = vadd.f32 %v3376, %v3499
        %v3502 = vadd.f32 %v3382, %v3499
        %v3503 = vadd.f32 %v3386, %v3499
        %v3504 = vadd.f32 %v3392, %v3499
        %v3505 = vadd.f32 %v3396, %v3499
        %v3506 = vadd.f32 %v3402, %v3499
        %v3507 = vadd.f32 %v3406, %v3499
        %v3508 = vadd.f32 %v3412, %v3499
        %v3509 = vadd.f32 %v3416, %v3499
        %v3510 = vadd.f32 %v3422, %v3499
        %v3511 = vadd.f32 %v3426, %v3499
        %v3512 = vadd.f32 %v3432, %v3499
        %v3513 = vadd.f32 %v3436, %v3499
        %v3514 = vadd.f32 %v3442, %v3499
        %v3515 = vadd.f32 %v3446, %v3499
        %v3516 = vlaneseq
        %v3517 = vshrl.u32 %v3516, 7
        %v3518 = vsub.s32 1, %v3517
        %v3519 = vrot.slane %v3492, %v3518
        %v3520 = vadd.f32 %v3374, %v3519
        %v3521 = vadd.f32 %v3378, %v3519
        %v3522 = vadd.f32 %v3384, %v3519
        %v3523 = vadd.f32 %v3388, %v3519
        %v3524 = vadd.f32 %v3394, %v3519
        %v3525 = vadd.f32 %v3398, %v3519
        %v3526 = vadd.f32 %v3404, %v3519
        %v3527 = vadd.f32 %v3408, %v3519
        %v3528 = vadd.f32 %v3414, %v3519
        %v3529 = vadd.f32 %v3418, %v3519
        %v3530 = vadd.f32 %v3424, %v3519
        %v3531 = vadd.f32 %v3428, %v3519
        %v3532 = vadd.f32 %v3434, %v3519
        %v3533 = vadd.f32 %v3438, %v3519
        %v3534 = vadd.f32 %v3444, %v3519
        %v3535 = vadd.f32 %v3448, %v3519
        %3536 = vrot.lane.b32.xlu0 %v3520, 1
        %v3537 = vpop.permute.xlu0 %3536
        %3538 = vrot.lane.b32.xlu0 %v3521, 1
        %v3539 = vpop.permute.xlu0 %3538
        %3540 = vrot.lane.b32.xlu0 %v3522, 1
        %v3541 = vpop.permute.xlu0 %3540
        %3542 = vrot.lane.b32.xlu0 %v3523, 1
        %v3543 = vpop.permute.xlu0 %3542
        %3544 = vrot.lane.b32.xlu0 %v3524, 1
        %v3545 = vpop.permute.xlu0 %3544
        %3546 = vrot.lane.b32.xlu0 %v3525, 1
        %v3547 = vpop.permute.xlu0 %3546
        %3548 = vrot.lane.b32.xlu0 %v3526, 1
        %v3549 = vpop.permute.xlu0 %3548
        %3550 = vrot.lane.b32.xlu0 %v3527, 1
        %v3551 = vpop.permute.xlu0 %3550
        %3552 = vrot.lane.b32.xlu0 %v3528, 1
        %v3553 = vpop.permute.xlu0 %3552
        %3554 = vrot.lane.b32.xlu0 %v3529, 1
        %v3555 = vpop.permute.xlu0 %3554
        %3556 = vrot.lane.b32.xlu0 %v3530, 1
        %v3557 = vpop.permute.xlu0 %3556
        %3558 = vrot.lane.b32.xlu0 %v3531, 1
        %v3559 = vpop.permute.xlu0 %3558
        %3560 = vrot.lane.b32.xlu0 %v3532, 1
        %v3561 = vpop.permute.xlu0 %3560
        %3562 = vrot.lane.b32.xlu0 %v3533, 1
        %v3563 = vpop.permute.xlu0 %3562
        %3564 = vrot.lane.b32.xlu0 %v3534, 1
        %v3565 = vpop.permute.xlu0 %3564
        %3566 = vrot.lane.b32.xlu0 %v3535, 1
        %v3567 = vpop.permute.xlu0 %3566
        %3569 = vrot.lane.b32.xlu0 %v3537, 256
        %v3570 = vpop.permute.xlu0 %3569
        %s3572 = sor.u32 256, 8
        %3573 = vrot.lane.b32.xlu0 %v3539, %s3572
        %v3574 = vpop.permute.xlu0 %3573
        %s3576 = sor.u32 256, 16
        %3577 = vrot.lane.b32.xlu0 %v3541, %s3576
        %v3578 = vpop.permute.xlu0 %3577
        %s3580 = sor.u32 256, 24
        %3581 = vrot.lane.b32.xlu0 %v3543, %s3580
        %v3582 = vpop.permute.xlu0 %3581
        %s3584 = sor.u32 256, 32
        %3585 = vrot.lane.b32.xlu0 %v3545, %s3584
        %v3586 = vpop.permute.xlu0 %3585
        %s3588 = sor.u32 256, 40
        %3589 = vrot.lane.b32.xlu0 %v3547, %s3588
        %v3590 = vpop.permute.xlu0 %3589
        %s3592 = sor.u32 256, 48
        %3593 = vrot.lane.b32.xlu0 %v3549, %s3592
        %v3594 = vpop.permute.xlu0 %3593
        %s3596 = sor.u32 256, 56
        %3597 = vrot.lane.b32.xlu0 %v3551, %s3596
        %v3598 = vpop.permute.xlu0 %3597
        %s3600 = sor.u32 256, 64
        %3601 = vrot.lane.b32.xlu0 %v3553, %s3600
        %v3602 = vpop.permute.xlu0 %3601
        %s3604 = sor.u32 256, 72
        %3605 = vrot.lane.b32.xlu0 %v3555, %s3604
        %v3606 = vpop.permute.xlu0 %3605
        %s3608 = sor.u32 256, 80
        %3609 = vrot.lane.b32.xlu0 %v3557, %s3608
        %v3610 = vpop.permute.xlu0 %3609
        %s3612 = sor.u32 256, 88
        %3613 = vrot.lane.b32.xlu0 %v3559, %s3612
        %v3614 = vpop.permute.xlu0 %3613
        %s3616 = sor.u32 256, 96
        %3617 = vrot.lane.b32.xlu0 %v3561, %s3616
        %v3618 = vpop.permute.xlu0 %3617
        %s3620 = sor.u32 256, 104
        %3621 = vrot.lane.b32.xlu0 %v3563, %s3620
        %v3622 = vpop.permute.xlu0 %3621
        %s3624 = sor.u32 256, 112
        %3625 = vrot.lane.b32.xlu0 %v3565, %s3624
        %v3626 = vpop.permute.xlu0 %3625
        %s3628 = sor.u32 256, 120
        %3629 = vrot.lane.b32.xlu0 %v3567, %s3628
        %v3630 = vpop.permute.xlu0 %3629
        %v3631 = vrot.slane %v3570, 1
        %v3632 = vrot.slane %v3574, 1
        %v3633 = vrot.slane %v3578, 1
        %v3634 = vrot.slane %v3582, 1
        %v3635 = vrot.slane %v3586, 1
        %v3636 = vrot.slane %v3590, 1
        %v3637 = vrot.slane %v3594, 1
        %v3638 = vrot.slane %v3598, 1
        %v3639 = vrot.slane %v3602, 1
        %v3640 = vrot.slane %v3606, 1
        %v3641 = vrot.slane %v3610, 1
        %v3642 = vrot.slane %v3614, 1
        %v3643 = vrot.slane %v3618, 1
        %v3644 = vrot.slane %v3622, 1
        %v3645 = vrot.slane %v3626, 1
        %v3646 = vrot.slane %v3630, 1
        %v3647 = vsel %vm2863, %v3645, %v3646
        %v3648 = vsel %vm2863, %v3644, %v3645
        %v3649 = vsel %vm2863, %v3643, %v3644
        %v3650 = vsel %vm2863, %v3642, %v3643
        %v3651 = vsel %vm2863, %v3641, %v3642
        %v3652 = vsel %vm2863, %v3640, %v3641
        %v3653 = vsel %vm2863, %v3639, %v3640
        %v3654 = vsel %vm2863, %v3638, %v3639
        %v3655 = vsel %vm2863, %v3637, %v3638
        %v3656 = vsel %vm2863, %v3636, %v3637
        %v3657 = vsel %vm2863, %v3635, %v3636
        %v3658 = vsel %vm2863, %v3634, %v3635
        %v3659 = vsel %vm2863, %v3633, %v3634
        %v3660 = vsel %vm2863, %v3632, %v3633
        %v3661 = vsel %vm2863, %v3631, %v3632
        %v3662 = vsel %vm2863, %v3646, %v3631
        %v3663 = vsel %vm2466, 0.0, %v3661
        %v3664 = vsel %vm2467, 0.0, %v3660
        %v3665 = vsel %vm2468, 0.0, %v3659
        %v3666 = vsel %vm2469, 0.0, %v3658
        %v3667 = vsel %vm2470, 0.0, %v3657
        %v3668 = vsel %vm2471, 0.0, %v3656
        %v3669 = vsel %vm2472, 0.0, %v3655
        %v3670 = vsel %vm2473, 0.0, %v3654
        %v3671 = vsel %vm2474, 0.0, %v3653
        %v3672 = vsel %vm2475, 0.0, %v3652
        %v3673 = vsel %vm2476, 0.0, %v3651
        %v3674 = vsel %vm2477, 0.0, %v3650
        %v3675 = vsel %vm2478, 0.0, %v3649
        %v3676 = vsel %vm2479, 0.0, %v3648
        %v3677 = vsel %vm2480, 0.0, %v3647
        %v3678 = vsel %vm2481, 0.0, %v3662
        %v3679 = vsel %vm2450, %v3570, %v3663
        %v3680 = vsel %vm2451, %v3574, %v3664
        %v3681 = vsel %vm2452, %v3578, %v3665
        %v3682 = vsel %vm2453, %v3582, %v3666
        %v3683 = vsel %vm2454, %v3586, %v3667
        %v3684 = vsel %vm2455, %v3590, %v3668
        %v3685 = vsel %vm2456, %v3594, %v3669
        %v3686 = vsel %vm2457, %v3598, %v3670
        %v3687 = vsel %vm2458, %v3602, %v3671
        %v3688 = vsel %vm2459, %v3606, %v3672
        %v3689 = vsel %vm2460, %v3610, %v3673
        %v3690 = vsel %vm2461, %v3614, %v3674
        %v3691 = vsel %vm2462, %v3618, %v3675
        %v3692 = vsel %vm2463, %v3622, %v3676
        %v3693 = vsel %vm2464, %v3626, %v3677
        %v3694 = vsel %vm2465, %v3630, %v3678
        %v3695 = vadd.f32 %v3500, %v3679
        %v3696 = vadd.f32 %v3501, %v3680
        %v3697 = vadd.f32 %v3502, %v3681
        %v3698 = vadd.f32 %v3503, %v3682
        %v3699 = vadd.f32 %v3504, %v3683
        %v3700 = vadd.f32 %v3505, %v3684
        %v3701 = vadd.f32 %v3506, %v3685
        %v3702 = vadd.f32 %v3507, %v3686
        %v3703 = vadd.f32 %v3508, %v3687
        %v3704 = vadd.f32 %v3509, %v3688
        %v3705 = vadd.f32 %v3510, %v3689
        %v3706 = vadd.f32 %v3511, %v3690
        %v3707 = vadd.f32 %v3512, %v3691
        %v3708 = vadd.f32 %v3513, %v3692
        %v3709 = vadd.f32 %v3514, %v3693
        %v3710 = vadd.f32 %v3515, %v3694
        %3711 = vmax.xlane.f32.xlu0 %v3695
        %v3712 = vpop.xlane.xlu0 %3711
        %3713 = vmax.xlane.f32.xlu0 %v3696
        %v3714 = vpop.xlane.xlu0 %3713
        %3715 = vmax.xlane.f32.xlu0 %v3697
        %v3716 = vpop.xlane.xlu0 %3715
        %3717 = vmax.xlane.f32.xlu0 %v3698
        %v3718 = vpop.xlane.xlu0 %3717
        %3719 = vmax.xlane.f32.xlu0 %v3699
        %v3720 = vpop.xlane.xlu0 %3719
        %3721 = vmax.xlane.f32.xlu0 %v3700
        %v3722 = vpop.xlane.xlu0 %3721
        %3723 = vmax.xlane.f32.xlu0 %v3701
        %v3724 = vpop.xlane.xlu0 %3723
        %3725 = vmax.xlane.f32.xlu0 %v3702
        %v3726 = vpop.xlane.xlu0 %3725
        %3727 = vmax.xlane.f32.xlu0 %v3703
        %v3728 = vpop.xlane.xlu0 %3727
        %3729 = vmax.xlane.f32.xlu0 %v3704
        %v3730 = vpop.xlane.xlu0 %3729
        %3731 = vmax.xlane.f32.xlu0 %v3705
        %v3732 = vpop.xlane.xlu0 %3731
        %3733 = vmax.xlane.f32.xlu0 %v3706
        %v3734 = vpop.xlane.xlu0 %3733
        %3735 = vmax.xlane.f32.xlu0 %v3707
        %v3736 = vpop.xlane.xlu0 %3735
        %3737 = vmax.xlane.f32.xlu0 %v3708
        %v3738 = vpop.xlane.xlu0 %3737
        %3739 = vmax.xlane.f32.xlu0 %v3709
        %v3740 = vpop.xlane.xlu0 %3739
        %3741 = vmax.xlane.f32.xlu0 %v3710
        %v3742 = vpop.xlane.xlu0 %3741
        %v3743 = vsub.f32 %v3695, %v3712
        %v3744 = vsub.f32 %v3696, %v3714
        %v3745 = vsub.f32 %v3697, %v3716
        %v3746 = vsub.f32 %v3698, %v3718
        %v3747 = vsub.f32 %v3699, %v3720
        %v3748 = vsub.f32 %v3700, %v3722
        %v3749 = vsub.f32 %v3701, %v3724
        %v3750 = vsub.f32 %v3702, %v3726
        %v3751 = vsub.f32 %v3703, %v3728
        %v3752 = vsub.f32 %v3704, %v3730
        %v3753 = vsub.f32 %v3705, %v3732
        %v3754 = vsub.f32 %v3706, %v3734
        %v3755 = vsub.f32 %v3707, %v3736
        %v3756 = vsub.f32 %v3708, %v3738
        %v3757 = vsub.f32 %v3709, %v3740
        %v3758 = vsub.f32 %v3710, %v3742
        %v3759 = vmul.f32 %v3743, 1.442695
        %v3760 = vpow.pop %v3759
        %v3761 = vmul.f32 %v3744, 1.442695
        %v3762 = vpow.pop %v3761
        %v3763 = vmul.f32 %v3745, 1.442695
        %v3764 = vpow.pop %v3763
        %v3765 = vmul.f32 %v3746, 1.442695
        %v3766 = vpow.pop %v3765
        %v3767 = vmul.f32 %v3747, 1.442695
        %v3768 = vpow.pop %v3767
        %v3769 = vmul.f32 %v3748, 1.442695
        %v3770 = vpow.pop %v3769
        %v3771 = vmul.f32 %v3749, 1.442695
        %v3772 = vpow.pop %v3771
        %v3773 = vmul.f32 %v3750, 1.442695
        %v3774 = vpow.pop %v3773
        %v3775 = vmul.f32 %v3751, 1.442695
        %v3776 = vpow.pop %v3775
        %v3777 = vmul.f32 %v3752, 1.442695
        %v3778 = vpow.pop %v3777
        %v3779 = vmul.f32 %v3753, 1.442695
        %v3780 = vpow.pop %v3779
        %v3781 = vmul.f32 %v3754, 1.442695
        %v3782 = vpow.pop %v3781
        %v3783 = vmul.f32 %v3755, 1.442695
        %v3784 = vpow.pop %v3783
        %v3785 = vmul.f32 %v3756, 1.442695
        %v3786 = vpow.pop %v3785
        %v3787 = vmul.f32 %v3757, 1.442695
        %v3788 = vpow.pop %v3787
        %v3789 = vmul.f32 %v3758, 1.442695
        %v3790 = vpow.pop %v3789
        %3791 = vadd.xlane.f32.xlu0 %v3760
        %v3792 = vpop.xlane.xlu0 %3791
        %3793 = vadd.xlane.f32.xlu0 %v3762
        %v3794 = vpop.xlane.xlu0 %3793
        %3795 = vadd.xlane.f32.xlu0 %v3764
        %v3796 = vpop.xlane.xlu0 %3795
        %3797 = vadd.xlane.f32.xlu0 %v3766
        %v3798 = vpop.xlane.xlu0 %3797
        %3799 = vadd.xlane.f32.xlu0 %v3768
        %v3800 = vpop.xlane.xlu0 %3799
        %3801 = vadd.xlane.f32.xlu0 %v3770
        %v3802 = vpop.xlane.xlu0 %3801
        %3803 = vadd.xlane.f32.xlu0 %v3772
        %v3804 = vpop.xlane.xlu0 %3803
        %3805 = vadd.xlane.f32.xlu0 %v3774
        %v3806 = vpop.xlane.xlu0 %3805
        %3807 = vadd.xlane.f32.xlu0 %v3776
        %v3808 = vpop.xlane.xlu0 %3807
        %3809 = vadd.xlane.f32.xlu0 %v3778
        %v3810 = vpop.xlane.xlu0 %3809
        %3811 = vadd.xlane.f32.xlu0 %v3780
        %v3812 = vpop.xlane.xlu0 %3811
        %3813 = vadd.xlane.f32.xlu0 %v3782
        %v3814 = vpop.xlane.xlu0 %3813
        %3815 = vadd.xlane.f32.xlu0 %v3784
        %v3816 = vpop.xlane.xlu0 %3815
        %3817 = vadd.xlane.f32.xlu0 %v3786
        %v3818 = vpop.xlane.xlu0 %3817
        %3819 = vadd.xlane.f32.xlu0 %v3788
        %v3820 = vpop.xlane.xlu0 %3819
        %3821 = vadd.xlane.f32.xlu0 %v3790
        %v3822 = vpop.xlane.xlu0 %3821
        %v3823 = vrcp.pop %v3792
        %v3824 = vrcp.pop %v3794
        %v3825 = vrcp.pop %v3796
        %v3826 = vrcp.pop %v3798
        %v3827 = vrcp.pop %v3800
        %v3828 = vrcp.pop %v3802
        %v3829 = vrcp.pop %v3804
        %v3830 = vrcp.pop %v3806
        %v3831 = vrcp.pop %v3808
        %v3832 = vrcp.pop %v3810
        %v3833 = vrcp.pop %v3812
        %v3834 = vrcp.pop %v3814
        %v3835 = vrcp.pop %v3816
        %v3836 = vrcp.pop %v3818
        %v3837 = vrcp.pop %v3820
        %v3838 = vrcp.pop %v3822
        %v3839 = vmul.f32 %v3760, %v3823
        %v3840 = vmul.f32 %v3762, %v3824
        %v3841 = vmul.f32 %v3764, %v3825
        %v3842 = vmul.f32 %v3766, %v3826
        %v3843 = vmul.f32 %v3768, %v3827
        %v3844 = vmul.f32 %v3770, %v3828
        %v3845 = vmul.f32 %v3772, %v3829
        %v3846 = vmul.f32 %v3774, %v3830
        %v3847 = vmul.f32 %v3776, %v3831
        %v3848 = vmul.f32 %v3778, %v3832
        %v3849 = vmul.f32 %v3780, %v3833
        %v3850 = vmul.f32 %v3782, %v3834
        %v3851 = vmul.f32 %v3784, %v3835
        %v3852 = vmul.f32 %v3786, %v3836
        %v3853 = vmul.f32 %v3788, %v3837
        %v3854 = vmul.f32 %v3790, %v3838
        %v3855 = vpack.c.bf16 %v3840, %v3839
        %v3856 = vpack.c.bf16 %v3842, %v3841
        %v3857 = vpack.c.bf16 %v3844, %v3843
        %v3858 = vpack.c.bf16 %v3846, %v3845
        %v3859 = vpack.c.bf16 %v3848, %v3847
        %v3860 = vpack.c.bf16 %v3850, %v3849
        %v3861 = vpack.c.bf16 %v3852, %v3851
        %v3862 = vpack.c.bf16 %v3854, %v3853
        %3871 = vrot.lane.b32.xlu0 %v1979, 64
        %v3872 = vpop.permute.xlu0 %3871
        %3873 = vrot.lane.b32.xlu0 %v1981, 64
        %v3874 = vpop.permute.xlu0 %3873
        %3875 = vrot.lane.b32.xlu0 %v1983, 64
        %v3876 = vpop.permute.xlu0 %3875
        %3877 = vrot.lane.b32.xlu0 %v1985, 64
        %v3878 = vpop.permute.xlu0 %3877
        %3879 = vrot.lane.b32.xlu0 %v1987, 64
        %v3880 = vpop.permute.xlu0 %3879
        %3881 = vrot.lane.b32.xlu0 %v1989, 64
        %v3882 = vpop.permute.xlu0 %3881
        %3883 = vrot.lane.b32.xlu0 %v1991, 64
        %v3884 = vpop.permute.xlu0 %3883
        %3885 = vrot.lane.b32.xlu0 %v1993, 64
        %v3886 = vpop.permute.xlu0 %3885
        %3895 = vmatprep.subr.bf16.mxu0 0
        %3896 = vmatpush1.bf16.msra.mxu0 %v3886
        %3897 = vmatprep.subr.bf16.mxu0 0
        %3898 = vmatpush1.bf16.msra.mxu0 %v3884
        %3899 = vmatprep.subr.bf16.mxu0 0
        %3900 = vmatpush1.bf16.msra.mxu0 %v3882
        %3901 = vmatprep.subr.bf16.mxu0 0
        %3902 = vmatpush1.bf16.msra.mxu0 %v3880
        %3903 = vmatprep.subr.bf16.mxu0 0
        %3904 = vmatpush1.bf16.msra.mxu0 %v3878
        %3905 = vmatprep.subr.bf16.mxu0 0
        %3906 = vmatpush1.bf16.msra.mxu0 %v3876
        %3907 = vmatprep.subr.bf16.mxu0 0
        %3908 = vmatpush1.bf16.msra.mxu0 %v3874
        %3909 = vmatprep.subr.bf16.mxu0 0
        %3910 = vmatpush1.bf16.msra.mxu0 %v3872
        %3911 = vmatprep.subr.bf16.mxu0 0
        %3912 = vmatpush2.bf16.msra.mxu0 0
        %3913 = vmatprep.subr.bf16.mxu0 0
        %3914 = vmatpush2.bf16.msra.mxu0 0
        %3915 = vmatprep.subr.bf16.mxu0 0
        %3916 = vmatpush2.bf16.msra.mxu0 0
        %3917 = vmatprep.subr.bf16.mxu0 0
        %3918 = vmatpush2.bf16.msra.mxu0 0
        %3919 = vmatprep.subr.bf16.mxu0 0
        %3920 = vmatpush2.bf16.msra.mxu0 0
        %3921 = vmatprep.subr.bf16.mxu0 0
        %3922 = vmatpush2.bf16.msra.mxu0 0
        %3923 = vmatprep.subr.bf16.mxu0 0
        %3924 = vmatpush2.bf16.msra.mxu0 0
        %3925 = vmatprep.subr.bf16.mxu0 0
        %3926 = vmatpush2.bf16.msra.mxu0 0
        %3927 = vmatprep.mubr.bf16.mxu0 0
        %3928 = vmatmul.mubr.bf16.gmra.mxu0 %v3855
        %v3929 = vpop.f32.mrf.mxu0
        %v3930 = vadd.f32 0.0, %v3929
        %v3931 = vpop.f32.mrf.mxu0
        %v3932 = vpop.f32.mrf.mxu0
        %v3933 = vadd.f32 0.0, %v3932
        %v3934 = vpop.f32.mrf.mxu0
        %3935 = vmatprep.mubr.bf16.mxu0 0
        %3936 = vmatmul.mubr.bf16.gmra.mxu0 %v3856
        %v3937 = vpop.f32.mrf.mxu0
        %v3938 = vadd.f32 0.0, %v3937
        %v3939 = vpop.f32.mrf.mxu0
        %v3940 = vpop.f32.mrf.mxu0
        %v3941 = vadd.f32 0.0, %v3940
        %v3942 = vpop.f32.mrf.mxu0
        %3943 = vmatprep.mubr.bf16.mxu0 0
        %3944 = vmatmul.mubr.bf16.gmra.mxu0 %v3857
        %v3945 = vpop.f32.mrf.mxu0
        %v3946 = vadd.f32 0.0, %v3945
        %v3947 = vpop.f32.mrf.mxu0
        %v3948 = vpop.f32.mrf.mxu0
        %v3949 = vadd.f32 0.0, %v3948
        %v3950 = vpop.f32.mrf.mxu0
        %3951 = vmatprep.mubr.bf16.mxu0 0
        %3952 = vmatmul.mubr.bf16.gmra.mxu0 %v3858
        %v3953 = vpop.f32.mrf.mxu0
        %v3954 = vadd.f32 0.0, %v3953
        %v3955 = vpop.f32.mrf.mxu0
        %v3956 = vpop.f32.mrf.mxu0
        %v3957 = vadd.f32 0.0, %v3956
        %v3958 = vpop.f32.mrf.mxu0
        %3959 = vmatprep.mubr.bf16.mxu0 0
        %3960 = vmatmul.mubr.bf16.gmra.mxu0 %v3859
        %v3961 = vpop.f32.mrf.mxu0
        %v3962 = vadd.f32 0.0, %v3961
        %v3963 = vpop.f32.mrf.mxu0
        %v3964 = vpop.f32.mrf.mxu0
        %v3965 = vadd.f32 0.0, %v3964
        %v3966 = vpop.f32.mrf.mxu0
        %3967 = vmatprep.mubr.bf16.mxu0 0
        %3968 = vmatmul.mubr.bf16.gmra.mxu0 %v3860
        %v3969 = vpop.f32.mrf.mxu0
        %v3970 = vadd.f32 0.0, %v3969
        %v3971 = vpop.f32.mrf.mxu0
        %v3972 = vpop.f32.mrf.mxu0
        %v3973 = vadd.f32 0.0, %v3972
        %v3974 = vpop.f32.mrf.mxu0
        %3975 = vmatprep.mubr.bf16.mxu0 0
        %3976 = vmatmul.mubr.bf16.gmra.mxu0 %v3861
        %v3977 = vpop.f32.mrf.mxu0
        %v3978 = vadd.f32 0.0, %v3977
        %v3979 = vpop.f32.mrf.mxu0
        %v3980 = vpop.f32.mrf.mxu0
        %v3981 = vadd.f32 0.0, %v3980
        %v3982 = vpop.f32.mrf.mxu0
        %3983 = vmatprep.mubr.bf16.mxu0 0
        %3984 = vmatmul.mubr.bf16.gmra.mxu0 %v3862
        %v3985 = vpop.f32.mrf.mxu0
        %v3986 = vadd.f32 0.0, %v3985
        %v3987 = vpop.f32.mrf.mxu0
        %v3988 = vpop.f32.mrf.mxu0
        %v3989 = vadd.f32 0.0, %v3988
        %v3990 = vpop.f32.mrf.mxu0
        %3991 = vdwg.mxu0
        %v3992 = vld [vmem:[#allocation16 + $0x40] sm:$0xff]
        %v3993 = vld [vmem:[#allocation16 + $0x48] sm:$0xff]
        %v3994 = vld [vmem:[#allocation16 + $0x50] sm:$0xff]
        %v3995 = vld [vmem:[#allocation16 + $0x58] sm:$0xff]
        %v3996 = vld [vmem:[#allocation16 + $0x60] sm:$0xff]
        %v3997 = vld [vmem:[#allocation16 + $0x68] sm:$0xff]
        %v3998 = vld [vmem:[#allocation16 + $0x70] sm:$0xff]
        %v3999 = vld [vmem:[#allocation16 + $0x78] sm:$0xff]
        %v4000 = vpack.c.bf16 %v3933, %v3930
        %v4001 = vpack.c.bf16 %v3941, %v3938
        %v4002 = vpack.c.bf16 %v3949, %v3946
        %v4003 = vpack.c.bf16 %v3957, %v3954
        %v4004 = vpack.c.bf16 %v3965, %v3962
        %v4005 = vpack.c.bf16 %v3973, %v3970
        %v4006 = vpack.c.bf16 %v3981, %v3978
        %v4007 = vpack.c.bf16 %v3989, %v3986
        %v4016 = vunpack.c.l.b16 %v3992
        %v4017 = vunpack.c.h.b16 %v3992
        %v4018 = vunpack.c.l.b16 %v3993
        %v4019 = vunpack.c.h.b16 %v3993
        %v4020 = vunpack.c.l.b16 %v3994
        %v4021 = vunpack.c.h.b16 %v3994
        %v4022 = vunpack.c.l.b16 %v3995
        %v4023 = vunpack.c.h.b16 %v3995
        %v4024 = vunpack.c.l.b16 %v3996
        %v4025 = vunpack.c.h.b16 %v3996
        %v4026 = vunpack.c.l.b16 %v3997
        %v4027 = vunpack.c.h.b16 %v3997
        %v4028 = vunpack.c.l.b16 %v3998
        %v4029 = vunpack.c.h.b16 %v3998
        %v4030 = vunpack.c.l.b16 %v3999
        %v4031 = vunpack.c.h.b16 %v3999
        %v4032 = vpack.c.b16 %v4018, %v4016
        %v4033 = vpack.c.b16 %v4019, %v4017
        %v4034 = vpack.c.b16 %v4022, %v4020
        %v4035 = vpack.c.b16 %v4023, %v4021
        %v4036 = vpack.c.b16 %v4026, %v4024
        %v4037 = vpack.c.b16 %v4027, %v4025
        %v4038 = vpack.c.b16 %v4030, %v4028
        %v4039 = vpack.c.b16 %v4031, %v4029
        %v4049 = vsel %vm2482, %v4000, 0
        %v4052 = vsel %vm2482, %v4001, 0
        %v4055 = vsel %vm2482, %v4002, 0
        %v4058 = vsel %vm2482, %v4003, 0
        %v4061 = vsel %vm2482, %v4004, 0
        %v4064 = vsel %vm2482, %v4005, 0
        %v4067 = vsel %vm2482, %v4006, 0
        %v4070 = vsel %vm2482, %v4007, 0
        %4072 = vmatprep.subr.bf16.mxu0 0
        %4073 = vmatpush1.bf16.msra.mxu0 0
        %4074 = vmatprep.subr.bf16.mxu0 0
        %4075 = vmatpush1.bf16.msra.mxu0 0
        %4076 = vmatprep.subr.bf16.mxu0 0
        %4077 = vmatpush1.bf16.msra.mxu0 0
        %4078 = vmatprep.subr.bf16.mxu0 0
        %4079 = vmatpush1.bf16.msra.mxu0 0
        %4080 = vmatprep.subr.bf16.mxu0 %v4039
        %4081 = vmatpush1.bf16.msra.mxu0 %v4038
        %4082 = vmatprep.subr.bf16.mxu0 %v4037
        %4083 = vmatpush1.bf16.msra.mxu0 %v4036
        %4084 = vmatprep.subr.bf16.mxu0 %v4035
        %4085 = vmatpush1.bf16.msra.mxu0 %v4034
        %4086 = vmatprep.subr.bf16.mxu0 %v4033
        %4087 = vmatpush1.bf16.msra.mxu0 %v4032
        %4088 = vmatprep.subr.bf16.mxu0 0
        %4089 = vmatpush2.bf16.msra.mxu0 0
        %4090 = vmatprep.subr.bf16.mxu0 0
        %4091 = vmatpush2.bf16.msra.mxu0 0
        %4092 = vmatprep.subr.bf16.mxu0 0
        %4093 = vmatpush2.bf16.msra.mxu0 0
        %4094 = vmatprep.subr.bf16.mxu0 0
        %4095 = vmatpush2.bf16.msra.mxu0 0
        %4096 = vmatprep.subr.bf16.mxu0 0
        %4097 = vmatpush2.bf16.msra.mxu0 0
        %4098 = vmatprep.subr.bf16.mxu0 0
        %4099 = vmatpush2.bf16.msra.mxu0 0
        %4100 = vmatprep.subr.bf16.mxu0 0
        %4101 = vmatpush2.bf16.msra.mxu0 0
        %4102 = vmatprep.subr.bf16.mxu0 0
        %4103 = vmatpush2.bf16.msra.mxu0 0
        %4104 = vmatprep.mubr.bf16.mxu0 0
        %4105 = vmatmul.mubr.bf16.gmra.mxu0 %v4049
        %v4106 = vpop.f32.mrf.mxu0
        %v4107 = vadd.f32 0.0, %v4106
        %v4108 = vpop.f32.mrf.mxu0
        %v4109 = vadd.f32 0.0, %v4108
        %v4110 = vpop.f32.mrf.mxu0
        %v4111 = vadd.f32 0.0, %v4110
        %v4112 = vpop.f32.mrf.mxu0
        %v4113 = vadd.f32 0.0, %v4112
        %4114 = vmatprep.mubr.bf16.mxu0 0
        %4115 = vmatmul.mubr.bf16.gmra.mxu0 %v4052
        %v4116 = vpop.f32.mrf.mxu0
        %v4117 = vadd.f32 0.0, %v4116
        %v4118 = vpop.f32.mrf.mxu0
        %v4119 = vadd.f32 0.0, %v4118
        %v4120 = vpop.f32.mrf.mxu0
        %v4121 = vadd.f32 0.0, %v4120
        %v4122 = vpop.f32.mrf.mxu0
        %v4123 = vadd.f32 0.0, %v4122
        %4124 = vmatprep.mubr.bf16.mxu0 0
        %4125 = vmatmul.mubr.bf16.gmra.mxu0 %v4055
        %v4126 = vpop.f32.mrf.mxu0
        %v4127 = vadd.f32 0.0, %v4126
        %v4128 = vpop.f32.mrf.mxu0
        %v4129 = vadd.f32 0.0, %v4128
        %v4130 = vpop.f32.mrf.mxu0
        %v4131 = vadd.f32 0.0, %v4130
        %v4132 = vpop.f32.mrf.mxu0
        %v4133 = vadd.f32 0.0, %v4132
        %4134 = vmatprep.mubr.bf16.mxu0 0
        %4135 = vmatmul.mubr.bf16.gmra.mxu0 %v4058
        %v4136 = vpop.f32.mrf.mxu0
        %v4137 = vadd.f32 0.0, %v4136
        %v4138 = vpop.f32.mrf.mxu0
        %v4139 = vadd.f32 0.0, %v4138
        %v4140 = vpop.f32.mrf.mxu0
        %v4141 = vadd.f32 0.0, %v4140
        %v4142 = vpop.f32.mrf.mxu0
        %v4143 = vadd.f32 0.0, %v4142
        %4144 = vmatprep.mubr.bf16.mxu0 0
        %4145 = vmatmul.mubr.bf16.gmra.mxu0 %v4061
        %v4146 = vpop.f32.mrf.mxu0
        %v4147 = vadd.f32 0.0, %v4146
        %v4148 = vpop.f32.mrf.mxu0
        %v4149 = vadd.f32 0.0, %v4148
        %v4150 = vpop.f32.mrf.mxu0
        %v4151 = vadd.f32 0.0, %v4150
        %v4152 = vpop.f32.mrf.mxu0
        %v4153 = vadd.f32 0.0, %v4152
        %4154 = vmatprep.mubr.bf16.mxu0 0
        %4155 = vmatmul.mubr.bf16.gmra.mxu0 %v4064
        %v4156 = vpop.f32.mrf.mxu0
        %v4157 = vadd.f32 0.0, %v4156
        %v4158 = vpop.f32.mrf.mxu0
        %v4159 = vadd.f32 0.0, %v4158
        %v4160 = vpop.f32.mrf.mxu0
        %v4161 = vadd.f32 0.0, %v4160
        %v4162 = vpop.f32.mrf.mxu0
        %v4163 = vadd.f32 0.0, %v4162
        %4164 = vmatprep.mubr.bf16.mxu0 0
        %4165 = vmatmul.mubr.bf16.gmra.mxu0 %v4067
        %v4166 = vpop.f32.mrf.mxu0
        %v4167 = vadd.f32 0.0, %v4166
        %v4168 = vpop.f32.mrf.mxu0
        %v4169 = vadd.f32 0.0, %v4168
        %v4170 = vpop.f32.mrf.mxu0
        %v4171 = vadd.f32 0.0, %v4170
        %v4172 = vpop.f32.mrf.mxu0
        %v4173 = vadd.f32 0.0, %v4172
        %4174 = vmatprep.mubr.bf16.mxu0 0
        %4175 = vmatmul.mubr.bf16.gmra.mxu0 %v4070
        %v4176 = vpop.f32.mrf.mxu0
        %v4177 = vadd.f32 0.0, %v4176
        %v4178 = vpop.f32.mrf.mxu0
        %v4179 = vadd.f32 0.0, %v4178
        %v4180 = vpop.f32.mrf.mxu0
        %v4181 = vadd.f32 0.0, %v4180
        %v4182 = vpop.f32.mrf.mxu0
        %v4183 = vadd.f32 0.0, %v4182
        %4184 = vdwg.mxu0
        %v4193 = vunpack.c.l.b16 %v3177
        %v4194 = vunpack.c.h.b16 %v3177
        %v4195 = vunpack.c.l.b16 %v3178
        %v4196 = vunpack.c.h.b16 %v3178
        %v4197 = vunpack.c.l.b16 %v3179
        %v4198 = vunpack.c.h.b16 %v3179
        %v4199 = vunpack.c.l.b16 %v3180
        %v4200 = vunpack.c.h.b16 %v3180
        %v4201 = vunpack.c.l.b16 %v3181
        %v4202 = vunpack.c.h.b16 %v3181
        %v4203 = vunpack.c.l.b16 %v3182
        %v4204 = vunpack.c.h.b16 %v3182
        %v4205 = vunpack.c.l.b16 %v3183
        %v4206 = vunpack.c.h.b16 %v3183
        %v4207 = vunpack.c.l.b16 %v3184
        %v4208 = vunpack.c.h.b16 %v3184
        %v4209 = vpack.c.b16 %v4195, %v4193
        %v4210 = vpack.c.b16 %v4196, %v4194
        %v4211 = vpack.c.b16 %v4199, %v4197
        %v4212 = vpack.c.b16 %v4200, %v4198
        %v4213 = vpack.c.b16 %v4203, %v4201
        %v4214 = vpack.c.b16 %v4204, %v4202
        %v4215 = vpack.c.b16 %v4207, %v4205
        %v4216 = vpack.c.b16 %v4208, %v4206
        %v4226 = vsel %vm2482, %v3185, 0
        %v4229 = vsel %vm2482, %v3186, 0
        %v4232 = vsel %vm2482, %v3187, 0
        %v4235 = vsel %vm2482, %v3188, 0
        %v4238 = vsel %vm2482, %v3189, 0
        %v4241 = vsel %vm2482, %v3190, 0
        %v4244 = vsel %vm2482, %v3191, 0
        %v4247 = vsel %vm2482, %v3192, 0
        %4249 = vmatprep.subr.bf16.mxu0 0
        %4250 = vmatpush1.bf16.msra.mxu0 0
        %4251 = vmatprep.subr.bf16.mxu0 0
        %4252 = vmatpush1.bf16.msra.mxu0 0
        %4253 = vmatprep.subr.bf16.mxu0 0
        %4254 = vmatpush1.bf16.msra.mxu0 0
        %4255 = vmatprep.subr.bf16.mxu0 0
        %4256 = vmatpush1.bf16.msra.mxu0 0
        %4257 = vmatprep.subr.bf16.mxu0 %v4216
        %4258 = vmatpush1.bf16.msra.mxu0 %v4215
        %4259 = vmatprep.subr.bf16.mxu0 %v4214
        %4260 = vmatpush1.bf16.msra.mxu0 %v4213
        %4261 = vmatprep.subr.bf16.mxu0 %v4212
        %4262 = vmatpush1.bf16.msra.mxu0 %v4211
        %4263 = vmatprep.subr.bf16.mxu0 %v4210
        %4264 = vmatpush1.bf16.msra.mxu0 %v4209
        %4265 = vmatprep.subr.bf16.mxu0 0
        %4266 = vmatpush2.bf16.msra.mxu0 0
        %4267 = vmatprep.subr.bf16.mxu0 0
        %4268 = vmatpush2.bf16.msra.mxu0 0
        %4269 = vmatprep.subr.bf16.mxu0 0
        %4270 = vmatpush2.bf16.msra.mxu0 0
        %4271 = vmatprep.subr.bf16.mxu0 0
        %4272 = vmatpush2.bf16.msra.mxu0 0
        %4273 = vmatprep.subr.bf16.mxu0 0
        %4274 = vmatpush2.bf16.msra.mxu0 0
        %4275 = vmatprep.subr.bf16.mxu0 0
        %4276 = vmatpush2.bf16.msra.mxu0 0
        %4277 = vmatprep.subr.bf16.mxu0 0
        %4278 = vmatpush2.bf16.msra.mxu0 0
        %4279 = vmatprep.subr.bf16.mxu0 0
        %4280 = vmatpush2.bf16.msra.mxu0 0
        %4281 = vmatprep.mubr.bf16.mxu0 0
        %4282 = vmatmul.mubr.bf16.gmra.mxu0 %v4226
        %v4283 = vpop.f32.mrf.mxu0
        %v4284 = vadd.f32 %v4107, %v4283
        %v4285 = vpop.f32.mrf.mxu0
        %v4286 = vadd.f32 %v4109, %v4285
        %v4287 = vpop.f32.mrf.mxu0
        %v4288 = vadd.f32 %v4111, %v4287
        %v4289 = vpop.f32.mrf.mxu0
        %v4290 = vadd.f32 %v4113, %v4289
        %4291 = vmatprep.mubr.bf16.mxu0 0
        %4292 = vmatmul.mubr.bf16.gmra.mxu0 %v4229
        %v4293 = vpop.f32.mrf.mxu0
        %v4294 = vadd.f32 %v4117, %v4293
        %v4295 = vpop.f32.mrf.mxu0
        %v4296 = vadd.f32 %v4119, %v4295
        %v4297 = vpop.f32.mrf.mxu0
        %v4298 = vadd.f32 %v4121, %v4297
        %v4299 = vpop.f32.mrf.mxu0
        %v4300 = vadd.f32 %v4123, %v4299
        %4301 = vmatprep.mubr.bf16.mxu0 0
        %4302 = vmatmul.mubr.bf16.gmra.mxu0 %v4232
        %v4303 = vpop.f32.mrf.mxu0
        %v4304 = vadd.f32 %v4127, %v4303
        %v4305 = vpop.f32.mrf.mxu0
        %v4306 = vadd.f32 %v4129, %v4305
        %v4307 = vpop.f32.mrf.mxu0
        %v4308 = vadd.f32 %v4131, %v4307
        %v4309 = vpop.f32.mrf.mxu0
        %v4310 = vadd.f32 %v4133, %v4309
        %4311 = vmatprep.mubr.bf16.mxu0 0
        %4312 = vmatmul.mubr.bf16.gmra.mxu0 %v4235
        %v4313 = vpop.f32.mrf.mxu0
        %v4314 = vadd.f32 %v4137, %v4313
        %v4315 = vpop.f32.mrf.mxu0
        %v4316 = vadd.f32 %v4139, %v4315
        %v4317 = vpop.f32.mrf.mxu0
        %v4318 = vadd.f32 %v4141, %v4317
        %v4319 = vpop.f32.mrf.mxu0
        %v4320 = vadd.f32 %v4143, %v4319
        %4321 = vmatprep.mubr.bf16.mxu0 0
        %4322 = vmatmul.mubr.bf16.gmra.mxu0 %v4238
        %v4323 = vpop.f32.mrf.mxu0
        %v4324 = vadd.f32 %v4147, %v4323
        %v4325 = vpop.f32.mrf.mxu0
        %v4326 = vadd.f32 %v4149, %v4325
        %v4327 = vpop.f32.mrf.mxu0
        %v4328 = vadd.f32 %v4151, %v4327
        %v4329 = vpop.f32.mrf.mxu0
        %v4330 = vadd.f32 %v4153, %v4329
        %4331 = vmatprep.mubr.bf16.mxu0 0
        %4332 = vmatmul.mubr.bf16.gmra.mxu0 %v4241
        %v4333 = vpop.f32.mrf.mxu0
        %v4334 = vadd.f32 %v4157, %v4333
        %v4335 = vpop.f32.mrf.mxu0
        %v4336 = vadd.f32 %v4159, %v4335
        %v4337 = vpop.f32.mrf.mxu0
        %v4338 = vadd.f32 %v4161, %v4337
        %v4339 = vpop.f32.mrf.mxu0
        %v4340 = vadd.f32 %v4163, %v4339
        %4341 = vmatprep.mubr.bf16.mxu0 0
        %4342 = vmatmul.mubr.bf16.gmra.mxu0 %v4244
        %v4343 = vpop.f32.mrf.mxu0
        %v4344 = vadd.f32 %v4167, %v4343
        %v4345 = vpop.f32.mrf.mxu0
        %v4346 = vadd.f32 %v4169, %v4345
        %v4347 = vpop.f32.mrf.mxu0
        %v4348 = vadd.f32 %v4171, %v4347
        %v4349 = vpop.f32.mrf.mxu0
        %v4350 = vadd.f32 %v4173, %v4349
        %4351 = vmatprep.mubr.bf16.mxu0 0
        %4352 = vmatmul.mubr.bf16.gmra.mxu0 %v4247
        %v4353 = vpop.f32.mrf.mxu0
        %v4354 = vadd.f32 %v4177, %v4353
        %v4355 = vpop.f32.mrf.mxu0
        %v4356 = vadd.f32 %v4179, %v4355
        %v4357 = vpop.f32.mrf.mxu0
        %v4358 = vadd.f32 %v4181, %v4357
        %v4359 = vpop.f32.mrf.mxu0
        %v4360 = vadd.f32 %v4183, %v4359
        %4361 = vdwg.mxu0
        %v4363 = vsel %vm2482, %v1122, 0
        %v4366 = vsel %vm2482, %v1124, 0
        %v4369 = vsel %vm2482, %v1126, 0
        %v4372 = vsel %vm2482, %v1128, 0
        %v4375 = vsel %vm2482, %v1130, 0
        %v4378 = vsel %vm2482, %v1132, 0
        %v4381 = vsel %vm2482, %v1134, 0
        %v4384 = vsel %vm2482, %v1136, 0
        %v4387 = vsel %vm2482, %v1551, 0
        %v4390 = vsel %vm2482, %v1553, 0
        %v4393 = vsel %vm2482, %v1555, 0
        %v4396 = vsel %vm2482, %v1557, 0
        %v4399 = vsel %vm2482, %v1559, 0
        %v4402 = vsel %vm2482, %v1561, 0
        %v4405 = vsel %vm2482, %v1563, 0
        %v4408 = vsel %vm2482, %v1565, 0
        %v4411 = vsel %vm2482, %v2397, 0
        %v4414 = vsel %vm2482, %v2399, 0
        %v4417 = vsel %vm2482, %v2401, 0
        %v4420 = vsel %vm2482, %v2403, 0
        %v4423 = vsel %vm2482, %v2405, 0
        %v4426 = vsel %vm2482, %v2407, 0
        %v4429 = vsel %vm2482, %v2409, 0
        %v4432 = vsel %vm2482, %v2411, 0
        %4434 = vmatprep.subr.bf16.mxu0 0
        %4435 = vmatpush1.bf16.xpose.msra.mxu0 %v4408
        %4436 = vmatprep.subr.bf16.mxu0 0
        %4437 = vmatpush1.bf16.xpose.msra.mxu0 %v4405
        %4438 = vmatprep.subr.bf16.mxu0 0
        %4439 = vmatpush1.bf16.xpose.msra.mxu0 %v4402
        %4440 = vmatprep.subr.bf16.mxu0 0
        %4441 = vmatpush1.bf16.xpose.msra.mxu0 %v4399
        %4442 = vmatprep.subr.bf16.mxu0 0
        %4443 = vmatpush1.bf16.xpose.msra.mxu0 %v4396
        %4444 = vmatprep.subr.bf16.mxu0 0
        %4445 = vmatpush1.bf16.xpose.msra.mxu0 %v4393
        %4446 = vmatprep.subr.bf16.mxu0 0
        %4447 = vmatpush1.bf16.xpose.msra.mxu0 %v4390
        %4448 = vmatprep.subr.bf16.mxu0 0
        %4449 = vmatpush1.bf16.xpose.msra.mxu0 %v4387
        %4450 = vmatprep.subr.bf16.mxu0 0
        %4451 = vmatpush2.bf16.xpose.msra.mxu0 %v4432
        %4452 = vmatprep.subr.bf16.mxu0 0
        %4453 = vmatpush2.bf16.xpose.msra.mxu0 %v4429
        %4454 = vmatprep.subr.bf16.mxu0 0
        %4455 = vmatpush2.bf16.xpose.msra.mxu0 %v4426
        %4456 = vmatprep.subr.bf16.mxu0 0
        %4457 = vmatpush2.bf16.xpose.msra.mxu0 %v4423
        %4458 = vmatprep.subr.bf16.mxu0 0
        %4459 = vmatpush2.bf16.xpose.msra.mxu0 %v4420
        %4460 = vmatprep.subr.bf16.mxu0 0
        %4461 = vmatpush2.bf16.xpose.msra.mxu0 %v4417
        %4462 = vmatprep.subr.bf16.mxu0 0
        %4463 = vmatpush2.bf16.xpose.msra.mxu0 %v4414
        %4464 = vmatprep.subr.bf16.mxu0 0
        %4465 = vmatpush2.bf16.xpose.msra.mxu0 %v4411
        %4466 = vmatprep.mubr.bf16.mxu0 0
        %4467 = vmatmul.mubr.bf16.gmra.mxu0 %v4363
        %v4468 = vpop.f32.mrf.mxu0
        %v4469 = vadd.f32 0.0, %v4468
        %v4470 = vpop.f32.mrf.mxu0
        %v4471 = vadd.f32 0.0, %v4470
        %v4472 = vpop.f32.mrf.mxu0
        %v4473 = vadd.f32 0.0, %v4472
        %v4474 = vpop.f32.mrf.mxu0
        %v4475 = vadd.f32 0.0, %v4474
        %4476 = vmatprep.mubr.bf16.mxu0 0
        %4477 = vmatmul.mubr.bf16.gmra.mxu0 %v4366
        %v4478 = vpop.f32.mrf.mxu0
        %v4479 = vadd.f32 0.0, %v4478
        %v4480 = vpop.f32.mrf.mxu0
        %v4481 = vadd.f32 0.0, %v4480
        %v4482 = vpop.f32.mrf.mxu0
        %v4483 = vadd.f32 0.0, %v4482
        %v4484 = vpop.f32.mrf.mxu0
        %v4485 = vadd.f32 0.0, %v4484
        %4486 = vmatprep.mubr.bf16.mxu0 0
        %4487 = vmatmul.mubr.bf16.gmra.mxu0 %v4369
        %v4488 = vpop.f32.mrf.mxu0
        %v4489 = vadd.f32 0.0, %v4488
        %v4490 = vpop.f32.mrf.mxu0
        %v4491 = vadd.f32 0.0, %v4490
        %v4492 = vpop.f32.mrf.mxu0
        %v4493 = vadd.f32 0.0, %v4492
        %v4494 = vpop.f32.mrf.mxu0
        %v4495 = vadd.f32 0.0, %v4494
        %4496 = vmatprep.mubr.bf16.mxu0 0
        %4497 = vmatmul.mubr.bf16.gmra.mxu0 %v4372
        %v4498 = vpop.f32.mrf.mxu0
        %v4499 = vadd.f32 0.0, %v4498
        %v4500 = vpop.f32.mrf.mxu0
        %v4501 = vadd.f32 0.0, %v4500
        %v4502 = vpop.f32.mrf.mxu0
        %v4503 = vadd.f32 0.0, %v4502
        %v4504 = vpop.f32.mrf.mxu0
        %v4505 = vadd.f32 0.0, %v4504
        %4506 = vmatprep.mubr.bf16.mxu0 0
        %4507 = vmatmul.mubr.bf16.gmra.mxu0 %v4375
        %v4508 = vpop.f32.mrf.mxu0
        %v4509 = vadd.f32 0.0, %v4508
        %v4510 = vpop.f32.mrf.mxu0
        %v4511 = vadd.f32 0.0, %v4510
        %v4512 = vpop.f32.mrf.mxu0
        %v4513 = vadd.f32 0.0, %v4512
        %v4514 = vpop.f32.mrf.mxu0
        %v4515 = vadd.f32 0.0, %v4514
        %4516 = vmatprep.mubr.bf16.mxu0 0
        %4517 = vmatmul.mubr.bf16.gmra.mxu0 %v4378
        %v4518 = vpop.f32.mrf.mxu0
        %v4519 = vadd.f32 0.0, %v4518
        %v4520 = vpop.f32.mrf.mxu0
        %v4521 = vadd.f32 0.0, %v4520
        %v4522 = vpop.f32.mrf.mxu0
        %v4523 = vadd.f32 0.0, %v4522
        %v4524 = vpop.f32.mrf.mxu0
        %v4525 = vadd.f32 0.0, %v4524
        %4526 = vmatprep.mubr.bf16.mxu0 0
        %4527 = vmatmul.mubr.bf16.gmra.mxu0 %v4381
        %v4528 = vpop.f32.mrf.mxu0
        %v4529 = vadd.f32 0.0, %v4528
        %v4530 = vpop.f32.mrf.mxu0
        %v4531 = vadd.f32 0.0, %v4530
        %v4532 = vpop.f32.mrf.mxu0
        %v4533 = vadd.f32 0.0, %v4532
        %v4534 = vpop.f32.mrf.mxu0
        %v4535 = vadd.f32 0.0, %v4534
        %4536 = vmatprep.mubr.bf16.mxu0 0
        %4537 = vmatmul.mubr.bf16.gmra.mxu0 %v4384
        %v4538 = vpop.f32.mrf.mxu0
        %v4539 = vadd.f32 0.0, %v4538
        %v4540 = vpop.f32.mrf.mxu0
        %v4541 = vadd.f32 0.0, %v4540
        %v4542 = vpop.f32.mrf.mxu0
        %v4543 = vadd.f32 0.0, %v4542
        %v4544 = vpop.f32.mrf.mxu0
        %v4545 = vadd.f32 0.0, %v4544
        %4546 = vdwg.mxu0
        %v4547 = vrot.slane %v2414, 2
        %v4549 = vsel %vm2482, %v4547, 0
        %4551 = vmatprep.subr.bf16.mxu0 0
        %4552 = vmatpush1.bf16.xpose.msra.mxu0 %v4408
        %4553 = vmatprep.subr.bf16.mxu0 0
        %4554 = vmatpush1.bf16.xpose.msra.mxu0 %v4405
        %4555 = vmatprep.subr.bf16.mxu0 0
        %4556 = vmatpush1.bf16.xpose.msra.mxu0 %v4402
        %4557 = vmatprep.subr.bf16.mxu0 0
        %4558 = vmatpush1.bf16.xpose.msra.mxu0 %v4399
        %4559 = vmatprep.subr.bf16.mxu0 0
        %4560 = vmatpush1.bf16.xpose.msra.mxu0 %v4396
        %4561 = vmatprep.subr.bf16.mxu0 0
        %4562 = vmatpush1.bf16.xpose.msra.mxu0 %v4393
        %4563 = vmatprep.subr.bf16.mxu0 0
        %4564 = vmatpush1.bf16.xpose.msra.mxu0 %v4390
        %4565 = vmatprep.subr.bf16.mxu0 0
        %4566 = vmatpush1.bf16.xpose.msra.mxu0 %v4387
        %4567 = vmatprep.subr.bf16.mxu0 0
        %4568 = vmatpush2.bf16.xpose.msra.mxu0 %v4432
        %4569 = vmatprep.subr.bf16.mxu0 0
        %4570 = vmatpush2.bf16.xpose.msra.mxu0 %v4429
        %4571 = vmatprep.subr.bf16.mxu0 0
        %4572 = vmatpush2.bf16.xpose.msra.mxu0 %v4426
        %4573 = vmatprep.subr.bf16.mxu0 0
        %4574 = vmatpush2.bf16.xpose.msra.mxu0 %v4423
        %4575 = vmatprep.subr.bf16.mxu0 0
        %4576 = vmatpush2.bf16.xpose.msra.mxu0 %v4420
        %4577 = vmatprep.subr.bf16.mxu0 0
        %4578 = vmatpush2.bf16.xpose.msra.mxu0 %v4417
        %4579 = vmatprep.subr.bf16.mxu0 0
        %4580 = vmatpush2.bf16.xpose.msra.mxu0 %v4414
        %4581 = vmatprep.subr.bf16.mxu0 0
        %4582 = vmatpush2.bf16.xpose.msra.mxu0 %v4411
        %4583 = vmatprep.mubr.bf16.mxu0 0
        %4584 = vmatmul.mubr.bf16.gmra.mxu0 %v4549
        %v4585 = vpop.f32.mrf.mxu0
        %v4586 = vadd.f32 0.0, %v4585
        %v4587 = vpop.f32.mrf.mxu0
        %v4588 = vadd.f32 0.0, %v4587
        %v4589 = vpop.f32.mrf.mxu0
        %v4590 = vpop.f32.mrf.mxu0
        %4591 = vdwg.mxu0
        %v4592 = vlaneseq
        %v4593 = vshrl.u32 %v4592, 7
        %v4594 = vsub.s32 0, %v4593
        %v4595 = vrot.slane %v4586, %v4594
        %v4596 = vadd.f32 %v4469, %v4595
        %v4597 = vadd.f32 %v4473, %v4595
        %v4598 = vadd.f32 %v4479, %v4595
        %v4599 = vadd.f32 %v4483, %v4595
        %v4600 = vadd.f32 %v4489, %v4595
        %v4601 = vadd.f32 %v4493, %v4595
        %v4602 = vadd.f32 %v4499, %v4595
        %v4603 = vadd.f32 %v4503, %v4595
        %v4604 = vadd.f32 %v4509, %v4595
        %v4605 = vadd.f32 %v4513, %v4595
        %v4606 = vadd.f32 %v4519, %v4595
        %v4607 = vadd.f32 %v4523, %v4595
        %v4608 = vadd.f32 %v4529, %v4595
        %v4609 = vadd.f32 %v4533, %v4595
        %v4610 = vadd.f32 %v4539, %v4595
        %v4611 = vadd.f32 %v4543, %v4595
        %v4612 = vlaneseq
        %v4613 = vshrl.u32 %v4612, 7
        %v4614 = vsub.s32 1, %v4613
        %v4615 = vrot.slane %v4588, %v4614
        %v4616 = vadd.f32 %v4471, %v4615
        %v4617 = vadd.f32 %v4475, %v4615
        %v4618 = vadd.f32 %v4481, %v4615
        %v4619 = vadd.f32 %v4485, %v4615
        %v4620 = vadd.f32 %v4491, %v4615
        %v4621 = vadd.f32 %v4495, %v4615
        %v4622 = vadd.f32 %v4501, %v4615
        %v4623 = vadd.f32 %v4505, %v4615
        %v4624 = vadd.f32 %v4511, %v4615
        %v4625 = vadd.f32 %v4515, %v4615
        %v4626 = vadd.f32 %v4521, %v4615
        %v4627 = vadd.f32 %v4525, %v4615
        %v4628 = vadd.f32 %v4531, %v4615
        %v4629 = vadd.f32 %v4535, %v4615
        %v4630 = vadd.f32 %v4541, %v4615
        %v4631 = vadd.f32 %v4545, %v4615
        %4632 = vrot.lane.b32.xlu0 %v4616, 1
        %v4633 = vpop.permute.xlu0 %4632
        %4634 = vrot.lane.b32.xlu0 %v4617, 1
        %v4635 = vpop.permute.xlu0 %4634
        %4636 = vrot.lane.b32.xlu0 %v4618, 1
        %v4637 = vpop.permute.xlu0 %4636
        %4638 = vrot.lane.b32.xlu0 %v4619, 1
        %v4639 = vpop.permute.xlu0 %4638
        %4640 = vrot.lane.b32.xlu0 %v4620, 1
        %v4641 = vpop.permute.xlu0 %4640
        %4642 = vrot.lane.b32.xlu0 %v4621, 1
        %v4643 = vpop.permute.xlu0 %4642
        %4644 = vrot.lane.b32.xlu0 %v4622, 1
        %v4645 = vpop.permute.xlu0 %4644
        %4646 = vrot.lane.b32.xlu0 %v4623, 1
        %v4647 = vpop.permute.xlu0 %4646
        %4648 = vrot.lane.b32.xlu0 %v4624, 1
        %v4649 = vpop.permute.xlu0 %4648
        %4650 = vrot.lane.b32.xlu0 %v4625, 1
        %v4651 = vpop.permute.xlu0 %4650
        %4652 = vrot.lane.b32.xlu0 %v4626, 1
        %v4653 = vpop.permute.xlu0 %4652
        %4654 = vrot.lane.b32.xlu0 %v4627, 1
        %v4655 = vpop.permute.xlu0 %4654
        %4656 = vrot.lane.b32.xlu0 %v4628, 1
        %v4657 = vpop.permute.xlu0 %4656
        %4658 = vrot.lane.b32.xlu0 %v4629, 1
        %v4659 = vpop.permute.xlu0 %4658
        %4660 = vrot.lane.b32.xlu0 %v4630, 1
        %v4661 = vpop.permute.xlu0 %4660
        %4662 = vrot.lane.b32.xlu0 %v4631, 1
        %v4663 = vpop.permute.xlu0 %4662
        %4665 = vrot.lane.b32.xlu0 %v4633, 256
        %v4666 = vpop.permute.xlu0 %4665
        %s4668 = sor.u32 256, 8
        %4669 = vrot.lane.b32.xlu0 %v4635, %s4668
        %v4670 = vpop.permute.xlu0 %4669
        %s4672 = sor.u32 256, 16
        %4673 = vrot.lane.b32.xlu0 %v4637, %s4672
        %v4674 = vpop.permute.xlu0 %4673
        %s4676 = sor.u32 256, 24
        %4677 = vrot.lane.b32.xlu0 %v4639, %s4676
        %v4678 = vpop.permute.xlu0 %4677
        %s4680 = sor.u32 256, 32
        %4681 = vrot.lane.b32.xlu0 %v4641, %s4680
        %v4682 = vpop.permute.xlu0 %4681
        %s4684 = sor.u32 256, 40
        %4685 = vrot.lane.b32.xlu0 %v4643, %s4684
        %v4686 = vpop.permute.xlu0 %4685
        %s4688 = sor.u32 256, 48
        %4689 = vrot.lane.b32.xlu0 %v4645, %s4688
        %v4690 = vpop.permute.xlu0 %4689
        %s4692 = sor.u32 256, 56
        %4693 = vrot.lane.b32.xlu0 %v4647, %s4692
        %v4694 = vpop.permute.xlu0 %4693
        %s4696 = sor.u32 256, 64
        %4697 = vrot.lane.b32.xlu0 %v4649, %s4696
        %v4698 = vpop.permute.xlu0 %4697
        %s4700 = sor.u32 256, 72
        %4701 = vrot.lane.b32.xlu0 %v4651, %s4700
        %v4702 = vpop.permute.xlu0 %4701
        %s4704 = sor.u32 256, 80
        %4705 = vrot.lane.b32.xlu0 %v4653, %s4704
        %v4706 = vpop.permute.xlu0 %4705
        %s4708 = sor.u32 256, 88
        %4709 = vrot.lane.b32.xlu0 %v4655, %s4708
        %v4710 = vpop.permute.xlu0 %4709
        %s4712 = sor.u32 256, 96
        %4713 = vrot.lane.b32.xlu0 %v4657, %s4712
        %v4714 = vpop.permute.xlu0 %4713
        %s4716 = sor.u32 256, 104
        %4717 = vrot.lane.b32.xlu0 %v4659, %s4716
        %v4718 = vpop.permute.xlu0 %4717
        %s4720 = sor.u32 256, 112
        %4721 = vrot.lane.b32.xlu0 %v4661, %s4720
        %v4722 = vpop.permute.xlu0 %4721
        %s4724 = sor.u32 256, 120
        %4725 = vrot.lane.b32.xlu0 %v4663, %s4724
        %v4726 = vpop.permute.xlu0 %4725
        %v4727 = vrot.slane %v4666, 1
        %v4728 = vrot.slane %v4670, 1
        %v4729 = vrot.slane %v4674, 1
        %v4730 = vrot.slane %v4678, 1
        %v4731 = vrot.slane %v4682, 1
        %v4732 = vrot.slane %v4686, 1
        %v4733 = vrot.slane %v4690, 1
        %v4734 = vrot.slane %v4694, 1
        %v4735 = vrot.slane %v4698, 1
        %v4736 = vrot.slane %v4702, 1
        %v4737 = vrot.slane %v4706, 1
        %v4738 = vrot.slane %v4710, 1
        %v4739 = vrot.slane %v4714, 1
        %v4740 = vrot.slane %v4718, 1
        %v4741 = vrot.slane %v4722, 1
        %v4742 = vrot.slane %v4726, 1
        %v4743 = vsel %vm2863, %v4741, %v4742
        %v4744 = vsel %vm2863, %v4740, %v4741
        %v4745 = vsel %vm2863, %v4739, %v4740
        %v4746 = vsel %vm2863, %v4738, %v4739
        %v4747 = vsel %vm2863, %v4737, %v4738
        %v4748 = vsel %vm2863, %v4736, %v4737
        %v4749 = vsel %vm2863, %v4735, %v4736
        %v4750 = vsel %vm2863, %v4734, %v4735
        %v4751 = vsel %vm2863, %v4733, %v4734
        %v4752 = vsel %vm2863, %v4732, %v4733
        %v4753 = vsel %vm2863, %v4731, %v4732
        %v4754 = vsel %vm2863, %v4730, %v4731
        %v4755 = vsel %vm2863, %v4729, %v4730
        %v4756 = vsel %vm2863, %v4728, %v4729
        %v4757 = vsel %vm2863, %v4727, %v4728
        %v4758 = vsel %vm2863, %v4742, %v4727
        %v4759 = vsel %vm2466, 0.0, %v4757
        %v4760 = vsel %vm2467, 0.0, %v4756
        %v4761 = vsel %vm2468, 0.0, %v4755
        %v4762 = vsel %vm2469, 0.0, %v4754
        %v4763 = vsel %vm2470, 0.0, %v4753
        %v4764 = vsel %vm2471, 0.0, %v4752
        %v4765 = vsel %vm2472, 0.0, %v4751
        %v4766 = vsel %vm2473, 0.0, %v4750
        %v4767 = vsel %vm2474, 0.0, %v4749
        %v4768 = vsel %vm2475, 0.0, %v4748
        %v4769 = vsel %vm2476, 0.0, %v4747
        %v4770 = vsel %vm2477, 0.0, %v4746
        %v4771 = vsel %vm2478, 0.0, %v4745
        %v4772 = vsel %vm2479, 0.0, %v4744
        %v4773 = vsel %vm2480, 0.0, %v4743
        %v4774 = vsel %vm2481, 0.0, %v4758
        %v4775 = vsel %vm2450, %v4666, %v4759
        %v4776 = vsel %vm2451, %v4670, %v4760
        %v4777 = vsel %vm2452, %v4674, %v4761
        %v4778 = vsel %vm2453, %v4678, %v4762
        %v4779 = vsel %vm2454, %v4682, %v4763
        %v4780 = vsel %vm2455, %v4686, %v4764
        %v4781 = vsel %vm2456, %v4690, %v4765
        %v4782 = vsel %vm2457, %v4694, %v4766
        %v4783 = vsel %vm2458, %v4698, %v4767
        %v4784 = vsel %vm2459, %v4702, %v4768
        %v4785 = vsel %vm2460, %v4706, %v4769
        %v4786 = vsel %vm2461, %v4710, %v4770
        %v4787 = vsel %vm2462, %v4714, %v4771
        %v4788 = vsel %vm2463, %v4718, %v4772
        %v4789 = vsel %vm2464, %v4722, %v4773
        %v4790 = vsel %vm2465, %v4726, %v4774
        %v4791 = vadd.f32 %v4596, %v4775
        %v4792 = vadd.f32 %v4597, %v4776
        %v4793 = vadd.f32 %v4598, %v4777
        %v4794 = vadd.f32 %v4599, %v4778
        %v4795 = vadd.f32 %v4600, %v4779
        %v4796 = vadd.f32 %v4601, %v4780
        %v4797 = vadd.f32 %v4602, %v4781
        %v4798 = vadd.f32 %v4603, %v4782
        %v4799 = vadd.f32 %v4604, %v4783
        %v4800 = vadd.f32 %v4605, %v4784
        %v4801 = vadd.f32 %v4606, %v4785
        %v4802 = vadd.f32 %v4607, %v4786
        %v4803 = vadd.f32 %v4608, %v4787
        %v4804 = vadd.f32 %v4609, %v4788
        %v4805 = vadd.f32 %v4610, %v4789
        %v4806 = vadd.f32 %v4611, %v4790
        %4807 = vmax.xlane.f32.xlu0 %v4791
        %v4808 = vpop.xlane.xlu0 %4807
        %4809 = vmax.xlane.f32.xlu0 %v4792
        %v4810 = vpop.xlane.xlu0 %4809
        %4811 = vmax.xlane.f32.xlu0 %v4793
        %v4812 = vpop.xlane.xlu0 %4811
        %4813 = vmax.xlane.f32.xlu0 %v4794
        %v4814 = vpop.xlane.xlu0 %4813
        %4815 = vmax.xlane.f32.xlu0 %v4795
        %v4816 = vpop.xlane.xlu0 %4815
        %4817 = vmax.xlane.f32.xlu0 %v4796
        %v4818 = vpop.xlane.xlu0 %4817
        %4819 = vmax.xlane.f32.xlu0 %v4797
        %v4820 = vpop.xlane.xlu0 %4819
        %4821 = vmax.xlane.f32.xlu0 %v4798
        %v4822 = vpop.xlane.xlu0 %4821
        %4823 = vmax.xlane.f32.xlu0 %v4799
        %v4824 = vpop.xlane.xlu0 %4823
        %4825 = vmax.xlane.f32.xlu0 %v4800
        %v4826 = vpop.xlane.xlu0 %4825
        %4827 = vmax.xlane.f32.xlu0 %v4801
        %v4828 = vpop.xlane.xlu0 %4827
        %4829 = vmax.xlane.f32.xlu0 %v4802
        %v4830 = vpop.xlane.xlu0 %4829
        %4831 = vmax.xlane.f32.xlu0 %v4803
        %v4832 = vpop.xlane.xlu0 %4831
        %4833 = vmax.xlane.f32.xlu0 %v4804
        %v4834 = vpop.xlane.xlu0 %4833
        %4835 = vmax.xlane.f32.xlu0 %v4805
        %v4836 = vpop.xlane.xlu0 %4835
        %4837 = vmax.xlane.f32.xlu0 %v4806
        %v4838 = vpop.xlane.xlu0 %4837
        %v4839 = vsub.f32 %v4791, %v4808
        %v4840 = vsub.f32 %v4792, %v4810
        %v4841 = vsub.f32 %v4793, %v4812
        %v4842 = vsub.f32 %v4794, %v4814
        %v4843 = vsub.f32 %v4795, %v4816
        %v4844 = vsub.f32 %v4796, %v4818
        %v4845 = vsub.f32 %v4797, %v4820
        %v4846 = vsub.f32 %v4798, %v4822
        %v4847 = vsub.f32 %v4799, %v4824
        %v4848 = vsub.f32 %v4800, %v4826
        %v4849 = vsub.f32 %v4801, %v4828
        %v4850 = vsub.f32 %v4802, %v4830
        %v4851 = vsub.f32 %v4803, %v4832
        %v4852 = vsub.f32 %v4804, %v4834
        %v4853 = vsub.f32 %v4805, %v4836
        %v4854 = vsub.f32 %v4806, %v4838
        %v4855 = vmul.f32 %v4839, 1.442695
        %v4856 = vpow.pop %v4855
        %v4857 = vmul.f32 %v4840, 1.442695
        %v4858 = vpow.pop %v4857
        %v4859 = vmul.f32 %v4841, 1.442695
        %v4860 = vpow.pop %v4859
        %v4861 = vmul.f32 %v4842, 1.442695
        %v4862 = vpow.pop %v4861
        %v4863 = vmul.f32 %v4843, 1.442695
        %v4864 = vpow.pop %v4863
        %v4865 = vmul.f32 %v4844, 1.442695
        %v4866 = vpow.pop %v4865
        %v4867 = vmul.f32 %v4845, 1.442695
        %v4868 = vpow.pop %v4867
        %v4869 = vmul.f32 %v4846, 1.442695
        %v4870 = vpow.pop %v4869
        %v4871 = vmul.f32 %v4847, 1.442695
        %v4872 = vpow.pop %v4871
        %v4873 = vmul.f32 %v4848, 1.442695
        %v4874 = vpow.pop %v4873
        %v4875 = vmul.f32 %v4849, 1.442695
        %v4876 = vpow.pop %v4875
        %v4877 = vmul.f32 %v4850, 1.442695
        %v4878 = vpow.pop %v4877
        %v4879 = vmul.f32 %v4851, 1.442695
        %v4880 = vpow.pop %v4879
        %v4881 = vmul.f32 %v4852, 1.442695
        %v4882 = vpow.pop %v4881
        %v4883 = vmul.f32 %v4853, 1.442695
        %v4884 = vpow.pop %v4883
        %v4885 = vmul.f32 %v4854, 1.442695
        %v4886 = vpow.pop %v4885
        %4887 = vadd.xlane.f32.xlu0 %v4856
        %v4888 = vpop.xlane.xlu0 %4887
        %4889 = vadd.xlane.f32.xlu0 %v4858
        %v4890 = vpop.xlane.xlu0 %4889
        %4891 = vadd.xlane.f32.xlu0 %v4860
        %v4892 = vpop.xlane.xlu0 %4891
        %4893 = vadd.xlane.f32.xlu0 %v4862
        %v4894 = vpop.xlane.xlu0 %4893
        %4895 = vadd.xlane.f32.xlu0 %v4864
        %v4896 = vpop.xlane.xlu0 %4895
        %4897 = vadd.xlane.f32.xlu0 %v4866
        %v4898 = vpop.xlane.xlu0 %4897
        %4899 = vadd.xlane.f32.xlu0 %v4868
        %v4900 = vpop.xlane.xlu0 %4899
        %4901 = vadd.xlane.f32.xlu0 %v4870
        %v4902 = vpop.xlane.xlu0 %4901
        %4903 = vadd.xlane.f32.xlu0 %v4872
        %v4904 = vpop.xlane.xlu0 %4903
        %4905 = vadd.xlane.f32.xlu0 %v4874
        %v4906 = vpop.xlane.xlu0 %4905
        %4907 = vadd.xlane.f32.xlu0 %v4876
        %v4908 = vpop.xlane.xlu0 %4907
        %4909 = vadd.xlane.f32.xlu0 %v4878
        %v4910 = vpop.xlane.xlu0 %4909
        %4911 = vadd.xlane.f32.xlu0 %v4880
        %v4912 = vpop.xlane.xlu0 %4911
        %4913 = vadd.xlane.f32.xlu0 %v4882
        %v4914 = vpop.xlane.xlu0 %4913
        %4915 = vadd.xlane.f32.xlu0 %v4884
        %v4916 = vpop.xlane.xlu0 %4915
        %4917 = vadd.xlane.f32.xlu0 %v4886
        %v4918 = vpop.xlane.xlu0 %4917
        %v4919 = vrcp.pop %v4888
        %v4920 = vrcp.pop %v4890
        %v4921 = vrcp.pop %v4892
        %v4922 = vrcp.pop %v4894
        %v4923 = vrcp.pop %v4896
        %v4924 = vrcp.pop %v4898
        %v4925 = vrcp.pop %v4900
        %v4926 = vrcp.pop %v4902
        %v4927 = vrcp.pop %v4904
        %v4928 = vrcp.pop %v4906
        %v4929 = vrcp.pop %v4908
        %v4930 = vrcp.pop %v4910
        %v4931 = vrcp.pop %v4912
        %v4932 = vrcp.pop %v4914
        %v4933 = vrcp.pop %v4916
        %v4934 = vrcp.pop %v4918
        %v4935 = vmul.f32 %v4856, %v4919
        %v4936 = vmul.f32 %v4858, %v4920
        %v4937 = vmul.f32 %v4860, %v4921
        %v4938 = vmul.f32 %v4862, %v4922
        %v4939 = vmul.f32 %v4864, %v4923
        %v4940 = vmul.f32 %v4866, %v4924
        %v4941 = vmul.f32 %v4868, %v4925
        %v4942 = vmul.f32 %v4870, %v4926
        %v4943 = vmul.f32 %v4872, %v4927
        %v4944 = vmul.f32 %v4874, %v4928
        %v4945 = vmul.f32 %v4876, %v4929
        %v4946 = vmul.f32 %v4878, %v4930
        %v4947 = vmul.f32 %v4880, %v4931
        %v4948 = vmul.f32 %v4882, %v4932
        %v4949 = vmul.f32 %v4884, %v4933
        %v4950 = vmul.f32 %v4886, %v4934
        %v4951 = vpack.c.bf16 %v4936, %v4935
        %v4952 = vpack.c.bf16 %v4938, %v4937
        %v4953 = vpack.c.bf16 %v4940, %v4939
        %v4954 = vpack.c.bf16 %v4942, %v4941
        %v4955 = vpack.c.bf16 %v4944, %v4943
        %v4956 = vpack.c.bf16 %v4946, %v4945
        %v4957 = vpack.c.bf16 %v4948, %v4947
        %v4958 = vpack.c.bf16 %v4950, %v4949
        %4959 = vmatprep.subr.bf16.mxu0 0
        %4960 = vmatpush1.bf16.msra.mxu0 %v1994
        %4961 = vmatprep.subr.bf16.mxu0 0
        %4962 = vmatpush1.bf16.msra.mxu0 %v1992
        %4963 = vmatprep.subr.bf16.mxu0 0
        %4964 = vmatpush1.bf16.msra.mxu0 %v1990
        %4965 = vmatprep.subr.bf16.mxu0 0
        %4966 = vmatpush1.bf16.msra.mxu0 %v1988
        %4967 = vmatprep.subr.bf16.mxu0 0
        %4968 = vmatpush1.bf16.msra.mxu0 %v1986
        %4969 = vmatprep.subr.bf16.mxu0 0
        %4970 = vmatpush1.bf16.msra.mxu0 %v1984
        %4971 = vmatprep.subr.bf16.mxu0 0
        %4972 = vmatpush1.bf16.msra.mxu0 %v1982
        %4973 = vmatprep.subr.bf16.mxu0 0
        %4974 = vmatpush1.bf16.msra.mxu0 %v1980
        %4975 = vmatprep.subr.bf16.mxu0 0
        %4976 = vmatpush2.bf16.msra.mxu0 0
        %4977 = vmatprep.subr.bf16.mxu0 0
        %4978 = vmatpush2.bf16.msra.mxu0 0
        %4979 = vmatprep.subr.bf16.mxu0 0
        %4980 = vmatpush2.bf16.msra.mxu0 0
        %4981 = vmatprep.subr.bf16.mxu0 0
        %4982 = vmatpush2.bf16.msra.mxu0 0
        %4983 = vmatprep.subr.bf16.mxu0 0
        %4984 = vmatpush2.bf16.msra.mxu0 0
        %4985 = vmatprep.subr.bf16.mxu0 0
        %4986 = vmatpush2.bf16.msra.mxu0 0
        %4987 = vmatprep.subr.bf16.mxu0 0
        %4988 = vmatpush2.bf16.msra.mxu0 0
        %4989 = vmatprep.subr.bf16.mxu0 0
        %4990 = vmatpush2.bf16.msra.mxu0 0
        %4991 = vmatprep.mubr.bf16.mxu0 0
        %4992 = vmatmul.mubr.bf16.gmra.mxu0 %v4951
        %v4993 = vpop.f32.mrf.mxu0
        %v4994 = vadd.f32 0.0, %v4993
        %v4995 = vpop.f32.mrf.mxu0
        %v4996 = vpop.f32.mrf.mxu0
        %v4997 = vadd.f32 0.0, %v4996
        %v4998 = vpop.f32.mrf.mxu0
        %4999 = vmatprep.mubr.bf16.mxu0 0
        %5000 = vmatmul.mubr.bf16.gmra.mxu0 %v4952
        %v5001 = vpop.f32.mrf.mxu0
        %v5002 = vadd.f32 0.0, %v5001
        %v5003 = vpop.f32.mrf.mxu0
        %v5004 = vpop.f32.mrf.mxu0
        %v5005 = vadd.f32 0.0, %v5004
        %v5006 = vpop.f32.mrf.mxu0
        %5007 = vmatprep.mubr.bf16.mxu0 0
        %5008 = vmatmul.mubr.bf16.gmra.mxu0 %v4953
        %v5009 = vpop.f32.mrf.mxu0
        %v5010 = vadd.f32 0.0, %v5009
        %v5011 = vpop.f32.mrf.mxu0
        %v5012 = vpop.f32.mrf.mxu0
        %v5013 = vadd.f32 0.0, %v5012
        %v5014 = vpop.f32.mrf.mxu0
        %5015 = vmatprep.mubr.bf16.mxu0 0
        %5016 = vmatmul.mubr.bf16.gmra.mxu0 %v4954
        %v5017 = vpop.f32.mrf.mxu0
        %v5018 = vadd.f32 0.0, %v5017
        %v5019 = vpop.f32.mrf.mxu0
        %v5020 = vpop.f32.mrf.mxu0
        %v5021 = vadd.f32 0.0, %v5020
        %v5022 = vpop.f32.mrf.mxu0
        %5023 = vmatprep.mubr.bf16.mxu0 0
        %5024 = vmatmul.mubr.bf16.gmra.mxu0 %v4955
        %v5025 = vpop.f32.mrf.mxu0
        %v5026 = vadd.f32 0.0, %v5025
        %v5027 = vpop.f32.mrf.mxu0
        %v5028 = vpop.f32.mrf.mxu0
        %v5029 = vadd.f32 0.0, %v5028
        %v5030 = vpop.f32.mrf.mxu0
        %5031 = vmatprep.mubr.bf16.mxu0 0
        %5032 = vmatmul.mubr.bf16.gmra.mxu0 %v4956
        %v5033 = vpop.f32.mrf.mxu0
        %v5034 = vadd.f32 0.0, %v5033
        %v5035 = vpop.f32.mrf.mxu0
        %v5036 = vpop.f32.mrf.mxu0
        %v5037 = vadd.f32 0.0, %v5036
        %v5038 = vpop.f32.mrf.mxu0
        %5039 = vmatprep.mubr.bf16.mxu0 0
        %5040 = vmatmul.mubr.bf16.gmra.mxu0 %v4957
        %v5041 = vpop.f32.mrf.mxu0
        %v5042 = vadd.f32 0.0, %v5041
        %v5043 = vpop.f32.mrf.mxu0
        %v5044 = vpop.f32.mrf.mxu0
        %v5045 = vadd.f32 0.0, %v5044
        %v5046 = vpop.f32.mrf.mxu0
        %5047 = vmatprep.mubr.bf16.mxu0 0
        %5048 = vmatmul.mubr.bf16.gmra.mxu0 %v4958
        %v5049 = vpop.f32.mrf.mxu0
        %v5050 = vadd.f32 0.0, %v5049
        %v5051 = vpop.f32.mrf.mxu0
        %v5052 = vpop.f32.mrf.mxu0
        %v5053 = vadd.f32 0.0, %v5052
        %v5054 = vpop.f32.mrf.mxu0
        %5055 = vdwg.mxu0
        %v5056 = vld [vmem:[#allocation16 + $0x80] sm:$0xff]
        %v5057 = vld [vmem:[#allocation16 + $0x88] sm:$0xff]
        %v5058 = vld [vmem:[#allocation16 + $0x90] sm:$0xff]
        %v5059 = vld [vmem:[#allocation16 + $0x98] sm:$0xff]
        %v5060 = vld [vmem:[#allocation16 + $0xa0] sm:$0xff]
        %v5061 = vld [vmem:[#allocation16 + $0xa8] sm:$0xff]
        %v5062 = vld [vmem:[#allocation16 + $0xb0] sm:$0xff]
        %v5063 = vld [vmem:[#allocation16 + $0xb8] sm:$0xff]
        %v5064 = vpack.c.bf16 %v4997, %v4994
        %v5065 = vpack.c.bf16 %v5005, %v5002
        %v5066 = vpack.c.bf16 %v5013, %v5010
        %v5067 = vpack.c.bf16 %v5021, %v5018
        %v5068 = vpack.c.bf16 %v5029, %v5026
        %v5069 = vpack.c.bf16 %v5037, %v5034
        %v5070 = vpack.c.bf16 %v5045, %v5042
        %v5071 = vpack.c.bf16 %v5053, %v5050
        %v5080 = vunpack.c.l.b16 %v5056
        %v5081 = vunpack.c.h.b16 %v5056
        %v5082 = vunpack.c.l.b16 %v5057
        %v5083 = vunpack.c.h.b16 %v5057
        %v5084 = vunpack.c.l.b16 %v5058
        %v5085 = vunpack.c.h.b16 %v5058
        %v5086 = vunpack.c.l.b16 %v5059
        %v5087 = vunpack.c.h.b16 %v5059
        %v5088 = vunpack.c.l.b16 %v5060
        %v5089 = vunpack.c.h.b16 %v5060
        %v5090 = vunpack.c.l.b16 %v5061
        %v5091 = vunpack.c.h.b16 %v5061
        %v5092 = vunpack.c.l.b16 %v5062
        %v5093 = vunpack.c.h.b16 %v5062
        %v5094 = vunpack.c.l.b16 %v5063
        %v5095 = vunpack.c.h.b16 %v5063
        %v5096 = vpack.c.b16 %v5082, %v5080
        %v5097 = vpack.c.b16 %v5083, %v5081
        %v5098 = vpack.c.b16 %v5086, %v5084
        %v5099 = vpack.c.b16 %v5087, %v5085
        %v5100 = vpack.c.b16 %v5090, %v5088
        %v5101 = vpack.c.b16 %v5091, %v5089
        %v5102 = vpack.c.b16 %v5094, %v5092
        %v5103 = vpack.c.b16 %v5095, %v5093
        %v5113 = vsel %vm2482, %v5064, 0
        %v5116 = vsel %vm2482, %v5065, 0
        %v5119 = vsel %vm2482, %v5066, 0
        %v5122 = vsel %vm2482, %v5067, 0
        %v5125 = vsel %vm2482, %v5068, 0
        %v5128 = vsel %vm2482, %v5069, 0
        %v5131 = vsel %vm2482, %v5070, 0
        %v5134 = vsel %vm2482, %v5071, 0
        %5136 = vmatprep.subr.bf16.mxu0 0
        %5137 = vmatpush1.bf16.msra.mxu0 0
        %5138 = vmatprep.subr.bf16.mxu0 0
        %5139 = vmatpush1.bf16.msra.mxu0 0
        %5140 = vmatprep.subr.bf16.mxu0 0
        %5141 = vmatpush1.bf16.msra.mxu0 0
        %5142 = vmatprep.subr.bf16.mxu0 0
        %5143 = vmatpush1.bf16.msra.mxu0 0
        %5144 = vmatprep.subr.bf16.mxu0 %v5103
        %5145 = vmatpush1.bf16.msra.mxu0 %v5102
        %5146 = vmatprep.subr.bf16.mxu0 %v5101
        %5147 = vmatpush1.bf16.msra.mxu0 %v5100
        %5148 = vmatprep.subr.bf16.mxu0 %v5099
        %5149 = vmatpush1.bf16.msra.mxu0 %v5098
        %5150 = vmatprep.subr.bf16.mxu0 %v5097
        %5151 = vmatpush1.bf16.msra.mxu0 %v5096
        %5152 = vmatprep.subr.bf16.mxu0 0
        %5153 = vmatpush2.bf16.msra.mxu0 0
        %5154 = vmatprep.subr.bf16.mxu0 0
        %5155 = vmatpush2.bf16.msra.mxu0 0
        %5156 = vmatprep.subr.bf16.mxu0 0
        %5157 = vmatpush2.bf16.msra.mxu0 0
        %5158 = vmatprep.subr.bf16.mxu0 0
        %5159 = vmatpush2.bf16.msra.mxu0 0
        %5160 = vmatprep.subr.bf16.mxu0 0
        %5161 = vmatpush2.bf16.msra.mxu0 0
        %5162 = vmatprep.subr.bf16.mxu0 0
        %5163 = vmatpush2.bf16.msra.mxu0 0
        %5164 = vmatprep.subr.bf16.mxu0 0
        %5165 = vmatpush2.bf16.msra.mxu0 0
        %5166 = vmatprep.subr.bf16.mxu0 0
        %5167 = vmatpush2.bf16.msra.mxu0 0
        %5168 = vmatprep.mubr.bf16.mxu0 0
        %5169 = vmatmul.mubr.bf16.gmra.mxu0 %v5113
        %v5170 = vpop.f32.mrf.mxu0
        %v5171 = vadd.f32 0.0, %v5170
        %v5172 = vpop.f32.mrf.mxu0
        %v5173 = vadd.f32 0.0, %v5172
        %v5174 = vpop.f32.mrf.mxu0
        %v5175 = vadd.f32 0.0, %v5174
        %v5176 = vpop.f32.mrf.mxu0
        %v5177 = vadd.f32 0.0, %v5176
        %5178 = vmatprep.mubr.bf16.mxu0 0
        %5179 = vmatmul.mubr.bf16.gmra.mxu0 %v5116
        %v5180 = vpop.f32.mrf.mxu0
        %v5181 = vadd.f32 0.0, %v5180
        %v5182 = vpop.f32.mrf.mxu0
        %v5183 = vadd.f32 0.0, %v5182
        %v5184 = vpop.f32.mrf.mxu0
        %v5185 = vadd.f32 0.0, %v5184
        %v5186 = vpop.f32.mrf.mxu0
        %v5187 = vadd.f32 0.0, %v5186
        %5188 = vmatprep.mubr.bf16.mxu0 0
        %5189 = vmatmul.mubr.bf16.gmra.mxu0 %v5119
        %v5190 = vpop.f32.mrf.mxu0
        %v5191 = vadd.f32 0.0, %v5190
        %v5192 = vpop.f32.mrf.mxu0
        %v5193 = vadd.f32 0.0, %v5192
        %v5194 = vpop.f32.mrf.mxu0
        %v5195 = vadd.f32 0.0, %v5194
        %v5196 = vpop.f32.mrf.mxu0
        %v5197 = vadd.f32 0.0, %v5196
        %5198 = vmatprep.mubr.bf16.mxu0 0
        %5199 = vmatmul.mubr.bf16.gmra.mxu0 %v5122
        %v5200 = vpop.f32.mrf.mxu0
        %v5201 = vadd.f32 0.0, %v5200
        %v5202 = vpop.f32.mrf.mxu0
        %v5203 = vadd.f32 0.0, %v5202
        %v5204 = vpop.f32.mrf.mxu0
        %v5205 = vadd.f32 0.0, %v5204
        %v5206 = vpop.f32.mrf.mxu0
        %v5207 = vadd.f32 0.0, %v5206
        %5208 = vmatprep.mubr.bf16.mxu0 0
        %5209 = vmatmul.mubr.bf16.gmra.mxu0 %v5125
        %v5210 = vpop.f32.mrf.mxu0
        %v5211 = vadd.f32 0.0, %v5210
        %v5212 = vpop.f32.mrf.mxu0
        %v5213 = vadd.f32 0.0, %v5212
        %v5214 = vpop.f32.mrf.mxu0
        %v5215 = vadd.f32 0.0, %v5214
        %v5216 = vpop.f32.mrf.mxu0
        %v5217 = vadd.f32 0.0, %v5216
        %5218 = vmatprep.mubr.bf16.mxu0 0
        %5219 = vmatmul.mubr.bf16.gmra.mxu0 %v5128
        %v5220 = vpop.f32.mrf.mxu0
        %v5221 = vadd.f32 0.0, %v5220
        %v5222 = vpop.f32.mrf.mxu0
        %v5223 = vadd.f32 0.0, %v5222
        %v5224 = vpop.f32.mrf.mxu0
        %v5225 = vadd.f32 0.0, %v5224
        %v5226 = vpop.f32.mrf.mxu0
        %v5227 = vadd.f32 0.0, %v5226
        %5228 = vmatprep.mubr.bf16.mxu0 0
        %5229 = vmatmul.mubr.bf16.gmra.mxu0 %v5131
        %v5230 = vpop.f32.mrf.mxu0
        %v5231 = vadd.f32 0.0, %v5230
        %v5232 = vpop.f32.mrf.mxu0
        %v5233 = vadd.f32 0.0, %v5232
        %v5234 = vpop.f32.mrf.mxu0
        %v5235 = vadd.f32 0.0, %v5234
        %v5236 = vpop.f32.mrf.mxu0
        %v5237 = vadd.f32 0.0, %v5236
        %5238 = vmatprep.mubr.bf16.mxu0 0
        %5239 = vmatmul.mubr.bf16.gmra.mxu0 %v5134
        %v5240 = vpop.f32.mrf.mxu0
        %v5241 = vadd.f32 0.0, %v5240
        %v5242 = vpop.f32.mrf.mxu0
        %v5243 = vadd.f32 0.0, %v5242
        %v5244 = vpop.f32.mrf.mxu0
        %v5245 = vadd.f32 0.0, %v5244
        %v5246 = vpop.f32.mrf.mxu0
        %v5247 = vadd.f32 0.0, %v5246
        %5248 = vdwg.mxu0
        %v5249 = vadd.f32 %v4284, %v5171
        %v5250 = vadd.f32 %v4286, %v5173
        %v5251 = vadd.f32 %v4288, %v5175
        %v5252 = vadd.f32 %v4290, %v5177
        %v5253 = vadd.f32 %v4294, %v5181
        %v5254 = vadd.f32 %v4296, %v5183
        %v5255 = vadd.f32 %v4298, %v5185
        %v5256 = vadd.f32 %v4300, %v5187
        %v5257 = vadd.f32 %v4304, %v5191
        %v5258 = vadd.f32 %v4306, %v5193
        %v5259 = vadd.f32 %v4308, %v5195
        %v5260 = vadd.f32 %v4310, %v5197
        %v5261 = vadd.f32 %v4314, %v5201
        %v5262 = vadd.f32 %v4316, %v5203
        %v5263 = vadd.f32 %v4318, %v5205
        %v5264 = vadd.f32 %v4320, %v5207
        %v5265 = vadd.f32 %v4324, %v5211
        %v5266 = vadd.f32 %v4326, %v5213
        %v5267 = vadd.f32 %v4328, %v5215
        %v5268 = vadd.f32 %v4330, %v5217
        %v5269 = vadd.f32 %v4334, %v5221
        %v5270 = vadd.f32 %v4336, %v5223
        %v5271 = vadd.f32 %v4338, %v5225
        %v5272 = vadd.f32 %v4340, %v5227
        %v5273 = vadd.f32 %v4344, %v5231
        %v5274 = vadd.f32 %v4346, %v5233
        %v5275 = vadd.f32 %v4348, %v5235
        %v5276 = vadd.f32 %v4350, %v5237
        %v5277 = vadd.f32 %v4354, %v5241
        %v5278 = vadd.f32 %v4356, %v5243
        %v5279 = vadd.f32 %v4358, %v5245
        %v5280 = vadd.f32 %v4360, %v5247
        %5289 = vrot.lane.b32.xlu0 %v1122, 64
        %v5290 = vpop.permute.xlu0 %5289
        %5291 = vrot.lane.b32.xlu0 %v1124, 64
        %v5292 = vpop.permute.xlu0 %5291
        %5293 = vrot.lane.b32.xlu0 %v1126, 64
        %v5294 = vpop.permute.xlu0 %5293
        %5295 = vrot.lane.b32.xlu0 %v1128, 64
        %v5296 = vpop.permute.xlu0 %5295
        %5297 = vrot.lane.b32.xlu0 %v1130, 64
        %v5298 = vpop.permute.xlu0 %5297
        %5299 = vrot.lane.b32.xlu0 %v1132, 64
        %v5300 = vpop.permute.xlu0 %5299
        %5301 = vrot.lane.b32.xlu0 %v1134, 64
        %v5302 = vpop.permute.xlu0 %5301
        %5303 = vrot.lane.b32.xlu0 %v1136, 64
        %v5304 = vpop.permute.xlu0 %5303
        %5321 = vrot.lane.b32.xlu0 %v1551, 64
        %v5322 = vpop.permute.xlu0 %5321
        %5323 = vrot.lane.b32.xlu0 %v1553, 64
        %v5324 = vpop.permute.xlu0 %5323
        %5325 = vrot.lane.b32.xlu0 %v1555, 64
        %v5326 = vpop.permute.xlu0 %5325
        %5327 = vrot.lane.b32.xlu0 %v1557, 64
        %v5328 = vpop.permute.xlu0 %5327
        %5329 = vrot.lane.b32.xlu0 %v1559, 64
        %v5330 = vpop.permute.xlu0 %5329
        %5331 = vrot.lane.b32.xlu0 %v1561, 64
        %v5332 = vpop.permute.xlu0 %5331
        %5333 = vrot.lane.b32.xlu0 %v1563, 64
        %v5334 = vpop.permute.xlu0 %5333
        %5335 = vrot.lane.b32.xlu0 %v1565, 64
        %v5336 = vpop.permute.xlu0 %5335
        %5337 = vrot.lane.b32.xlu0 %v2397, 64
        %v5338 = vpop.permute.xlu0 %5337
        %5339 = vrot.lane.b32.xlu0 %v2399, 64
        %v5340 = vpop.permute.xlu0 %5339
        %5341 = vrot.lane.b32.xlu0 %v2401, 64
        %v5342 = vpop.permute.xlu0 %5341
        %5343 = vrot.lane.b32.xlu0 %v2403, 64
        %v5344 = vpop.permute.xlu0 %5343
        %5345 = vrot.lane.b32.xlu0 %v2405, 64
        %v5346 = vpop.permute.xlu0 %5345
        %5347 = vrot.lane.b32.xlu0 %v2407, 64
        %v5348 = vpop.permute.xlu0 %5347
        %5349 = vrot.lane.b32.xlu0 %v2409, 64
        %v5350 = vpop.permute.xlu0 %5349
        %5351 = vrot.lane.b32.xlu0 %v2411, 64
        %v5352 = vpop.permute.xlu0 %5351
        %v5354 = vsel %vm2482, %v5290, 0
        %v5357 = vsel %vm2482, %v5292, 0
        %v5360 = vsel %vm2482, %v5294, 0
        %v5363 = vsel %vm2482, %v5296, 0
        %v5366 = vsel %vm2482, %v5298, 0
        %v5369 = vsel %vm2482, %v5300, 0
        %v5372 = vsel %vm2482, %v5302, 0
        %v5375 = vsel %vm2482, %v5304, 0
        %v5378 = vsel %vm2482, %v5322, 0
        %v5381 = vsel %vm2482, %v5324, 0
        %v5384 = vsel %vm2482, %v5326, 0
        %v5387 = vsel %vm2482, %v5328, 0
        %v5390 = vsel %vm2482, %v5330, 0
        %v5393 = vsel %vm2482, %v5332, 0
        %v5396 = vsel %vm2482, %v5334, 0
        %v5399 = vsel %vm2482, %v5336, 0
        %v5402 = vsel %vm2482, %v5338, 0
        %v5405 = vsel %vm2482, %v5340, 0
        %v5408 = vsel %vm2482, %v5342, 0
        %v5411 = vsel %vm2482, %v5344, 0
        %v5414 = vsel %vm2482, %v5346, 0
        %v5417 = vsel %vm2482, %v5348, 0
        %v5420 = vsel %vm2482, %v5350, 0
        %v5423 = vsel %vm2482, %v5352, 0
        %5425 = vmatprep.subr.bf16.mxu0 0
        %5426 = vmatpush1.bf16.xpose.msra.mxu0 %v5399
        %5427 = vmatprep.subr.bf16.mxu0 0
        %5428 = vmatpush1.bf16.xpose.msra.mxu0 %v5396
        %5429 = vmatprep.subr.bf16.mxu0 0
        %5430 = vmatpush1.bf16.xpose.msra.mxu0 %v5393
        %5431 = vmatprep.subr.bf16.mxu0 0
        %5432 = vmatpush1.bf16.xpose.msra.mxu0 %v5390
        %5433 = vmatprep.subr.bf16.mxu0 0
        %5434 = vmatpush1.bf16.xpose.msra.mxu0 %v5387
        %5435 = vmatprep.subr.bf16.mxu0 0
        %5436 = vmatpush1.bf16.xpose.msra.mxu0 %v5384
        %5437 = vmatprep.subr.bf16.mxu0 0
        %5438 = vmatpush1.bf16.xpose.msra.mxu0 %v5381
        %5439 = vmatprep.subr.bf16.mxu0 0
        %5440 = vmatpush1.bf16.xpose.msra.mxu0 %v5378
        %5441 = vmatprep.subr.bf16.mxu0 0
        %5442 = vmatpush2.bf16.xpose.msra.mxu0 %v5423
        %5443 = vmatprep.subr.bf16.mxu0 0
        %5444 = vmatpush2.bf16.xpose.msra.mxu0 %v5420
        %5445 = vmatprep.subr.bf16.mxu0 0
        %5446 = vmatpush2.bf16.xpose.msra.mxu0 %v5417
        %5447 = vmatprep.subr.bf16.mxu0 0
        %5448 = vmatpush2.bf16.xpose.msra.mxu0 %v5414
        %5449 = vmatprep.subr.bf16.mxu0 0
        %5450 = vmatpush2.bf16.xpose.msra.mxu0 %v5411
        %5451 = vmatprep.subr.bf16.mxu0 0
        %5452 = vmatpush2.bf16.xpose.msra.mxu0 %v5408
        %5453 = vmatprep.subr.bf16.mxu0 0
        %5454 = vmatpush2.bf16.xpose.msra.mxu0 %v5405
        %5455 = vmatprep.subr.bf16.mxu0 0
        %5456 = vmatpush2.bf16.xpose.msra.mxu0 %v5402
        %5457 = vmatprep.mubr.bf16.mxu0 0
        %5458 = vmatmul.mubr.bf16.gmra.mxu0 %v5354
        %v5459 = vpop.f32.mrf.mxu0
        %v5460 = vadd.f32 0.0, %v5459
        %v5461 = vpop.f32.mrf.mxu0
        %v5462 = vadd.f32 0.0, %v5461
        %v5463 = vpop.f32.mrf.mxu0
        %v5464 = vadd.f32 0.0, %v5463
        %v5465 = vpop.f32.mrf.mxu0
        %v5466 = vadd.f32 0.0, %v5465
        %5467 = vmatprep.mubr.bf16.mxu0 0
        %5468 = vmatmul.mubr.bf16.gmra.mxu0 %v5357
        %v5469 = vpop.f32.mrf.mxu0
        %v5470 = vadd.f32 0.0, %v5469
        %v5471 = vpop.f32.mrf.mxu0
        %v5472 = vadd.f32 0.0, %v5471
        %v5473 = vpop.f32.mrf.mxu0
        %v5474 = vadd.f32 0.0, %v5473
        %v5475 = vpop.f32.mrf.mxu0
        %v5476 = vadd.f32 0.0, %v5475
        %5477 = vmatprep.mubr.bf16.mxu0 0
        %5478 = vmatmul.mubr.bf16.gmra.mxu0 %v5360
        %v5479 = vpop.f32.mrf.mxu0
        %v5480 = vadd.f32 0.0, %v5479
        %v5481 = vpop.f32.mrf.mxu0
        %v5482 = vadd.f32 0.0, %v5481
        %v5483 = vpop.f32.mrf.mxu0
        %v5484 = vadd.f32 0.0, %v5483
        %v5485 = vpop.f32.mrf.mxu0
        %v5486 = vadd.f32 0.0, %v5485
        %5487 = vmatprep.mubr.bf16.mxu0 0
        %5488 = vmatmul.mubr.bf16.gmra.mxu0 %v5363
        %v5489 = vpop.f32.mrf.mxu0
        %v5490 = vadd.f32 0.0, %v5489
        %v5491 = vpop.f32.mrf.mxu0
        %v5492 = vadd.f32 0.0, %v5491
        %v5493 = vpop.f32.mrf.mxu0
        %v5494 = vadd.f32 0.0, %v5493
        %v5495 = vpop.f32.mrf.mxu0
        %v5496 = vadd.f32 0.0, %v5495
        %5497 = vmatprep.mubr.bf16.mxu0 0
        %5498 = vmatmul.mubr.bf16.gmra.mxu0 %v5366
        %v5499 = vpop.f32.mrf.mxu0
        %v5500 = vadd.f32 0.0, %v5499
        %v5501 = vpop.f32.mrf.mxu0
        %v5502 = vadd.f32 0.0, %v5501
        %v5503 = vpop.f32.mrf.mxu0
        %v5504 = vadd.f32 0.0, %v5503
        %v5505 = vpop.f32.mrf.mxu0
        %v5506 = vadd.f32 0.0, %v5505
        %5507 = vmatprep.mubr.bf16.mxu0 0
        %5508 = vmatmul.mubr.bf16.gmra.mxu0 %v5369
        %v5509 = vpop.f32.mrf.mxu0
        %v5510 = vadd.f32 0.0, %v5509
        %v5511 = vpop.f32.mrf.mxu0
        %v5512 = vadd.f32 0.0, %v5511
        %v5513 = vpop.f32.mrf.mxu0
        %v5514 = vadd.f32 0.0, %v5513
        %v5515 = vpop.f32.mrf.mxu0
        %v5516 = vadd.f32 0.0, %v5515
        %5517 = vmatprep.mubr.bf16.mxu0 0
        %5518 = vmatmul.mubr.bf16.gmra.mxu0 %v5372
        %v5519 = vpop.f32.mrf.mxu0
        %v5520 = vadd.f32 0.0, %v5519
        %v5521 = vpop.f32.mrf.mxu0
        %v5522 = vadd.f32 0.0, %v5521
        %v5523 = vpop.f32.mrf.mxu0
        %v5524 = vadd.f32 0.0, %v5523
        %v5525 = vpop.f32.mrf.mxu0
        %v5526 = vadd.f32 0.0, %v5525
        %5527 = vmatprep.mubr.bf16.mxu0 0
        %5528 = vmatmul.mubr.bf16.gmra.mxu0 %v5375
        %v5529 = vpop.f32.mrf.mxu0
        %v5530 = vadd.f32 0.0, %v5529
        %v5531 = vpop.f32.mrf.mxu0
        %v5532 = vadd.f32 0.0, %v5531
        %v5533 = vpop.f32.mrf.mxu0
        %v5534 = vadd.f32 0.0, %v5533
        %v5535 = vpop.f32.mrf.mxu0
        %v5536 = vadd.f32 0.0, %v5535
        %5537 = vdwg.mxu0
        %v5538 = vrot.slane %v2414, 3
        %v5540 = vsel %vm2482, %v5538, 0
        %5542 = vmatprep.subr.bf16.mxu0 0
        %5543 = vmatpush1.bf16.xpose.msra.mxu0 %v5399
        %5544 = vmatprep.subr.bf16.mxu0 0
        %5545 = vmatpush1.bf16.xpose.msra.mxu0 %v5396
        %5546 = vmatprep.subr.bf16.mxu0 0
        %5547 = vmatpush1.bf16.xpose.msra.mxu0 %v5393
        %5548 = vmatprep.subr.bf16.mxu0 0
        %5549 = vmatpush1.bf16.xpose.msra.mxu0 %v5390
        %5550 = vmatprep.subr.bf16.mxu0 0
        %5551 = vmatpush1.bf16.xpose.msra.mxu0 %v5387
        %5552 = vmatprep.subr.bf16.mxu0 0
        %5553 = vmatpush1.bf16.xpose.msra.mxu0 %v5384
        %5554 = vmatprep.subr.bf16.mxu0 0
        %5555 = vmatpush1.bf16.xpose.msra.mxu0 %v5381
        %5556 = vmatprep.subr.bf16.mxu0 0
        %5557 = vmatpush1.bf16.xpose.msra.mxu0 %v5378
        %5558 = vmatprep.subr.bf16.mxu0 0
        %5559 = vmatpush2.bf16.xpose.msra.mxu0 %v5423
        %5560 = vmatprep.subr.bf16.mxu0 0
        %5561 = vmatpush2.bf16.xpose.msra.mxu0 %v5420
        %5562 = vmatprep.subr.bf16.mxu0 0
        %5563 = vmatpush2.bf16.xpose.msra.mxu0 %v5417
        %5564 = vmatprep.subr.bf16.mxu0 0
        %5565 = vmatpush2.bf16.xpose.msra.mxu0 %v5414
        %5566 = vmatprep.subr.bf16.mxu0 0
        %5567 = vmatpush2.bf16.xpose.msra.mxu0 %v5411
        %5568 = vmatprep.subr.bf16.mxu0 0
        %5569 = vmatpush2.bf16.xpose.msra.mxu0 %v5408
        %5570 = vmatprep.subr.bf16.mxu0 0
        %5571 = vmatpush2.bf16.xpose.msra.mxu0 %v5405
        %5572 = vmatprep.subr.bf16.mxu0 0
        %5573 = vmatpush2.bf16.xpose.msra.mxu0 %v5402
        %5574 = vmatprep.mubr.bf16.mxu0 0
        %5575 = vmatmul.mubr.bf16.gmra.mxu0 %v5540
        %v5576 = vpop.f32.mrf.mxu0
        %v5577 = vadd.f32 0.0, %v5576
        %v5578 = vpop.f32.mrf.mxu0
        %v5579 = vadd.f32 0.0, %v5578
        %v5580 = vpop.f32.mrf.mxu0
        %v5581 = vpop.f32.mrf.mxu0
        %5582 = vdwg.mxu0
        %v5583 = vlaneseq
        %v5584 = vshrl.u32 %v5583, 7
        %v5585 = vsub.s32 0, %v5584
        %v5586 = vrot.slane %v5577, %v5585
        %v5587 = vadd.f32 %v5460, %v5586
        %v5588 = vadd.f32 %v5464, %v5586
        %v5589 = vadd.f32 %v5470, %v5586
        %v5590 = vadd.f32 %v5474, %v5586
        %v5591 = vadd.f32 %v5480, %v5586
        %v5592 = vadd.f32 %v5484, %v5586
        %v5593 = vadd.f32 %v5490, %v5586
        %v5594 = vadd.f32 %v5494, %v5586
        %v5595 = vadd.f32 %v5500, %v5586
        %v5596 = vadd.f32 %v5504, %v5586
        %v5597 = vadd.f32 %v5510, %v5586
        %v5598 = vadd.f32 %v5514, %v5586
        %v5599 = vadd.f32 %v5520, %v5586
        %v5600 = vadd.f32 %v5524, %v5586
        %v5601 = vadd.f32 %v5530, %v5586
        %v5602 = vadd.f32 %v5534, %v5586
        %v5603 = vlaneseq
        %v5604 = vshrl.u32 %v5603, 7
        %v5605 = vsub.s32 1, %v5604
        %v5606 = vrot.slane %v5579, %v5605
        %v5607 = vadd.f32 %v5462, %v5606
        %v5608 = vadd.f32 %v5466, %v5606
        %v5609 = vadd.f32 %v5472, %v5606
        %v5610 = vadd.f32 %v5476, %v5606
        %v5611 = vadd.f32 %v5482, %v5606
        %v5612 = vadd.f32 %v5486, %v5606
        %v5613 = vadd.f32 %v5492, %v5606
        %v5614 = vadd.f32 %v5496, %v5606
        %v5615 = vadd.f32 %v5502, %v5606
        %v5616 = vadd.f32 %v5506, %v5606
        %v5617 = vadd.f32 %v5512, %v5606
        %v5618 = vadd.f32 %v5516, %v5606
        %v5619 = vadd.f32 %v5522, %v5606
        %v5620 = vadd.f32 %v5526, %v5606
        %v5621 = vadd.f32 %v5532, %v5606
        %v5622 = vadd.f32 %v5536, %v5606
        %5623 = vrot.lane.b32.xlu0 %v5607, 1
        %v5624 = vpop.permute.xlu0 %5623
        %5625 = vrot.lane.b32.xlu0 %v5608, 1
        %v5626 = vpop.permute.xlu0 %5625
        %5627 = vrot.lane.b32.xlu0 %v5609, 1
        %v5628 = vpop.permute.xlu0 %5627
        %5629 = vrot.lane.b32.xlu0 %v5610, 1
        %v5630 = vpop.permute.xlu0 %5629
        %5631 = vrot.lane.b32.xlu0 %v5611, 1
        %v5632 = vpop.permute.xlu0 %5631
        %5633 = vrot.lane.b32.xlu0 %v5612, 1
        %v5634 = vpop.permute.xlu0 %5633
        %5635 = vrot.lane.b32.xlu0 %v5613, 1
        %v5636 = vpop.permute.xlu0 %5635
        %5637 = vrot.lane.b32.xlu0 %v5614, 1
        %v5638 = vpop.permute.xlu0 %5637
        %5639 = vrot.lane.b32.xlu0 %v5615, 1
        %v5640 = vpop.permute.xlu0 %5639
        %5641 = vrot.lane.b32.xlu0 %v5616, 1
        %v5642 = vpop.permute.xlu0 %5641
        %5643 = vrot.lane.b32.xlu0 %v5617, 1
        %v5644 = vpop.permute.xlu0 %5643
        %5645 = vrot.lane.b32.xlu0 %v5618, 1
        %v5646 = vpop.permute.xlu0 %5645
        %5647 = vrot.lane.b32.xlu0 %v5619, 1
        %v5648 = vpop.permute.xlu0 %5647
        %5649 = vrot.lane.b32.xlu0 %v5620, 1
        %v5650 = vpop.permute.xlu0 %5649
        %5651 = vrot.lane.b32.xlu0 %v5621, 1
        %v5652 = vpop.permute.xlu0 %5651
        %5653 = vrot.lane.b32.xlu0 %v5622, 1
        %v5654 = vpop.permute.xlu0 %5653
        %5656 = vrot.lane.b32.xlu0 %v5624, 256
        %v5657 = vpop.permute.xlu0 %5656
        %s5659 = sor.u32 256, 8
        %5660 = vrot.lane.b32.xlu0 %v5626, %s5659
        %v5661 = vpop.permute.xlu0 %5660
        %s5663 = sor.u32 256, 16
        %5664 = vrot.lane.b32.xlu0 %v5628, %s5663
        %v5665 = vpop.permute.xlu0 %5664
        %s5667 = sor.u32 256, 24
        %5668 = vrot.lane.b32.xlu0 %v5630, %s5667
        %v5669 = vpop.permute.xlu0 %5668
        %s5671 = sor.u32 256, 32
        %5672 = vrot.lane.b32.xlu0 %v5632, %s5671
        %v5673 = vpop.permute.xlu0 %5672
        %s5675 = sor.u32 256, 40
        %5676 = vrot.lane.b32.xlu0 %v5634, %s5675
        %v5677 = vpop.permute.xlu0 %5676
        %s5679 = sor.u32 256, 48
        %5680 = vrot.lane.b32.xlu0 %v5636, %s5679
        %v5681 = vpop.permute.xlu0 %5680
        %s5683 = sor.u32 256, 56
        %5684 = vrot.lane.b32.xlu0 %v5638, %s5683
        %v5685 = vpop.permute.xlu0 %5684
        %s5687 = sor.u32 256, 64
        %5688 = vrot.lane.b32.xlu0 %v5640, %s5687
        %v5689 = vpop.permute.xlu0 %5688
        %s5691 = sor.u32 256, 72
        %5692 = vrot.lane.b32.xlu0 %v5642, %s5691
        %v5693 = vpop.permute.xlu0 %5692
        %s5695 = sor.u32 256, 80
        %5696 = vrot.lane.b32.xlu0 %v5644, %s5695
        %v5697 = vpop.permute.xlu0 %5696
        %s5699 = sor.u32 256, 88
        %5700 = vrot.lane.b32.xlu0 %v5646, %s5699
        %v5701 = vpop.permute.xlu0 %5700
        %s5703 = sor.u32 256, 96
        %5704 = vrot.lane.b32.xlu0 %v5648, %s5703
        %v5705 = vpop.permute.xlu0 %5704
        %s5707 = sor.u32 256, 104
        %5708 = vrot.lane.b32.xlu0 %v5650, %s5707
        %v5709 = vpop.permute.xlu0 %5708
        %s5711 = sor.u32 256, 112
        %5712 = vrot.lane.b32.xlu0 %v5652, %s5711
        %v5713 = vpop.permute.xlu0 %5712
        %s5715 = sor.u32 256, 120
        %5716 = vrot.lane.b32.xlu0 %v5654, %s5715
        %v5717 = vpop.permute.xlu0 %5716
        %v5718 = vrot.slane %v5657, 1
        %v5719 = vrot.slane %v5661, 1
        %v5720 = vrot.slane %v5665, 1
        %v5721 = vrot.slane %v5669, 1
        %v5722 = vrot.slane %v5673, 1
        %v5723 = vrot.slane %v5677, 1
        %v5724 = vrot.slane %v5681, 1
        %v5725 = vrot.slane %v5685, 1
        %v5726 = vrot.slane %v5689, 1
        %v5727 = vrot.slane %v5693, 1
        %v5728 = vrot.slane %v5697, 1
        %v5729 = vrot.slane %v5701, 1
        %v5730 = vrot.slane %v5705, 1
        %v5731 = vrot.slane %v5709, 1
        %v5732 = vrot.slane %v5713, 1
        %v5733 = vrot.slane %v5717, 1
        %v5734 = vsel %vm2863, %v5732, %v5733
        %v5735 = vsel %vm2863, %v5731, %v5732
        %v5736 = vsel %vm2863, %v5730, %v5731
        %v5737 = vsel %vm2863, %v5729, %v5730
        %v5738 = vsel %vm2863, %v5728, %v5729
        %v5739 = vsel %vm2863, %v5727, %v5728
        %v5740 = vsel %vm2863, %v5726, %v5727
        %v5741 = vsel %vm2863, %v5725, %v5726
        %v5742 = vsel %vm2863, %v5724, %v5725
        %v5743 = vsel %vm2863, %v5723, %v5724
        %v5744 = vsel %vm2863, %v5722, %v5723
        %v5745 = vsel %vm2863, %v5721, %v5722
        %v5746 = vsel %vm2863, %v5720, %v5721
        %v5747 = vsel %vm2863, %v5719, %v5720
        %v5748 = vsel %vm2863, %v5718, %v5719
        %v5749 = vsel %vm2863, %v5733, %v5718
        %v5750 = vsel %vm2466, 0.0, %v5748
        %v5751 = vsel %vm2467, 0.0, %v5747
        %v5752 = vsel %vm2468, 0.0, %v5746
        %v5753 = vsel %vm2469, 0.0, %v5745
        %v5754 = vsel %vm2470, 0.0, %v5744
        %v5755 = vsel %vm2471, 0.0, %v5743
        %v5756 = vsel %vm2472, 0.0, %v5742
        %v5757 = vsel %vm2473, 0.0, %v5741
        %v5758 = vsel %vm2474, 0.0, %v5740
        %v5759 = vsel %vm2475, 0.0, %v5739
        %v5760 = vsel %vm2476, 0.0, %v5738
        %v5761 = vsel %vm2477, 0.0, %v5737
        %v5762 = vsel %vm2478, 0.0, %v5736
        %v5763 = vsel %vm2479, 0.0, %v5735
        %v5764 = vsel %vm2480, 0.0, %v5734
        %v5765 = vsel %vm2481, 0.0, %v5749
        %v5766 = vsel %vm2450, %v5657, %v5750
        %v5767 = vsel %vm2451, %v5661, %v5751
        %v5768 = vsel %vm2452, %v5665, %v5752
        %v5769 = vsel %vm2453, %v5669, %v5753
        %v5770 = vsel %vm2454, %v5673, %v5754
        %v5771 = vsel %vm2455, %v5677, %v5755
        %v5772 = vsel %vm2456, %v5681, %v5756
        %v5773 = vsel %vm2457, %v5685, %v5757
        %v5774 = vsel %vm2458, %v5689, %v5758
        %v5775 = vsel %vm2459, %v5693, %v5759
        %v5776 = vsel %vm2460, %v5697, %v5760
        %v5777 = vsel %vm2461, %v5701, %v5761
        %v5778 = vsel %vm2462, %v5705, %v5762
        %v5779 = vsel %vm2463, %v5709, %v5763
        %v5780 = vsel %vm2464, %v5713, %v5764
        %v5781 = vsel %vm2465, %v5717, %v5765
        %v5782 = vadd.f32 %v5587, %v5766
        %v5783 = vadd.f32 %v5588, %v5767
        %v5784 = vadd.f32 %v5589, %v5768
        %v5785 = vadd.f32 %v5590, %v5769
        %v5786 = vadd.f32 %v5591, %v5770
        %v5787 = vadd.f32 %v5592, %v5771
        %v5788 = vadd.f32 %v5593, %v5772
        %v5789 = vadd.f32 %v5594, %v5773
        %v5790 = vadd.f32 %v5595, %v5774
        %v5791 = vadd.f32 %v5596, %v5775
        %v5792 = vadd.f32 %v5597, %v5776
        %v5793 = vadd.f32 %v5598, %v5777
        %v5794 = vadd.f32 %v5599, %v5778
        %v5795 = vadd.f32 %v5600, %v5779
        %v5796 = vadd.f32 %v5601, %v5780
        %v5797 = vadd.f32 %v5602, %v5781
        %5798 = vmax.xlane.f32.xlu0 %v5782
        %v5799 = vpop.xlane.xlu0 %5798
        %5800 = vmax.xlane.f32.xlu0 %v5783
        %v5801 = vpop.xlane.xlu0 %5800
        %5802 = vmax.xlane.f32.xlu0 %v5784
        %v5803 = vpop.xlane.xlu0 %5802
        %5804 = vmax.xlane.f32.xlu0 %v5785
        %v5805 = vpop.xlane.xlu0 %5804
        %5806 = vmax.xlane.f32.xlu0 %v5786
        %v5807 = vpop.xlane.xlu0 %5806
        %5808 = vmax.xlane.f32.xlu0 %v5787
        %v5809 = vpop.xlane.xlu0 %5808
        %5810 = vmax.xlane.f32.xlu0 %v5788
        %v5811 = vpop.xlane.xlu0 %5810
        %5812 = vmax.xlane.f32.xlu0 %v5789
        %v5813 = vpop.xlane.xlu0 %5812
        %5814 = vmax.xlane.f32.xlu0 %v5790
        %v5815 = vpop.xlane.xlu0 %5814
        %5816 = vmax.xlane.f32.xlu0 %v5791
        %v5817 = vpop.xlane.xlu0 %5816
        %5818 = vmax.xlane.f32.xlu0 %v5792
        %v5819 = vpop.xlane.xlu0 %5818
        %5820 = vmax.xlane.f32.xlu0 %v5793
        %v5821 = vpop.xlane.xlu0 %5820
        %5822 = vmax.xlane.f32.xlu0 %v5794
        %v5823 = vpop.xlane.xlu0 %5822
        %5824 = vmax.xlane.f32.xlu0 %v5795
        %v5825 = vpop.xlane.xlu0 %5824
        %5826 = vmax.xlane.f32.xlu0 %v5796
        %v5827 = vpop.xlane.xlu0 %5826
        %5828 = vmax.xlane.f32.xlu0 %v5797
        %v5829 = vpop.xlane.xlu0 %5828
        %v5830 = vsub.f32 %v5782, %v5799
        %v5831 = vsub.f32 %v5783, %v5801
        %v5832 = vsub.f32 %v5784, %v5803
        %v5833 = vsub.f32 %v5785, %v5805
        %v5834 = vsub.f32 %v5786, %v5807
        %v5835 = vsub.f32 %v5787, %v5809
        %v5836 = vsub.f32 %v5788, %v5811
        %v5837 = vsub.f32 %v5789, %v5813
        %v5838 = vsub.f32 %v5790, %v5815
        %v5839 = vsub.f32 %v5791, %v5817
        %v5840 = vsub.f32 %v5792, %v5819
        %v5841 = vsub.f32 %v5793, %v5821
        %v5842 = vsub.f32 %v5794, %v5823
        %v5843 = vsub.f32 %v5795, %v5825
        %v5844 = vsub.f32 %v5796, %v5827
        %v5845 = vsub.f32 %v5797, %v5829
        %v5846 = vmul.f32 %v5830, 1.442695
        %v5847 = vpow.pop %v5846
        %v5848 = vmul.f32 %v5831, 1.442695
        %v5849 = vpow.pop %v5848
        %v5850 = vmul.f32 %v5832, 1.442695
        %v5851 = vpow.pop %v5850
        %v5852 = vmul.f32 %v5833, 1.442695
        %v5853 = vpow.pop %v5852
        %v5854 = vmul.f32 %v5834, 1.442695
        %v5855 = vpow.pop %v5854
        %v5856 = vmul.f32 %v5835, 1.442695
        %v5857 = vpow.pop %v5856
        %v5858 = vmul.f32 %v5836, 1.442695
        %v5859 = vpow.pop %v5858
        %v5860 = vmul.f32 %v5837, 1.442695
        %v5861 = vpow.pop %v5860
        %v5862 = vmul.f32 %v5838, 1.442695
        %v5863 = vpow.pop %v5862
        %v5864 = vmul.f32 %v5839, 1.442695
        %v5865 = vpow.pop %v5864
        %v5866 = vmul.f32 %v5840, 1.442695
        %v5867 = vpow.pop %v5866
        %v5868 = vmul.f32 %v5841, 1.442695
        %v5869 = vpow.pop %v5868
        %v5870 = vmul.f32 %v5842, 1.442695
        %v5871 = vpow.pop %v5870
        %v5872 = vmul.f32 %v5843, 1.442695
        %v5873 = vpow.pop %v5872
        %v5874 = vmul.f32 %v5844, 1.442695
        %v5875 = vpow.pop %v5874
        %v5876 = vmul.f32 %v5845, 1.442695
        %v5877 = vpow.pop %v5876
        %5878 = vadd.xlane.f32.xlu0 %v5847
        %v5879 = vpop.xlane.xlu0 %5878
        %5880 = vadd.xlane.f32.xlu0 %v5849
        %v5881 = vpop.xlane.xlu0 %5880
        %5882 = vadd.xlane.f32.xlu0 %v5851
        %v5883 = vpop.xlane.xlu0 %5882
        %5884 = vadd.xlane.f32.xlu0 %v5853
        %v5885 = vpop.xlane.xlu0 %5884
        %5886 = vadd.xlane.f32.xlu0 %v5855
        %v5887 = vpop.xlane.xlu0 %5886
        %5888 = vadd.xlane.f32.xlu0 %v5857
        %v5889 = vpop.xlane.xlu0 %5888
        %5890 = vadd.xlane.f32.xlu0 %v5859
        %v5891 = vpop.xlane.xlu0 %5890
        %5892 = vadd.xlane.f32.xlu0 %v5861
        %v5893 = vpop.xlane.xlu0 %5892
        %5894 = vadd.xlane.f32.xlu0 %v5863
        %v5895 = vpop.xlane.xlu0 %5894
        %5896 = vadd.xlane.f32.xlu0 %v5865
        %v5897 = vpop.xlane.xlu0 %5896
        %5898 = vadd.xlane.f32.xlu0 %v5867
        %v5899 = vpop.xlane.xlu0 %5898
        %5900 = vadd.xlane.f32.xlu0 %v5869
        %v5901 = vpop.xlane.xlu0 %5900
        %5902 = vadd.xlane.f32.xlu0 %v5871
        %v5903 = vpop.xlane.xlu0 %5902
        %5904 = vadd.xlane.f32.xlu0 %v5873
        %v5905 = vpop.xlane.xlu0 %5904
        %5906 = vadd.xlane.f32.xlu0 %v5875
        %v5907 = vpop.xlane.xlu0 %5906
        %5908 = vadd.xlane.f32.xlu0 %v5877
        %v5909 = vpop.xlane.xlu0 %5908
        %v5910 = vrcp.pop %v5879
        %v5911 = vrcp.pop %v5881
        %v5912 = vrcp.pop %v5883
        %v5913 = vrcp.pop %v5885
        %v5914 = vrcp.pop %v5887
        %v5915 = vrcp.pop %v5889
        %v5916 = vrcp.pop %v5891
        %v5917 = vrcp.pop %v5893
        %v5918 = vrcp.pop %v5895
        %v5919 = vrcp.pop %v5897
        %v5920 = vrcp.pop %v5899
        %v5921 = vrcp.pop %v5901
        %v5922 = vrcp.pop %v5903
        %v5923 = vrcp.pop %v5905
        %v5924 = vrcp.pop %v5907
        %v5925 = vrcp.pop %v5909
        %v5926 = vmul.f32 %v5847, %v5910
        %v5927 = vmul.f32 %v5849, %v5911
        %v5928 = vmul.f32 %v5851, %v5912
        %v5929 = vmul.f32 %v5853, %v5913
        %v5930 = vmul.f32 %v5855, %v5914
        %v5931 = vmul.f32 %v5857, %v5915
        %v5932 = vmul.f32 %v5859, %v5916
        %v5933 = vmul.f32 %v5861, %v5917
        %v5934 = vmul.f32 %v5863, %v5918
        %v5935 = vmul.f32 %v5865, %v5919
        %v5936 = vmul.f32 %v5867, %v5920
        %v5937 = vmul.f32 %v5869, %v5921
        %v5938 = vmul.f32 %v5871, %v5922
        %v5939 = vmul.f32 %v5873, %v5923
        %v5940 = vmul.f32 %v5875, %v5924
        %v5941 = vmul.f32 %v5877, %v5925
        %v5942 = vpack.c.bf16 %v5927, %v5926
        %v5943 = vpack.c.bf16 %v5929, %v5928
        %v5944 = vpack.c.bf16 %v5931, %v5930
        %v5945 = vpack.c.bf16 %v5933, %v5932
        %v5946 = vpack.c.bf16 %v5935, %v5934
        %v5947 = vpack.c.bf16 %v5937, %v5936
        %v5948 = vpack.c.bf16 %v5939, %v5938
        %v5949 = vpack.c.bf16 %v5941, %v5940
        %5958 = vrot.lane.b32.xlu0 %v1980, 64
        %v5959 = vpop.permute.xlu0 %5958
        %5960 = vrot.lane.b32.xlu0 %v1982, 64
        %v5961 = vpop.permute.xlu0 %5960
        %5962 = vrot.lane.b32.xlu0 %v1984, 64
        %v5963 = vpop.permute.xlu0 %5962
        %5964 = vrot.lane.b32.xlu0 %v1986, 64
        %v5965 = vpop.permute.xlu0 %5964
        %5966 = vrot.lane.b32.xlu0 %v1988, 64
        %v5967 = vpop.permute.xlu0 %5966
        %5968 = vrot.lane.b32.xlu0 %v1990, 64
        %v5969 = vpop.permute.xlu0 %5968
        %5970 = vrot.lane.b32.xlu0 %v1992, 64
        %v5971 = vpop.permute.xlu0 %5970
        %5972 = vrot.lane.b32.xlu0 %v1994, 64
        %v5973 = vpop.permute.xlu0 %5972
        %5982 = vmatprep.subr.bf16.mxu0 0
        %5983 = vmatpush1.bf16.msra.mxu0 %v5973
        %5984 = vmatprep.subr.bf16.mxu0 0
        %5985 = vmatpush1.bf16.msra.mxu0 %v5971
        %5986 = vmatprep.subr.bf16.mxu0 0
        %5987 = vmatpush1.bf16.msra.mxu0 %v5969
        %5988 = vmatprep.subr.bf16.mxu0 0
        %5989 = vmatpush1.bf16.msra.mxu0 %v5967
        %5990 = vmatprep.subr.bf16.mxu0 0
        %5991 = vmatpush1.bf16.msra.mxu0 %v5965
        %5992 = vmatprep.subr.bf16.mxu0 0
        %5993 = vmatpush1.bf16.msra.mxu0 %v5963
        %5994 = vmatprep.subr.bf16.mxu0 0
        %5995 = vmatpush1.bf16.msra.mxu0 %v5961
        %5996 = vmatprep.subr.bf16.mxu0 0
        %5997 = vmatpush1.bf16.msra.mxu0 %v5959
        %5998 = vmatprep.subr.bf16.mxu0 0
        %5999 = vmatpush2.bf16.msra.mxu0 0
        %6000 = vmatprep.subr.bf16.mxu0 0
        %6001 = vmatpush2.bf16.msra.mxu0 0
        %6002 = vmatprep.subr.bf16.mxu0 0
        %6003 = vmatpush2.bf16.msra.mxu0 0
        %6004 = vmatprep.subr.bf16.mxu0 0
        %6005 = vmatpush2.bf16.msra.mxu0 0
        %6006 = vmatprep.subr.bf16.mxu0 0
        %6007 = vmatpush2.bf16.msra.mxu0 0
        %6008 = vmatprep.subr.bf16.mxu0 0
        %6009 = vmatpush2.bf16.msra.mxu0 0
        %6010 = vmatprep.subr.bf16.mxu0 0
        %6011 = vmatpush2.bf16.msra.mxu0 0
        %6012 = vmatprep.subr.bf16.mxu0 0
        %6013 = vmatpush2.bf16.msra.mxu0 0
        %6014 = vmatprep.mubr.bf16.mxu0 0
        %6015 = vmatmul.mubr.bf16.gmra.mxu0 %v5942
        %v6016 = vpop.f32.mrf.mxu0
        %v6017 = vadd.f32 0.0, %v6016
        %v6018 = vpop.f32.mrf.mxu0
        %v6019 = vpop.f32.mrf.mxu0
        %v6020 = vadd.f32 0.0, %v6019
        %v6021 = vpop.f32.mrf.mxu0
        %6022 = vmatprep.mubr.bf16.mxu0 0
        %6023 = vmatmul.mubr.bf16.gmra.mxu0 %v5943
        %v6024 = vpop.f32.mrf.mxu0
        %v6025 = vadd.f32 0.0, %v6024
        %v6026 = vpop.f32.mrf.mxu0
        %v6027 = vpop.f32.mrf.mxu0
        %v6028 = vadd.f32 0.0, %v6027
        %v6029 = vpop.f32.mrf.mxu0
        %6030 = vmatprep.mubr.bf16.mxu0 0
        %6031 = vmatmul.mubr.bf16.gmra.mxu0 %v5944
        %v6032 = vpop.f32.mrf.mxu0
        %v6033 = vadd.f32 0.0, %v6032
        %v6034 = vpop.f32.mrf.mxu0
        %v6035 = vpop.f32.mrf.mxu0
        %v6036 = vadd.f32 0.0, %v6035
        %v6037 = vpop.f32.mrf.mxu0
        %6038 = vmatprep.mubr.bf16.mxu0 0
        %6039 = vmatmul.mubr.bf16.gmra.mxu0 %v5945
        %v6040 = vpop.f32.mrf.mxu0
        %v6041 = vadd.f32 0.0, %v6040
        %v6042 = vpop.f32.mrf.mxu0
        %v6043 = vpop.f32.mrf.mxu0
        %v6044 = vadd.f32 0.0, %v6043
        %v6045 = vpop.f32.mrf.mxu0
        %6046 = vmatprep.mubr.bf16.mxu0 0
        %6047 = vmatmul.mubr.bf16.gmra.mxu0 %v5946
        %v6048 = vpop.f32.mrf.mxu0
        %v6049 = vadd.f32 0.0, %v6048
        %v6050 = vpop.f32.mrf.mxu0
        %v6051 = vpop.f32.mrf.mxu0
        %v6052 = vadd.f32 0.0, %v6051
        %v6053 = vpop.f32.mrf.mxu0
        %6054 = vmatprep.mubr.bf16.mxu0 0
        %6055 = vmatmul.mubr.bf16.gmra.mxu0 %v5947
        %v6056 = vpop.f32.mrf.mxu0
        %v6057 = vadd.f32 0.0, %v6056
        %v6058 = vpop.f32.mrf.mxu0
        %v6059 = vpop.f32.mrf.mxu0
        %v6060 = vadd.f32 0.0, %v6059
        %v6061 = vpop.f32.mrf.mxu0
        %6062 = vmatprep.mubr.bf16.mxu0 0
        %6063 = vmatmul.mubr.bf16.gmra.mxu0 %v5948
        %v6064 = vpop.f32.mrf.mxu0
        %v6065 = vadd.f32 0.0, %v6064
        %v6066 = vpop.f32.mrf.mxu0
        %v6067 = vpop.f32.mrf.mxu0
        %v6068 = vadd.f32 0.0, %v6067
        %v6069 = vpop.f32.mrf.mxu0
        %6070 = vmatprep.mubr.bf16.mxu0 0
        %6071 = vmatmul.mubr.bf16.gmra.mxu0 %v5949
        %v6072 = vpop.f32.mrf.mxu0
        %v6073 = vadd.f32 0.0, %v6072
        %v6074 = vpop.f32.mrf.mxu0
        %v6075 = vpop.f32.mrf.mxu0
        %v6076 = vadd.f32 0.0, %v6075
        %v6077 = vpop.f32.mrf.mxu0
        %6078 = vdwg.mxu0
        %v6079 = vld [vmem:[#allocation16 + $0xc0] sm:$0xff]
        %v6080 = vld [vmem:[#allocation16 + $0xc8] sm:$0xff]
        %v6081 = vld [vmem:[#allocation16 + $0xd0] sm:$0xff]
        %v6082 = vld [vmem:[#allocation16 + $0xd8] sm:$0xff]
        %v6083 = vld [vmem:[#allocation16 + $0xe0] sm:$0xff]
        %v6084 = vld [vmem:[#allocation16 + $0xe8] sm:$0xff]
        %v6085 = vld [vmem:[#allocation16 + $0xf0] sm:$0xff]
        %v6086 = vld [vmem:[#allocation16 + $0xf8] sm:$0xff]
        %v6087 = vpack.c.bf16 %v6020, %v6017
        %v6088 = vpack.c.bf16 %v6028, %v6025
        %v6089 = vpack.c.bf16 %v6036, %v6033
        %v6090 = vpack.c.bf16 %v6044, %v6041
        %v6091 = vpack.c.bf16 %v6052, %v6049
        %v6092 = vpack.c.bf16 %v6060, %v6057
        %v6093 = vpack.c.bf16 %v6068, %v6065
        %v6094 = vpack.c.bf16 %v6076, %v6073
        %v6103 = vunpack.c.l.b16 %v6079
        %v6104 = vunpack.c.h.b16 %v6079
        %v6105 = vunpack.c.l.b16 %v6080
        %v6106 = vunpack.c.h.b16 %v6080
        %v6107 = vunpack.c.l.b16 %v6081
        %v6108 = vunpack.c.h.b16 %v6081
        %v6109 = vunpack.c.l.b16 %v6082
        %v6110 = vunpack.c.h.b16 %v6082
        %v6111 = vunpack.c.l.b16 %v6083
        %v6112 = vunpack.c.h.b16 %v6083
        %v6113 = vunpack.c.l.b16 %v6084
        %v6114 = vunpack.c.h.b16 %v6084
        %v6115 = vunpack.c.l.b16 %v6085
        %v6116 = vunpack.c.h.b16 %v6085
        %v6117 = vunpack.c.l.b16 %v6086
        %v6118 = vunpack.c.h.b16 %v6086
        %v6119 = vpack.c.b16 %v6105, %v6103
        %v6120 = vpack.c.b16 %v6106, %v6104
        %v6121 = vpack.c.b16 %v6109, %v6107
        %v6122 = vpack.c.b16 %v6110, %v6108
        %v6123 = vpack.c.b16 %v6113, %v6111
        %v6124 = vpack.c.b16 %v6114, %v6112
        %v6125 = vpack.c.b16 %v6117, %v6115
        %v6126 = vpack.c.b16 %v6118, %v6116
        %v6136 = vsel %vm2482, %v6087, 0
        %v6139 = vsel %vm2482, %v6088, 0
        %v6142 = vsel %vm2482, %v6089, 0
        %v6145 = vsel %vm2482, %v6090, 0
        %v6148 = vsel %vm2482, %v6091, 0
        %v6151 = vsel %vm2482, %v6092, 0
        %v6154 = vsel %vm2482, %v6093, 0
        %v6157 = vsel %vm2482, %v6094, 0
        %6159 = vmatprep.subr.bf16.mxu0 0
        %6160 = vmatpush1.bf16.msra.mxu0 0
        %6161 = vmatprep.subr.bf16.mxu0 0
        %6162 = vmatpush1.bf16.msra.mxu0 0
        %6163 = vmatprep.subr.bf16.mxu0 0
        %6164 = vmatpush1.bf16.msra.mxu0 0
        %6165 = vmatprep.subr.bf16.mxu0 0
        %6166 = vmatpush1.bf16.msra.mxu0 0
        %6167 = vmatprep.subr.bf16.mxu0 %v6126
        %6168 = vmatpush1.bf16.msra.mxu0 %v6125
        %6169 = vmatprep.subr.bf16.mxu0 %v6124
        %6170 = vmatpush1.bf16.msra.mxu0 %v6123
        %6171 = vmatprep.subr.bf16.mxu0 %v6122
        %6172 = vmatpush1.bf16.msra.mxu0 %v6121
        %6173 = vmatprep.subr.bf16.mxu0 %v6120
        %6174 = vmatpush1.bf16.msra.mxu0 %v6119
        %6175 = vmatprep.subr.bf16.mxu0 0
        %6176 = vmatpush2.bf16.msra.mxu0 0
        %6177 = vmatprep.subr.bf16.mxu0 0
        %6178 = vmatpush2.bf16.msra.mxu0 0
        %6179 = vmatprep.subr.bf16.mxu0 0
        %6180 = vmatpush2.bf16.msra.mxu0 0
        %6181 = vmatprep.subr.bf16.mxu0 0
        %6182 = vmatpush2.bf16.msra.mxu0 0
        %6183 = vmatprep.subr.bf16.mxu0 0
        %6184 = vmatpush2.bf16.msra.mxu0 0
        %6185 = vmatprep.subr.bf16.mxu0 0
        %6186 = vmatpush2.bf16.msra.mxu0 0
        %6187 = vmatprep.subr.bf16.mxu0 0
        %6188 = vmatpush2.bf16.msra.mxu0 0
        %6189 = vmatprep.subr.bf16.mxu0 0
        %6190 = vmatpush2.bf16.msra.mxu0 0
        %6191 = vmatprep.mubr.bf16.mxu0 0
        %6192 = vmatmul.mubr.bf16.gmra.mxu0 %v6136
        %v6193 = vpop.f32.mrf.mxu0
        %v6194 = vadd.f32 0.0, %v6193
        %v6195 = vpop.f32.mrf.mxu0
        %v6196 = vadd.f32 0.0, %v6195
        %v6197 = vpop.f32.mrf.mxu0
        %v6198 = vadd.f32 0.0, %v6197
        %v6199 = vpop.f32.mrf.mxu0
        %v6200 = vadd.f32 0.0, %v6199
        %6201 = vmatprep.mubr.bf16.mxu0 0
        %6202 = vmatmul.mubr.bf16.gmra.mxu0 %v6139
        %v6203 = vpop.f32.mrf.mxu0
        %v6204 = vadd.f32 0.0, %v6203
        %v6205 = vpop.f32.mrf.mxu0
        %v6206 = vadd.f32 0.0, %v6205
        %v6207 = vpop.f32.mrf.mxu0
        %v6208 = vadd.f32 0.0, %v6207
        %v6209 = vpop.f32.mrf.mxu0
        %v6210 = vadd.f32 0.0, %v6209
        %6211 = vmatprep.mubr.bf16.mxu0 0
        %6212 = vmatmul.mubr.bf16.gmra.mxu0 %v6142
        %v6213 = vpop.f32.mrf.mxu0
        %v6214 = vadd.f32 0.0, %v6213
        %v6215 = vpop.f32.mrf.mxu0
        %v6216 = vadd.f32 0.0, %v6215
        %v6217 = vpop.f32.mrf.mxu0
        %v6218 = vadd.f32 0.0, %v6217
        %v6219 = vpop.f32.mrf.mxu0
        %v6220 = vadd.f32 0.0, %v6219
        %6221 = vmatprep.mubr.bf16.mxu0 0
        %6222 = vmatmul.mubr.bf16.gmra.mxu0 %v6145
        %v6223 = vpop.f32.mrf.mxu0
        %v6224 = vadd.f32 0.0, %v6223
        %v6225 = vpop.f32.mrf.mxu0
        %v6226 = vadd.f32 0.0, %v6225
        %v6227 = vpop.f32.mrf.mxu0
        %v6228 = vadd.f32 0.0, %v6227
        %v6229 = vpop.f32.mrf.mxu0
        %v6230 = vadd.f32 0.0, %v6229
        %6231 = vmatprep.mubr.bf16.mxu0 0
        %6232 = vmatmul.mubr.bf16.gmra.mxu0 %v6148
        %v6233 = vpop.f32.mrf.mxu0
        %v6234 = vadd.f32 0.0, %v6233
        %v6235 = vpop.f32.mrf.mxu0
        %v6236 = vadd.f32 0.0, %v6235
        %v6237 = vpop.f32.mrf.mxu0
        %v6238 = vadd.f32 0.0, %v6237
        %v6239 = vpop.f32.mrf.mxu0
        %v6240 = vadd.f32 0.0, %v6239
        %6241 = vmatprep.mubr.bf16.mxu0 0
        %6242 = vmatmul.mubr.bf16.gmra.mxu0 %v6151
        %v6243 = vpop.f32.mrf.mxu0
        %v6244 = vadd.f32 0.0, %v6243
        %v6245 = vpop.f32.mrf.mxu0
        %v6246 = vadd.f32 0.0, %v6245
        %v6247 = vpop.f32.mrf.mxu0
        %v6248 = vadd.f32 0.0, %v6247
        %v6249 = vpop.f32.mrf.mxu0
        %v6250 = vadd.f32 0.0, %v6249
        %6251 = vmatprep.mubr.bf16.mxu0 0
        %6252 = vmatmul.mubr.bf16.gmra.mxu0 %v6154
        %v6253 = vpop.f32.mrf.mxu0
        %v6254 = vadd.f32 0.0, %v6253
        %v6255 = vpop.f32.mrf.mxu0
        %v6256 = vadd.f32 0.0, %v6255
        %v6257 = vpop.f32.mrf.mxu0
        %v6258 = vadd.f32 0.0, %v6257
        %v6259 = vpop.f32.mrf.mxu0
        %v6260 = vadd.f32 0.0, %v6259
        %6261 = vmatprep.mubr.bf16.mxu0 0
        %6262 = vmatmul.mubr.bf16.gmra.mxu0 %v6157
        %v6263 = vpop.f32.mrf.mxu0
        %v6264 = vadd.f32 0.0, %v6263
        %v6265 = vpop.f32.mrf.mxu0
        %v6266 = vadd.f32 0.0, %v6265
        %v6267 = vpop.f32.mrf.mxu0
        %v6268 = vadd.f32 0.0, %v6267
        %v6269 = vpop.f32.mrf.mxu0
        %v6270 = vadd.f32 0.0, %v6269
        %6271 = vdwg.mxu0
        %v6272 = vadd.f32 %v5249, %v6194
        %v6273 = vadd.f32 %v5250, %v6196
        %v6274 = vadd.f32 %v5251, %v6198
        %v6275 = vadd.f32 %v5252, %v6200
        %v6276 = vadd.f32 %v5253, %v6204
        %v6277 = vadd.f32 %v5254, %v6206
        %v6278 = vadd.f32 %v5255, %v6208
        %v6279 = vadd.f32 %v5256, %v6210
        %v6280 = vadd.f32 %v5257, %v6214
        %v6281 = vadd.f32 %v5258, %v6216
        %v6282 = vadd.f32 %v5259, %v6218
        %v6283 = vadd.f32 %v5260, %v6220
        %v6284 = vadd.f32 %v5261, %v6224
        %v6285 = vadd.f32 %v5262, %v6226
        %v6286 = vadd.f32 %v5263, %v6228
        %v6287 = vadd.f32 %v5264, %v6230
        %v6288 = vadd.f32 %v5265, %v6234
        %v6289 = vadd.f32 %v5266, %v6236
        %v6290 = vadd.f32 %v5267, %v6238
        %v6291 = vadd.f32 %v5268, %v6240
        %v6292 = vadd.f32 %v5269, %v6244
        %v6293 = vadd.f32 %v5270, %v6246
        %v6294 = vadd.f32 %v5271, %v6248
        %v6295 = vadd.f32 %v5272, %v6250
        %v6296 = vadd.f32 %v5273, %v6254
        %v6297 = vadd.f32 %v5274, %v6256
        %v6298 = vadd.f32 %v5275, %v6258
        %v6299 = vadd.f32 %v5276, %v6260
        %v6300 = vadd.f32 %v5277, %v6264
        %v6301 = vadd.f32 %v5278, %v6266
        %v6302 = vadd.f32 %v5279, %v6268
        %v6303 = vadd.f32 %v5280, %v6270
        %v6304 = vld [vmem:[%s13] sm:$0x3]
        %v6306 = vlaneseq
        %v6307 = vshrl.u32 %v6306, 7
        %v6308 = vsub.s32 0, %v6307
        %v6309 = vrot.slane %v6304, %v6308
        %v6310 = vlaneseq
        %v6311 = vshrl.u32 %v6310, 7
        %v6312 = vsub.s32 1, %v6311
        %v6313 = vrot.slane %v6304, %v6312
        %v6316 = vadd.f32 %v6272, %v6309
        %v6317 = vadd.f32 %v6273, %v6313
        %v6318 = vadd.f32 %v6274, %v6309
        %v6319 = vadd.f32 %v6275, %v6313
        %v6320 = vadd.f32 %v6276, %v6309
        %v6321 = vadd.f32 %v6277, %v6313
        %v6322 = vadd.f32 %v6278, %v6309
        %v6323 = vadd.f32 %v6279, %v6313
        %v6324 = vadd.f32 %v6280, %v6309
        %v6325 = vadd.f32 %v6281, %v6313
        %v6326 = vadd.f32 %v6282, %v6309
        %v6327 = vadd.f32 %v6283, %v6313
        %v6328 = vadd.f32 %v6284, %v6309
        %v6329 = vadd.f32 %v6285, %v6313
        %v6330 = vadd.f32 %v6286, %v6309
        %v6331 = vadd.f32 %v6287, %v6313
        %v6332 = vadd.f32 %v6288, %v6309
        %v6333 = vadd.f32 %v6289, %v6313
        %v6334 = vadd.f32 %v6290, %v6309
        %v6335 = vadd.f32 %v6291, %v6313
        %v6336 = vadd.f32 %v6292, %v6309
        %v6337 = vadd.f32 %v6293, %v6313
        %v6338 = vadd.f32 %v6294, %v6309
        %v6339 = vadd.f32 %v6295, %v6313
        %v6340 = vadd.f32 %v6296, %v6309
        %v6341 = vadd.f32 %v6297, %v6313
        %v6342 = vadd.f32 %v6298, %v6309
        %v6343 = vadd.f32 %v6299, %v6313
        %v6344 = vadd.f32 %v6300, %v6309
        %v6345 = vadd.f32 %v6301, %v6313
        %v6346 = vadd.f32 %v6302, %v6309
        %v6347 = vadd.f32 %v6303, %v6313
        %6348 = vst [vmem:[%s674] sm:$0xff] %v6316
        %6349 = vst [vmem:[%s674 + $0x8] sm:$0xff] %v6317
        %6350 = vst [vmem:[%s674 + $0x10] sm:$0xff] %v6318
        %6351 = vst [vmem:[%s674 + $0x18] sm:$0xff] %v6319
        %6352 = vst [vmem:[%s674 + $0x20] sm:$0xff] %v6320
        %6353 = vst [vmem:[%s674 + $0x28] sm:$0xff] %v6321
        %6354 = vst [vmem:[%s674 + $0x30] sm:$0xff] %v6322
        %6355 = vst [vmem:[%s674 + $0x38] sm:$0xff] %v6323
        %6356 = vst [vmem:[%s674 + $0x40] sm:$0xff] %v6324
        %6357 = vst [vmem:[%s674 + $0x48] sm:$0xff] %v6325
        %6358 = vst [vmem:[%s674 + $0x50] sm:$0xff] %v6326
        %6359 = vst [vmem:[%s674 + $0x58] sm:$0xff] %v6327
        %6360 = vst [vmem:[%s674 + $0x60] sm:$0xff] %v6328
        %6361 = vst [vmem:[%s674 + $0x68] sm:$0xff] %v6329
        %6362 = vst [vmem:[%s674 + $0x70] sm:$0xff] %v6330
        %6363 = vst [vmem:[%s674 + $0x78] sm:$0xff] %v6331
        %6364 = vst [vmem:[%s674 + $0x80] sm:$0xff] %v6332
        %6365 = vst [vmem:[%s674 + $0x88] sm:$0xff] %v6333
        %6366 = vst [vmem:[%s674 + $0x90] sm:$0xff] %v6334
        %6367 = vst [vmem:[%s674 + $0x98] sm:$0xff] %v6335
        %6368 = vst [vmem:[%s674 + $0xa0] sm:$0xff] %v6336
        %6369 = vst [vmem:[%s674 + $0xa8] sm:$0xff] %v6337
        %6370 = vst [vmem:[%s674 + $0xb0] sm:$0xff] %v6338
        %6371 = vst [vmem:[%s674 + $0xb8] sm:$0xff] %v6339
        %6372 = vst [vmem:[%s674 + $0xc0] sm:$0xff] %v6340
        %6373 = vst [vmem:[%s674 + $0xc8] sm:$0xff] %v6341
        %6374 = vst [vmem:[%s674 + $0xd0] sm:$0xff] %v6342
        %6375 = vst [vmem:[%s674 + $0xd8] sm:$0xff] %v6343
        %6376 = vst [vmem:[%s674 + $0xe0] sm:$0xff] %v6344
        %6377 = vst [vmem:[%s674 + $0xe8] sm:$0xff] %v6345
        %6378 = vst [vmem:[%s674 + $0xf0] sm:$0xff] %v6346
        %6379 = vst [vmem:[%s674 + $0xf8] sm:$0xff] %v6347
        %s6380 = sand.u32 %s361, 1
        %s6381 = scalar_lea.sflag [#allocation4], %s6380
        %s6382 = sand.u32 %s361, 1
        %s6383 = smul.addr %s6382, 256
        %s6384 = scalar_lea.vmem [#allocation17], %s6383
        // Predicated region
        $region113: #{tpu_custom_call.1} parent=75 // pred_check
          %p6385 = pneg %p371
        $region114: #{tpu_custom_call.1} parent=75 // pred_check_branch
          %6387 = sbr.rel (%p6385) target = $region116
        $region115: #{tpu_custom_call.1} parent=75 // pred_region
          %s6389 = ssub.s32 4096, 4096
          %6390 = vsyncadd %s6381, %s6389
          %s6391 = smul.addr %s39, 32
          %s6392 = smul.addr %s6391, 128
          %s6393 = scalar_lea.hbm %s14, %s6392
          %s6394 = sshll.u32 %s6384, 4
          %s6395 = int_to_ptr.vmem [resolvable:$true] %s6394
          %6400 = dma.vmem_to_hbm [thread:$0]  %s6395, 4096, %s6393, %s6381, 256, 256, 16
        $region116: #{tpu_custom_call.1} parent=75 // pred_fallthru
          _
      $region76: #{tpu_custom_call.1} parent=5 // pred_fallthru
        _
      %p6401 = scmp.le.s32.totalorder 2, %s34
      // Predicated region
      $region117: #{tpu_custom_call.1} parent=5 // pred_check
        %p6402 = pneg %p6401
      $region118: #{tpu_custom_call.1} parent=5 // pred_check_branch
        %6404 = sbr.rel (%p6402) target = $region120
      $region119: #{tpu_custom_call.1} parent=5 // pred_region
        %s6405 = ssub.s32 %s34, 2
        // Predicated region
        $region121: #{tpu_custom_call.1} parent=119 // pred_check
          %p6406 = pneg %p377
        $region122: #{tpu_custom_call.1} parent=119 // pred_check_branch
          %6408 = sbr.rel (%p6406) target = $region124
        $region123: #{tpu_custom_call.1} parent=119 // pred_region
          %s6409 = sand.u32 %s362, 1
          %s6410 = scalar_lea.sflag [#allocation4], %s6409
          %s6411 = sand.u32 %s362, 1
          %s6412 = smul.addr %s6411, 256
          %s6413 = scalar_lea.vmem [#allocation17], %s6412
          %6414 = dma.done %s6410, 4096
        $region124: #{tpu_custom_call.1} parent=119 // pred_fallthru
          _
      $region120: #{tpu_custom_call.1} parent=5 // pred_fallthru
        _
    $region6: #{tpu_custom_call.1} parent=1 // loop_footer
      %s38 = sadd.s32 1, %s34
    $region7: #{tpu_custom_call.1} parent=1 // loop_footer_branch
      %33 = sbr.rel target = $region3
    $region8: #{tpu_custom_call.1} parent=1 // loop_exit
      _
    %6415 = vsyncpa [#allocation3], 1
    %s6416 = scalar_lea.sflag [#allocation3], 1
    %6417 = vsyncpa %s6416, 1
    %6418 = vsyncpa [#allocation6], 1
    %s6419 = scalar_lea.sflag [#allocation6], 1
    %6420 = vsyncpa %s6419, 1
    %6421 = vsyncpa [#allocation9], 1
    %s6422 = scalar_lea.sflag [#allocation9], 1
    %6423 = vsyncpa %s6422, 1
    %6424 = vsyncpa [#allocation12], 1
    %6425 = vsyncpa [#allocation15], 1
    %6426 = vsyncpa [#allocation4], 1
    %s6427 = scalar_lea.sflag [#allocation4], 1
    %6428 = vsyncpa %s6427, 1

</llo_original>
